<compile_context>
chip_gen: v6e
topology: v6e:2x2x1
jax: 0.10.0
libtpu: 0.0.40
codegen_flags: <defaults>
</compile_context>

<pallas_src>
from functools import partial
from typing import NamedTuple

import numpy as np
import jax
import jax.numpy as jnp
from jax.experimental import pallas as pl
from jax.experimental.pallas import tpu as pltpu


def _round_up(x: int, m: int) -> int:
    return ((x + m - 1) // m) * m


class DecoderMeta(NamedTuple):
    out_dim: int   # O (unpadded)
    k_dim: int     # K = H * E (unpadded)
    out_pad: int   # Op
    k_pad: int     # Kp
    to_tile: int
    tk_tile: int


def _bilinear_sigmoid_kernel(x_ref, w_ref, b_ref, o_ref, *, tk: int):
    """One (o, k) grid step of out^T = sigmoid(Wf @ X^T + b).

    x_ref : (Np, Kp)        bf16, VMEM-resident (same block every step)
    w_ref : (to_tile, tk)   bf16, streamed weight tile
    b_ref : (to_tile, 1)    f32 bias
    o_ref : (to_tile, Np)   f32, k-resident accumulator / output block
    """
    k = pl.program_id(1)

    @pl.when(k == 0)
    def _():
        o_ref[...] = jnp.zeros_like(o_ref)

    start = pl.multiple_of(k * tk, tk)
    x_chunk = x_ref[:, pl.ds(start, tk)]                 # (Np, tk) bf16
    o_ref[...] += jax.lax.dot_general(                   # contract tk on MXU
        w_ref[...], x_chunk,
        dimension_numbers=(((1,), (1,)), ((), ())),
        preferred_element_type=jnp.float32,
    )

    @pl.when(k == pl.num_programs(1) - 1)
    def _():
        o_ref[...] = jax.nn.sigmoid(o_ref[...] + b_ref[...])


def prepare_decoder_params(W, b, *, to_tile=None, tk_tile=8192):
    """One-time conversion of nn.Bilinear params to the kernel's stored layout.

    Returns (Wf, b2, meta): Wf is the bf16, (Op, Kp)-padded weight, b2 the
    (Op, 1) f32 bias, meta the static tiling description.  Do this at init,
    NOT per forward call.
    """
    O, H, E = W.shape
    K = H * E
    assert b.shape == (O,)

    # Unconditional 2-way O split (feeds both v7x TensorCores); the tile is
    # rounded to 16 so the bf16 weight block's sublane dim stays aligned.
    if to_tile is None:
        to_tile = _round_up(-(-O // 2), 16)
    else:
        to_tile = _round_up(int(to_tile), 16)
    Op = _round_up(O, to_tile)

    tk_tile = min(int(tk_tile), _round_up(K, 128))
    tk_tile = _round_up(tk_tile, 128)
    Kp = _round_up(K, tk_tile)

    Wf = W.reshape(O, K).astype(jnp.bfloat16)
    if Op != O or Kp != K:
        Wf = jnp.pad(Wf, ((0, Op - O), (0, Kp - K)))     # zero rows/cols: no-op
    b2 = b.astype(jnp.float32).reshape(O, 1)
    if Op != O:
        b2 = jnp.pad(b2, ((0, Op - O), (0, 0)))

    meta = DecoderMeta(O, K, Op, Kp, to_tile, tk_tile)
    return jax.device_put(Wf), jax.device_put(b2), meta


@partial(jax.jit, static_argnames=("meta",))
def decoder_forward(h, z, Wf, b2, meta: DecoderMeta):
    """sigmoid(bilinear(h, z; W, b)) using the pre-packed (Wf, b2, meta)."""
    N, H = h.shape
    Nz, E = z.shape
    assert Nz == N and H * E == meta.k_dim

    O, K, Op, Kp, to_tile, tk = meta

    # Per-call glue (a factor O smaller than the weight stream):
    #   X[n, i*E + j] = h[n, i] * z[n, j], cast to bf16, padded to (Np, Kp).
    X = (h[:, :, None] * z[:, None, :]).reshape(N, K).astype(jnp.bfloat16)
    Np = _round_up(max(N, 1), 16)            # packed (16,128) bf16 LHS tiles
    X = jnp.pad(X, ((0, Np - N), (0, Kp - K)))

    grid = (Op // to_tile, Kp // tk)

    # VMEM budget: resident X (2 buffers) + double-buffered Wf tile + bias +
    # the k-resident f32 output block; capped well under v7x's 64 MiB.
    tile_bytes = (2 * Np * Kp * 2            # X (bf16, resident)
                  + 2 * to_tile * tk * 2     # Wf tile (bf16)
                  + 2 * to_tile * 4          # bias (f32)
                  + 2 * to_tile * Np * 4)    # output block (f32)
    vmem_limit = min(48 << 20, max(32 << 20, int(1.3 * tile_bytes) + (4 << 20)))

    out_t = pl.pallas_call(
        partial(_bilinear_sigmoid_kernel, tk=tk),
        out_shape=jax.ShapeDtypeStruct((Op, Np), jnp.float32),
        grid_spec=pltpu.PrefetchScalarGridSpec(
            num_scalar_prefetch=0,
            grid=grid,
            in_specs=[
                pl.BlockSpec((Np, Kp), lambda o, k: (0, 0)),        # X resident
                pl.BlockSpec((to_tile, tk), lambda o, k: (o, k)),   # Wf stream
                pl.BlockSpec((to_tile, 1), lambda o, k: (o, 0)),    # bias
            ],
            out_specs=pl.BlockSpec((to_tile, Np), lambda o, k: (o, 0)),
        ),
        compiler_params=pltpu.CompilerParams(
            dimension_semantics=("parallel", "arbitrary"),
            vmem_limit_bytes=vmem_limit,
        ),
    )(X, Wf, b2)

    return out_t[:O, :N].T                    # (N, O)


def decoder_reference(h, z, W, b):
    """Full-f32 reference (HIGHEST precision)."""
    y = jnp.einsum(
        "ni,oij,nj->no", h, W, z, precision=jax.lax.Precision.HIGHEST
    ) + b[None, :]
    return jax.nn.sigmoid(y)


def decoder_reference_bf16(h, z, W, b):
    """XLA reference at the kernel's precision: bf16 operands, f32 accumulation."""
    N, H = h.shape
    E = z.shape[1]
    O = W.shape[0]
    K = H * E
    X = (h[:, :, None] * z[:, None, :]).reshape(N, K).astype(jnp.bfloat16)
    Wf = W.reshape(O, K).astype(jnp.bfloat16)
    y = jax.lax.dot_general(
        X, Wf, (((1,), (1,)), ((), ())), preferred_element_type=jnp.float32
    ) + b[None, :].astype(jnp.float32)
    return jax.nn.sigmoid(y)


if __name__ == "__main__":
    # Small shapes consistent with the module (Bilinear(HIDDEN, EMB, EMB) +
    # Sigmoid).  Chosen to exercise a non-128-multiple output dim (like the
    # module's 300), the unconditional 2-way O split, and >1 k accumulation
    # step with the default tk_tile.
    N, HIDDEN, EMB = 4, 120, 92

    key = jax.random.PRNGKey(0)
    kh, kz, kw, kb = jax.random.split(key, 4)

    h = jax.random.normal(kh, (N, HIDDEN), dtype=jnp.float32)
    z = jax.random.normal(kz, (N, EMB), dtype=jnp.float32)

    # Deterministic parameter init (mimics nn.Bilinear's uniform(-1/sqrt(in1), +)).
    bound = 1.0 / np.sqrt(HIDDEN)
    W = jax.random.uniform(kw, (EMB, HIDDEN, EMB), jnp.float32, -bound, bound)
    b = jax.random.uniform(kb, (EMB,), jnp.float32, -bound, bound)

    # One-time parameter packing (hoisted out of the per-call path).
    Wf, b2, meta = prepare_decoder_params(W, b)

    out = jax.block_until_ready(decoder_forward(h, z, Wf, b2, meta))
    assert out.shape == (N, EMB) and out.dtype == jnp.float32

    # 1) Kernel exactness vs an XLA reference at the same precision
    #    (bf16 operands, f32 accumulation).
    ref_bf16 = jax.block_until_ready(decoder_reference_bf16(h, z, W, b))
    np.testing.assert_allclose(np.asarray(out), np.asarray(ref_bf16),
                               atol=2e-3, rtol=2e-3)

    # 2) Quantization sanity vs the full-f32 reference (bf16 streaming over
    #    K = H*E terms; sigmoid bounds the error).
    ref_f32 = jax.block_until_ready(decoder_reference(h, z, W, b))
    np.testing.assert_allclose(np.asarray(out), np.asarray(ref_f32),
                               atol=5e-2, rtol=5e-2)

    print("KERNEL_OK")
</pallas_src>

<mosaic_0001>
module attributes {stable_mosaic.version = 11 : i64} {
  func.func @_bilinear_sigmoid_kernel(%arg0: i32, %arg1: i32, %arg2: memref<16x16384xbf16, #tpu.memory_space<vmem>>, %arg3: memref<48x8192xbf16, #tpu.memory_space<vmem>>, %arg4: memref<48x1xf32, #tpu.memory_space<vmem>>, %arg5: memref<48x16xf32, #tpu.memory_space<vmem>>) attributes {dimension_semantics = [#tpu.dimension_semantics<parallel>, #tpu.dimension_semantics<arbitrary>], iteration_bounds = array<i64: 2, 2>, scalar_prefetch = 0 : i64, scratch_operands = 0 : i64, tpu.core_type = #tpu.core_type<tc>, window_params = [{pipeline_mode = #tpu.pipeline_mode<synchronous>, transform_indices = @transform_0, window_bounds = array<i64: 16, 16384>}, {transform_indices = @transform_1, window_bounds = array<i64: 48, 8192>}, {transform_indices = @transform_2, window_bounds = array<i64: 48, 1>}, {transform_indices = @transform_3, window_bounds = array<i64: 48, 16>}]} {
    %c0_i32 = arith.constant 0 : i32
    %0 = arith.cmpi eq, %arg1, %c0_i32 : i32
    %1 = arith.extui %0 : i1 to i32
    %c0_i32_0 = arith.constant 0 : i32
    %2 = arith.cmpi ne, %1, %c0_i32_0 : i32
    scf.if %2 {
      %cst_8 = arith.constant 0.000000e+00 : f32
      %15 = vector.broadcast %cst_8 : f32 to vector<48x16xf32>
      %c0_9 = arith.constant 0 : index
      %c0_10 = arith.constant 0 : index
      %16 = vector.load %arg5[%c0_9, %c0_10] : memref<48x16xf32, #tpu.memory_space<vmem>>, vector<48x16xf32>
      tpu.vector_store %arg5[%c0_9, %c0_10], %15 {strides = array<i32>} : memref<48x16xf32, #tpu.memory_space<vmem>>, vector<48x16xf32>,
    } else {
    }
    %c8192_i32 = arith.constant 8192 : i32
    %3 = arith.muli %arg1, %c8192_i32 : i32
    %4 = tpu.assume_multiple %3, 8192 : i32
    %c0 = arith.constant 0 : index
    %5 = arith.index_cast %4 : i32 to index
    %6 = vector.load %arg2[%c0, %5] : memref<16x16384xbf16, #tpu.memory_space<vmem>>, vector<16x8192xbf16>
    %c0_1 = arith.constant 0 : index
    %c0_2 = arith.constant 0 : index
    %7 = vector.load %arg5[%c0_1, %c0_2] : memref<48x16xf32, #tpu.memory_space<vmem>>, vector<48x16xf32>
    %c0_3 = arith.constant 0 : index
    %c0_4 = arith.constant 0 : index
    %8 = vector.load %arg3[%c0_3, %c0_4] : memref<48x8192xbf16, #tpu.memory_space<vmem>>, vector<48x8192xbf16>
    %cst = arith.constant dense<0.000000e+00> : vector<48x16xf32>
    %9 = tpu.matmul %8, %6, %cst {dimension_numbers = #tpu.dot_dimension_numbers<[1], [1], [0], [0], [0, 0, 1, 0], [], []>} : vector<48x8192xbf16>, vector<16x8192xbf16>, vector<48x16xf32> -> vector<48x16xf32>
    %10 = arith.addf %7, %9 : vector<48x16xf32>
    %c0_5 = arith.constant 0 : index
    %c0_6 = arith.constant 0 : index
    %11 = vector.load %arg5[%c0_5, %c0_6] : memref<48x16xf32, #tpu.memory_space<vmem>>, vector<48x16xf32>
    tpu.vector_store %arg5[%c0_5, %c0_6], %10 {strides = array<i32>} : memref<48x16xf32, #tpu.memory_space<vmem>>, vector<48x16xf32>,
    %c1_i32 = arith.constant 1 : i32
    %12 = arith.cmpi eq, %arg1, %c1_i32 : i32
    %13 = arith.extui %12 : i1 to i32
    %c0_i32_7 = arith.constant 0 : i32
    %14 = arith.cmpi ne, %13, %c0_i32_7 : i32
    scf.if %14 {
      %c0_8 = arith.constant 0 : index
      %c0_9 = arith.constant 0 : index
      %15 = vector.load %arg5[%c0_8, %c0_9] : memref<48x16xf32, #tpu.memory_space<vmem>>, vector<48x16xf32>
      %c0_10 = arith.constant 0 : index
      %c0_11 = arith.constant 0 : index
      %16 = vector.load %arg4[%c0_10, %c0_11] : memref<48x1xf32, #tpu.memory_space<vmem>>, vector<48x1xf32>
      %17 = vector.broadcast %16 : vector<48x1xf32> to vector<48x16xf32>
      %18 = arith.addf %15, %17 : vector<48x16xf32>
      %19 = arith.negf %18 : vector<48x16xf32>
      %20 = math.exp %19 : vector<48x16xf32>
      %cst_12 = arith.constant 1.000000e+00 : f32
      %21 = vector.broadcast %cst_12 : f32 to vector<48x16xf32>
      %22 = arith.addf %21, %20 : vector<48x16xf32>
      %23 = arith.divf %21, %22 : vector<48x16xf32>
      %c0_13 = arith.constant 0 : index
      %c0_14 = arith.constant 0 : index
      %24 = vector.load %arg5[%c0_13, %c0_14] : memref<48x16xf32, #tpu.memory_space<vmem>>, vector<48x16xf32>
      tpu.vector_store %arg5[%c0_13, %c0_14], %23 {strides = array<i32>} : memref<48x16xf32, #tpu.memory_space<vmem>>, vector<48x16xf32>,
    } else {
    }
    return
  }
  func.func @transform_0(%arg0: i32, %arg1: i32) -> (i32, i32) {
    %c0_i32 = arith.constant 0 : i32
    %c0_i32_0 = arith.constant 0 : i32
    %c0_i32_1 = arith.constant 0 : i32
    return %c0_i32, %c0_i32_0 : i32, i32
  }
  func.func @transform_1(%arg0: i32, %arg1: i32) -> (i32, i32) {
    %c0_i32 = arith.constant 0 : i32
    return %arg0, %arg1 : i32, i32
  }
  func.func @transform_2(%arg0: i32, %arg1: i32) -> (i32, i32) {
    %c0_i32 = arith.constant 0 : i32
    %c0_i32_0 = arith.constant 0 : i32
    return %arg0, %c0_i32 : i32, i32
  }
  func.func @transform_3(%arg0: i32, %arg1: i32) -> (i32, i32) {
    %c0_i32 = arith.constant 0 : i32
    %c0_i32_0 = arith.constant 0 : i32
    return %arg0, %c0_i32 : i32, i32
  }
}

</mosaic_0001>

<llo_original>
// kernel: decoder_forward.1
$region0: #{decoder_forward.1}
  #allocation0 [shape = 'u32[]', space=smem, size = 0x4, offset = 0x4, fixed_abs, tag = 'smem constant byte address 0x4 - core index']
  #allocation1 [shape = 'u32[144,128]{1,0:T(1,128)}', space=vmem, size = 0x12000, scoped, tag = 'internal scratch']
  %s0 = inlined_call_operand.vmem [shape: bf16[16,16384], index: 0, kind: input, shape index: {}]
  %s1 = inlined_call_operand.hbm [shape: bf16[96,16384], index: 1, kind: input, shape index: {}]
  %s2 = inlined_call_operand.vmem [shape: f32[96,1], index: 2, kind: input, shape index: {}]
  %s3 = inlined_call_operand.vmem [shape: f32[96,16], index: 3, kind: output, shape index: {}]
  %s4 = sld [smem:[#allocation0]]
  $region57: #{decoder_forward.1} parent=0
    _
  %s6 = ssub.s32 1, %s4
  %s7 = scalar_select 0, %s6, %s4
  $region1: #{decoder_forward.1} parent=0
    #allocation2 [shape = 'u8[1572864]{0}', space=vmem, size = 0x180000, scoped, tag = 'input window, operand 1']
    #allocation3 [shape = 's32[2]{0}', space=sflag, size = 0x8, scoped, tag = 'scoped memory for decoder_forward.1']
    %8 = vsyncpa [#allocation3], 0
    %s9 = scalar_lea.sflag [#allocation3], 1
    %10 = vsyncpa %s9, 0
    loop: start=0, step=1, limit=6
    $region2: #{decoder_forward.1} parent=1 // loop_pre_header
      _
    $region3: #{decoder_forward.1} parent=1 // loop_header
      %s12 = sphi 0, %s16
      %p13 = scmp.ge.s32.totalorder %s12, 6
      %s19 = sphi 0, %s31
      %s20 = sphi 0, %s27
      %s21 = sphi 0, %s19
      %s22 = sphi 0, %s20
      %s23 = sphi 0, %s21
      %s24 = sphi 0, %s22
      %s32 = sphi 0, %s32
      %s34 = sphi 0, %s32
      %s35 = sphi 0, %s34
      %s49 = sphi 0, %s35
      %s57 = sphi 0, %s59
      %s60 = sphi 0, %s57
      %s61 = sphi 0, %s60
      %s77 = sphi 0, %s61
      %s83 = sphi 0, %s85
      %s86 = sphi 0, %s83
      %s87 = sphi 0, %s86
      %s103 = sphi 0, %s87
      %s109 = sphi 0, %s111
      %s112 = sphi 0, %s109
      %s113 = sphi 0, %s112
      %s129 = sphi 0, %s113
    $region4: #{decoder_forward.1} parent=1 // loop_header_branch
      %15 = sbr.rel (%p13) target = $region8
    $region5: #{decoder_forward.1} parent=1 // loop_body
      %s17 = ssub.s32 %s12, 1
      %s18 = ssub.s32 %s12, 2
      %s25 = sadd.s32 1, %s20
      %p26 = scmp.ge.s32.totalorder %s25, 2
      %s27 = scalar_select %p26, 0, %s25
      %s28 = sadd.s32 1, %s19
      %s29 = scalar_select %p26, %s28, %s19
      %p30 = scmp.ge.s32.totalorder %s29, 2
      %s31 = scalar_select %p30, 0, %s29
      %s33 = sadd.s32 %s32, 1
      %p36 = scmp.eq.s32.totalorder %s12, 3
      %p37 = scmp.ne.s32.totalorder %s32, %s34
      %p38 = scmp.eq.s32.totalorder %s12, 0
      %p39 = por %p37, %p38
      %p40 = scmp.ne.s32.totalorder %s32, %s34
      %p41 = scmp.eq.s32.totalorder %s17, 3
      %p42 = por %p40, %p41
      %p43 = scmp.ne.s32.totalorder %s34, %s35
      %p44 = scmp.eq.s32.totalorder %s17, 0
      %p45 = por %p43, %p44
      %p46 = scmp.ne.s32.totalorder %s34, %s35
      %p47 = scmp.eq.s32.totalorder %s18, 3
      %p48 = por %p46, %p47
      %p50 = scmp.ne.s32.totalorder %s35, %s49
      %p51 = scmp.eq.s32.totalorder %s18, 0
      %p52 = por %p50, %p51
      %s53 = ssub.s32 %s19, %s31
      %s54 = ssub.s32 %s20, %s27
      %s55 = sor.u32 %s53, %s54
      %p56 = scmp.eq.s32.totalorder %s55, 0
      %s58 = sadd.s32 %s57, 1
      %s59 = scalar_select %p56, %s57, %s58
      %p62 = pneg %p56
      %p63 = scmp.eq.s32.totalorder %s12, 3
      %p64 = por %p62, %p63
      %p65 = scmp.ne.s32.totalorder %s57, %s60
      %p66 = scmp.eq.s32.totalorder %s12, 0
      %p67 = por %p65, %p66
      %p68 = scmp.ne.s32.totalorder %s57, %s60
      %p69 = scmp.eq.s32.totalorder %s17, 3
      %p70 = por %p68, %p69
      %p71 = scmp.ne.s32.totalorder %s60, %s61
      %p72 = scmp.eq.s32.totalorder %s17, 0
      %p73 = por %p71, %p72
      %p74 = scmp.ne.s32.totalorder %s60, %s61
      %p75 = scmp.eq.s32.totalorder %s18, 3
      %p76 = por %p74, %p75
      %p78 = scmp.ne.s32.totalorder %s61, %s77
      %p79 = scmp.eq.s32.totalorder %s18, 0
      %p80 = por %p78, %p79
      %s81 = ssub.s32 %s19, %s31
      %p82 = scmp.eq.s32.totalorder %s81, 0
      %s84 = sadd.s32 %s83, 1
      %s85 = scalar_select %p82, %s83, %s84
      %p88 = pneg %p82
      %p89 = scmp.eq.s32.totalorder %s12, 3
      %p90 = por %p88, %p89
      %p91 = scmp.ne.s32.totalorder %s83, %s86
      %p92 = scmp.eq.s32.totalorder %s12, 0
      %p93 = por %p91, %p92
      %p94 = scmp.ne.s32.totalorder %s83, %s86
      %p95 = scmp.eq.s32.totalorder %s17, 3
      %p96 = por %p94, %p95
      %p97 = scmp.ne.s32.totalorder %s86, %s87
      %p98 = scmp.eq.s32.totalorder %s17, 0
      %p99 = por %p97, %p98
      %p100 = scmp.ne.s32.totalorder %s86, %s87
      %p101 = scmp.eq.s32.totalorder %s18, 3
      %p102 = por %p100, %p101
      %p104 = scmp.ne.s32.totalorder %s87, %s103
      %p105 = scmp.eq.s32.totalorder %s18, 0
      %p106 = por %p104, %p105
      %s107 = ssub.s32 %s19, %s31
      %p108 = scmp.eq.s32.totalorder %s107, 0
      %s110 = sadd.s32 %s109, 1
      %s111 = scalar_select %p108, %s109, %s110
      %p114 = pneg %p108
      %p115 = scmp.eq.s32.totalorder %s12, 3
      %p116 = por %p114, %p115
      %p117 = scmp.ne.s32.totalorder %s109, %s112
      %p118 = scmp.eq.s32.totalorder %s12, 0
      %p119 = por %p117, %p118
      %p120 = scmp.ne.s32.totalorder %s109, %s112
      %p121 = scmp.eq.s32.totalorder %s17, 3
      %p122 = por %p120, %p121
      %p123 = scmp.ne.s32.totalorder %s112, %s113
      %p124 = scmp.eq.s32.totalorder %s17, 0
      %p125 = por %p123, %p124
      %p126 = scmp.ne.s32.totalorder %s112, %s113
      %p127 = scmp.eq.s32.totalorder %s18, 3
      %p128 = por %p126, %p127
      %p130 = scmp.ne.s32.totalorder %s113, %s129
      %p131 = scmp.eq.s32.totalorder %s18, 0
      %p132 = por %p130, %p131
      %p133 = scmp.le.s32.totalorder 1, %s12
      %p134 = scmp.lt.s32.totalorder %s12, 5
      %p135 = pnand %p133, %p134
      %p136 = pneg %p135
      // Predicated region
      $region9: #{decoder_forward.1} parent=5 // pred_check
        _
      $region10: #{decoder_forward.1} parent=5 // pred_check_branch
        %138 = sbr.rel (%p135) target = $region12
      $region11: #{decoder_forward.1} parent=5 // pred_region
        %s139 = ssub.s32 %s12, 1
        // Predicated region
        $region13: #{decoder_forward.1} parent=11 // pred_check
          %p140 = pneg %p45
        $region14: #{decoder_forward.1} parent=11 // pred_check_branch
          %142 = sbr.rel (%p140) target = $region16
        $region15: #{decoder_forward.1} parent=11 // pred_region
          _
        $region16: #{decoder_forward.1} parent=11 // pred_fallthru
          _
      $region12: #{decoder_forward.1} parent=5 // pred_fallthru
        _
      %p143 = scmp.lt.s32.totalorder %s12, 4
      // Predicated region
      $region17: #{decoder_forward.1} parent=5 // pred_check
        %p144 = pneg %p143
      $region18: #{decoder_forward.1} parent=5 // pred_check_branch
        %146 = sbr.rel (%p144) target = $region20
      $region19: #{decoder_forward.1} parent=5 // pred_region
        // Predicated region
        $region21: #{decoder_forward.1} parent=19 // pred_check
          %p147 = pneg %p67
        $region22: #{decoder_forward.1} parent=19 // pred_check_branch
          %149 = sbr.rel (%p147) target = $region24
        $region23: #{decoder_forward.1} parent=19 // pred_region
          %s150 = sand.u32 %s57, 1
          %s151 = scalar_lea.sflag [#allocation3], %s150
          %s152 = sand.u32 %s57, 1
          %s153 = smul.addr %s152, 1536
          %s154 = scalar_lea.vmem [#allocation2], %s153
          %s155 = smul.u32 6, %s19
          %s156 = smul.u32 64, %s20
          %s158 = ssub.s32 24576, 24576
          %159 = vsyncadd %s151, %s158
          %s160 = smul.addr %s155, 128
          %s161 = sadd.s32 %s156, %s160
          %s162 = smul.addr %s161, 64
          %s163 = scalar_lea.hbm %s1, %s162
          %s164 = sshll.u32 %s154, 4
          %s165 = int_to_ptr.vmem [resolvable:$true] %s164
          %170 = dma.hbm_to_vmem [thread:$0]  %s163, 24576, %s165, %s151, 8192, 4096, 256
        $region24: #{decoder_forward.1} parent=19 // pred_fallthru
          _
        // Predicated region
        $region25: #{decoder_forward.1} parent=19 // pred_check
          %p171 = pneg %p93
        $region26: #{decoder_forward.1} parent=19 // pred_check_branch
          %173 = sbr.rel (%p171) target = $region28
        $region27: #{decoder_forward.1} parent=19 // pred_region
          %s174 = smul.u32 6, %s19
          %p175 = scmp.lt.s32.totalorder %s174, 11
          %s176 = scalar_select %p175, %s174, 11
          %s177 = smul.addr %s176, 8
          %s178 = scalar_lea.vmem %s2, %s177
          %s179 = smul.u32 6, %s19
        $region28: #{decoder_forward.1} parent=19 // pred_fallthru
          _
      $region20: #{decoder_forward.1} parent=5 // pred_fallthru
        _
      %p180 = scmp.le.s32.totalorder 1, %s12
      %p181 = scmp.lt.s32.totalorder %s12, 5
      %p182 = pnand %p180, %p181
      %p183 = pneg %p182
      // Predicated region
      $region29: #{decoder_forward.1} parent=5 // pred_check
        _
      $region30: #{decoder_forward.1} parent=5 // pred_check_branch
        %185 = sbr.rel (%p182) target = $region32
      $region31: #{decoder_forward.1} parent=5 // pred_region
        %s186 = ssub.s32 %s12, 1
        %s187 = sand.u32 %s60, 1
        %s188 = scalar_lea.sflag [#allocation3], %s187
        %s189 = sand.u32 %s60, 1
        %s190 = smul.addr %s189, 1536
        %s191 = scalar_lea.vmem [#allocation2], %s190
        // Predicated region
        $region33: #{decoder_forward.1} parent=31 // pred_check
          %p192 = pneg %p73
        $region34: #{decoder_forward.1} parent=31 // pred_check_branch
          %194 = sbr.rel (%p192) target = $region36
        $region35: #{decoder_forward.1} parent=31 // pred_region
          %195 = dma.done %s188, 24576
        $region36: #{decoder_forward.1} parent=31 // pred_fallthru
          _
        %p196 = pneg %p45
        %p197 = pneg %p42
        %s198 = sand.u32 %s60, 1
        %s199 = scalar_lea.sflag [#allocation3], %s198
        %s200 = sand.u32 %s60, 1
        %s201 = smul.addr %s200, 1536
        %s202 = scalar_lea.vmem [#allocation2], %s201
        %p203 = pneg %p73
        %p204 = pneg %p70
        %s205 = smul.u32 6, %s21
        %p206 = scmp.lt.s32.totalorder %s205, 11
        %s207 = scalar_select %p206, %s205, 11
        %s208 = smul.addr %s207, 8
        %s209 = scalar_lea.vmem %s2, %s208
        %p210 = pneg %p99
        %p211 = pneg %p96
        %p212 = pneg %p125
        %p213 = pneg %p122
        %s214 = smul.u32 6, %s21
        %p215 = scmp.lt.s32.totalorder %s214, 11
        %s216 = scalar_select %p215, %s214, 11
        %s217 = smul.addr %s216, 8
        %s218 = scalar_lea.vmem %s3, %s217
        %s219 = smul.u32 6, %s21
        %s220 = smul.u32 64, %s22
        %s221 = smul.u32 6, %s21
        %p222 = scmp.lt.s32.totalorder %s221, 11
        %s223 = scalar_select %p222, %s221, 11
        %s224 = smul.addr %s223, 8
        %s225 = scalar_lea.vmem %s2, %s224
        %s226 = smul.u32 6, %s21
        %s227 = smul.u32 6, %s21
        %p228 = scmp.lt.s32.totalorder %s227, 11
        %s229 = scalar_select %p228, %s227, 11
        %s230 = smul.addr %s229, 8
        %s231 = scalar_lea.vmem %s3, %s230
        %s232 = smul.u32 6, %s21
        %p234 = scmp.eq.s32.totalorder %s22, 0
        // Predicated region
        $region37: #{decoder_forward.1} parent=31 // pred_check
          %p235 = pneg %p234
        $region38: #{decoder_forward.1} parent=31 // pred_check_branch
          %237 = sbr.rel (%p235) target = $region40
        $region39: #{decoder_forward.1} parent=31 // pred_region
          %vm238 = vcmask 130048
          %239 = vst.msk [vmem:[%s231] sm:$0xff] %vm238, 0.0
          %240 = vst.msk [vmem:[%s231 + $0x8] sm:$0xff] %vm238, 0.0
          %241 = vst.msk [vmem:[%s231 + $0x10] sm:$0xff] %vm238, 0.0
          %242 = vst.msk [vmem:[%s231 + $0x18] sm:$0xff] %vm238, 0.0
          %243 = vst.msk [vmem:[%s231 + $0x20] sm:$0xff] %vm238, 0.0
          %244 = vst.msk [vmem:[%s231 + $0x28] sm:$0xff] %vm238, 0.0
        $region40: #{decoder_forward.1} parent=31 // pred_fallthru
          _
        %s245 = smul.u32 %s22, 8192
        %s246 = sshra.s32 %s245, 7
        %s247 = sand.u32 %s245, 127
        %s248 = smul.addr %s246, 4
        %s249 = scalar_lea.vmem %s0, %s248
        %v250 = vld [vmem:[%s249] sm:$0xff]
        %v251 = vld [vmem:[%s249 + $0x8] sm:$0xff]
        %v252 = vld [vmem:[%s249 + $0x10] sm:$0xff]
        %v253 = vld [vmem:[%s249 + $0x18] sm:$0xff]
        %v254 = vld [vmem:[%s249 + $0x20] sm:$0xff]
        %v255 = vld [vmem:[%s249 + $0x28] sm:$0xff]
        %v256 = vld [vmem:[%s249 + $0x30] sm:$0xff]
        %v257 = vld [vmem:[%s249 + $0x38] sm:$0xff]
        %v258 = vld [vmem:[%s249 + $0x40] sm:$0xff]
        %v259 = vld [vmem:[%s249 + $0x48] sm:$0xff]
        %v260 = vld [vmem:[%s249 + $0x50] sm:$0xff]
        %v261 = vld [vmem:[%s249 + $0x58] sm:$0xff]
        %v262 = vld [vmem:[%s249 + $0x60] sm:$0xff]
        %v263 = vld [vmem:[%s249 + $0x68] sm:$0xff]
        %v264 = vld [vmem:[%s249 + $0x70] sm:$0xff]
        %v265 = vld [vmem:[%s249 + $0x78] sm:$0xff]
        %v266 = vld [vmem:[%s249 + $0x80] sm:$0xff]
        %v267 = vld [vmem:[%s249 + $0x88] sm:$0xff]
        %v268 = vld [vmem:[%s249 + $0x90] sm:$0xff]
        %v269 = vld [vmem:[%s249 + $0x98] sm:$0xff]
        %v270 = vld [vmem:[%s249 + $0xa0] sm:$0xff]
        %v271 = vld [vmem:[%s249 + $0xa8] sm:$0xff]
        %v272 = vld [vmem:[%s249 + $0xb0] sm:$0xff]
        %v273 = vld [vmem:[%s249 + $0xb8] sm:$0xff]
        %v274 = vld [vmem:[%s249 + $0xc0] sm:$0xff]
        %v275 = vld [vmem:[%s249 + $0xc8] sm:$0xff]
        %v276 = vld [vmem:[%s249 + $0xd0] sm:$0xff]
        %v277 = vld [vmem:[%s249 + $0xd8] sm:$0xff]
        %v278 = vld [vmem:[%s249 + $0xe0] sm:$0xff]
        %v279 = vld [vmem:[%s249 + $0xe8] sm:$0xff]
        %v280 = vld [vmem:[%s249 + $0xf0] sm:$0xff]
        %v281 = vld [vmem:[%s249 + $0xf8] sm:$0xff]
        %v282 = vld [vmem:[%s249 + $0x200] sm:$0xff]
        %v283 = vld [vmem:[%s249 + $0x208] sm:$0xff]
        %v284 = vld [vmem:[%s249 + $0x210] sm:$0xff]
        %v285 = vld [vmem:[%s249 + $0x218] sm:$0xff]
        %v286 = vld [vmem:[%s249 + $0x220] sm:$0xff]
        %v287 = vld [vmem:[%s249 + $0x228] sm:$0xff]
        %v288 = vld [vmem:[%s249 + $0x230] sm:$0xff]
        %v289 = vld [vmem:[%s249 + $0x238] sm:$0xff]
        %v290 = vld [vmem:[%s249 + $0x240] sm:$0xff]
        %v291 = vld [vmem:[%s249 + $0x248] sm:$0xff]
        %v292 = vld [vmem:[%s249 + $0x250] sm:$0xff]
        %v293 = vld [vmem:[%s249 + $0x258] sm:$0xff]
        %v294 = vld [vmem:[%s249 + $0x260] sm:$0xff]
        %v295 = vld [vmem:[%s249 + $0x268] sm:$0xff]
        %v296 = vld [vmem:[%s249 + $0x270] sm:$0xff]
        %v297 = vld [vmem:[%s249 + $0x278] sm:$0xff]
        %v298 = vld [vmem:[%s249 + $0x280] sm:$0xff]
        %v299 = vld [vmem:[%s249 + $0x288] sm:$0xff]
        %v300 = vld [vmem:[%s249 + $0x290] sm:$0xff]
        %v301 = vld [vmem:[%s249 + $0x298] sm:$0xff]
        %v302 = vld [vmem:[%s249 + $0x2a0] sm:$0xff]
        %v303 = vld [vmem:[%s249 + $0x2a8] sm:$0xff]
        %v304 = vld [vmem:[%s249 + $0x2b0] sm:$0xff]
        %v305 = vld [vmem:[%s249 + $0x2b8] sm:$0xff]
        %v306 = vld [vmem:[%s249 + $0x2c0] sm:$0xff]
        %v307 = vld [vmem:[%s249 + $0x2c8] sm:$0xff]
        %v308 = vld [vmem:[%s249 + $0x2d0] sm:$0xff]
        %v309 = vld [vmem:[%s249 + $0x2d8] sm:$0xff]
        %v310 = vld [vmem:[%s249 + $0x2e0] sm:$0xff]
        %v311 = vld [vmem:[%s249 + $0x2e8] sm:$0xff]
        %v312 = vld [vmem:[%s249 + $0x2f0] sm:$0xff]
        %v313 = vld [vmem:[%s249 + $0x2f8] sm:$0xff]
        %v314 = vld [vmem:[%s231] sm:$0xff]
        %v315 = vld [vmem:[%s231 + $0x8] sm:$0xff]
        %v316 = vld [vmem:[%s231 + $0x10] sm:$0xff]
        %v317 = vld [vmem:[%s231 + $0x18] sm:$0xff]
        %v318 = vld [vmem:[%s231 + $0x20] sm:$0xff]
        %v319 = vld [vmem:[%s231 + $0x28] sm:$0xff]
        %v320 = vld [vmem:[%s191] sm:$0xff]
        %v321 = vld [vmem:[%s191 + $0x8] sm:$0xff]
        %v322 = vld [vmem:[%s191 + $0x10] sm:$0xff]
        %v323 = vld [vmem:[%s191 + $0x18] sm:$0xff]
        %v324 = vld [vmem:[%s191 + $0x20] sm:$0xff]
        %v325 = vld [vmem:[%s191 + $0x28] sm:$0xff]
        %v326 = vld [vmem:[%s191 + $0x30] sm:$0xff]
        %v327 = vld [vmem:[%s191 + $0x38] sm:$0xff]
        %v328 = vld [vmem:[%s191 + $0x40] sm:$0xff]
        %v329 = vld [vmem:[%s191 + $0x48] sm:$0xff]
        %v330 = vld [vmem:[%s191 + $0x50] sm:$0xff]
        %v331 = vld [vmem:[%s191 + $0x58] sm:$0xff]
        %v332 = vld [vmem:[%s191 + $0x60] sm:$0xff]
        %v333 = vld [vmem:[%s191 + $0x68] sm:$0xff]
        %v334 = vld [vmem:[%s191 + $0x70] sm:$0xff]
        %v335 = vld [vmem:[%s191 + $0x78] sm:$0xff]
        %v336 = vld [vmem:[%s191 + $0x80] sm:$0xff]
        %v337 = vld [vmem:[%s191 + $0x88] sm:$0xff]
        %v338 = vld [vmem:[%s191 + $0x90] sm:$0xff]
        %v339 = vld [vmem:[%s191 + $0x98] sm:$0xff]
        %v340 = vld [vmem:[%s191 + $0xa0] sm:$0xff]
        %v341 = vld [vmem:[%s191 + $0xa8] sm:$0xff]
        %v342 = vld [vmem:[%s191 + $0xb0] sm:$0xff]
        %v343 = vld [vmem:[%s191 + $0xb8] sm:$0xff]
        %v344 = vld [vmem:[%s191 + $0xc0] sm:$0xff]
        %v345 = vld [vmem:[%s191 + $0xc8] sm:$0xff]
        %v346 = vld [vmem:[%s191 + $0xd0] sm:$0xff]
        %v347 = vld [vmem:[%s191 + $0xd8] sm:$0xff]
        %v348 = vld [vmem:[%s191 + $0xe0] sm:$0xff]
        %v349 = vld [vmem:[%s191 + $0xe8] sm:$0xff]
        %v350 = vld [vmem:[%s191 + $0xf0] sm:$0xff]
        %v351 = vld [vmem:[%s191 + $0xf8] sm:$0xff]
        %v352 = vld [vmem:[%s191 + $0x100] sm:$0xff]
        %v353 = vld [vmem:[%s191 + $0x108] sm:$0xff]
        %v354 = vld [vmem:[%s191 + $0x110] sm:$0xff]
        %v355 = vld [vmem:[%s191 + $0x118] sm:$0xff]
        %v356 = vld [vmem:[%s191 + $0x120] sm:$0xff]
        %v357 = vld [vmem:[%s191 + $0x128] sm:$0xff]
        %v358 = vld [vmem:[%s191 + $0x130] sm:$0xff]
        %v359 = vld [vmem:[%s191 + $0x138] sm:$0xff]
        %v360 = vld [vmem:[%s191 + $0x140] sm:$0xff]
        %v361 = vld [vmem:[%s191 + $0x148] sm:$0xff]
        %v362 = vld [vmem:[%s191 + $0x150] sm:$0xff]
        %v363 = vld [vmem:[%s191 + $0x158] sm:$0xff]
        %v364 = vld [vmem:[%s191 + $0x160] sm:$0xff]
        %v365 = vld [vmem:[%s191 + $0x168] sm:$0xff]
        %v366 = vld [vmem:[%s191 + $0x170] sm:$0xff]
        %v367 = vld [vmem:[%s191 + $0x178] sm:$0xff]
        %v368 = vld [vmem:[%s191 + $0x180] sm:$0xff]
        %v369 = vld [vmem:[%s191 + $0x188] sm:$0xff]
        %v370 = vld [vmem:[%s191 + $0x190] sm:$0xff]
        %v371 = vld [vmem:[%s191 + $0x198] sm:$0xff]
        %v372 = vld [vmem:[%s191 + $0x1a0] sm:$0xff]
        %v373 = vld [vmem:[%s191 + $0x1a8] sm:$0xff]
        %v374 = vld [vmem:[%s191 + $0x1b0] sm:$0xff]
        %v375 = vld [vmem:[%s191 + $0x1b8] sm:$0xff]
        %v376 = vld [vmem:[%s191 + $0x1c0] sm:$0xff]
        %v377 = vld [vmem:[%s191 + $0x1c8] sm:$0xff]
        %v378 = vld [vmem:[%s191 + $0x1d0] sm:$0xff]
        %v379 = vld [vmem:[%s191 + $0x1d8] sm:$0xff]
        %v380 = vld [vmem:[%s191 + $0x1e0] sm:$0xff]
        %v381 = vld [vmem:[%s191 + $0x1e8] sm:$0xff]
        %v382 = vld [vmem:[%s191 + $0x1f0] sm:$0xff]
        %v383 = vld [vmem:[%s191 + $0x1f8] sm:$0xff]
        %v384 = vld [vmem:[%s191 + $0x200] sm:$0xff]
        %v385 = vld [vmem:[%s191 + $0x208] sm:$0xff]
        %v386 = vld [vmem:[%s191 + $0x210] sm:$0xff]
        %v387 = vld [vmem:[%s191 + $0x218] sm:$0xff]
        %v388 = vld [vmem:[%s191 + $0x220] sm:$0xff]
        %v389 = vld [vmem:[%s191 + $0x228] sm:$0xff]
        %v390 = vld [vmem:[%s191 + $0x230] sm:$0xff]
        %v391 = vld [vmem:[%s191 + $0x238] sm:$0xff]
        %v392 = vld [vmem:[%s191 + $0x240] sm:$0xff]
        %v393 = vld [vmem:[%s191 + $0x248] sm:$0xff]
        %v394 = vld [vmem:[%s191 + $0x250] sm:$0xff]
        %v395 = vld [vmem:[%s191 + $0x258] sm:$0xff]
        %v396 = vld [vmem:[%s191 + $0x260] sm:$0xff]
        %v397 = vld [vmem:[%s191 + $0x268] sm:$0xff]
        %v398 = vld [vmem:[%s191 + $0x270] sm:$0xff]
        %v399 = vld [vmem:[%s191 + $0x278] sm:$0xff]
        %v400 = vld [vmem:[%s191 + $0x280] sm:$0xff]
        %v401 = vld [vmem:[%s191 + $0x288] sm:$0xff]
        %v402 = vld [vmem:[%s191 + $0x290] sm:$0xff]
        %v403 = vld [vmem:[%s191 + $0x298] sm:$0xff]
        %v404 = vld [vmem:[%s191 + $0x2a0] sm:$0xff]
        %v405 = vld [vmem:[%s191 + $0x2a8] sm:$0xff]
        %v406 = vld [vmem:[%s191 + $0x2b0] sm:$0xff]
        %v407 = vld [vmem:[%s191 + $0x2b8] sm:$0xff]
        %v408 = vld [vmem:[%s191 + $0x2c0] sm:$0xff]
        %v409 = vld [vmem:[%s191 + $0x2c8] sm:$0xff]
        %v410 = vld [vmem:[%s191 + $0x2d0] sm:$0xff]
        %v411 = vld [vmem:[%s191 + $0x2d8] sm:$0xff]
        %v412 = vld [vmem:[%s191 + $0x2e0] sm:$0xff]
        %v413 = vld [vmem:[%s191 + $0x2e8] sm:$0xff]
        %v414 = vld [vmem:[%s191 + $0x2f0] sm:$0xff]
        %v415 = vld [vmem:[%s191 + $0x2f8] sm:$0xff]
        %v416 = vld [vmem:[%s191 + $0x300] sm:$0xff]
        %v417 = vld [vmem:[%s191 + $0x308] sm:$0xff]
        %v418 = vld [vmem:[%s191 + $0x310] sm:$0xff]
        %v419 = vld [vmem:[%s191 + $0x318] sm:$0xff]
        %v420 = vld [vmem:[%s191 + $0x320] sm:$0xff]
        %v421 = vld [vmem:[%s191 + $0x328] sm:$0xff]
        %v422 = vld [vmem:[%s191 + $0x330] sm:$0xff]
        %v423 = vld [vmem:[%s191 + $0x338] sm:$0xff]
        %v424 = vld [vmem:[%s191 + $0x340] sm:$0xff]
        %v425 = vld [vmem:[%s191 + $0x348] sm:$0xff]
        %v426 = vld [vmem:[%s191 + $0x350] sm:$0xff]
        %v427 = vld [vmem:[%s191 + $0x358] sm:$0xff]
        %v428 = vld [vmem:[%s191 + $0x360] sm:$0xff]
        %v429 = vld [vmem:[%s191 + $0x368] sm:$0xff]
        %v430 = vld [vmem:[%s191 + $0x370] sm:$0xff]
        %v431 = vld [vmem:[%s191 + $0x378] sm:$0xff]
        %v432 = vld [vmem:[%s191 + $0x380] sm:$0xff]
        %v433 = vld [vmem:[%s191 + $0x388] sm:$0xff]
        %v434 = vld [vmem:[%s191 + $0x390] sm:$0xff]
        %v435 = vld [vmem:[%s191 + $0x398] sm:$0xff]
        %v436 = vld [vmem:[%s191 + $0x3a0] sm:$0xff]
        %v437 = vld [vmem:[%s191 + $0x3a8] sm:$0xff]
        %v438 = vld [vmem:[%s191 + $0x3b0] sm:$0xff]
        %v439 = vld [vmem:[%s191 + $0x3b8] sm:$0xff]
        %v440 = vld [vmem:[%s191 + $0x3c0] sm:$0xff]
        %v441 = vld [vmem:[%s191 + $0x3c8] sm:$0xff]
        %v442 = vld [vmem:[%s191 + $0x3d0] sm:$0xff]
        %v443 = vld [vmem:[%s191 + $0x3d8] sm:$0xff]
        %v444 = vld [vmem:[%s191 + $0x3e0] sm:$0xff]
        %v445 = vld [vmem:[%s191 + $0x3e8] sm:$0xff]
        %v446 = vld [vmem:[%s191 + $0x3f0] sm:$0xff]
        %v447 = vld [vmem:[%s191 + $0x3f8] sm:$0xff]
        %v448 = vld [vmem:[%s191 + $0x400] sm:$0xff]
        %v449 = vld [vmem:[%s191 + $0x408] sm:$0xff]
        %v450 = vld [vmem:[%s191 + $0x410] sm:$0xff]
        %v451 = vld [vmem:[%s191 + $0x418] sm:$0xff]
        %v452 = vld [vmem:[%s191 + $0x420] sm:$0xff]
        %v453 = vld [vmem:[%s191 + $0x428] sm:$0xff]
        %v454 = vld [vmem:[%s191 + $0x430] sm:$0xff]
        %v455 = vld [vmem:[%s191 + $0x438] sm:$0xff]
        %v456 = vld [vmem:[%s191 + $0x440] sm:$0xff]
        %v457 = vld [vmem:[%s191 + $0x448] sm:$0xff]
        %v458 = vld [vmem:[%s191 + $0x450] sm:$0xff]
        %v459 = vld [vmem:[%s191 + $0x458] sm:$0xff]
        %v460 = vld [vmem:[%s191 + $0x460] sm:$0xff]
        %v461 = vld [vmem:[%s191 + $0x468] sm:$0xff]
        %v462 = vld [vmem:[%s191 + $0x470] sm:$0xff]
        %v463 = vld [vmem:[%s191 + $0x478] sm:$0xff]
        %v464 = vld [vmem:[%s191 + $0x480] sm:$0xff]
        %v465 = vld [vmem:[%s191 + $0x488] sm:$0xff]
        %v466 = vld [vmem:[%s191 + $0x490] sm:$0xff]
        %v467 = vld [vmem:[%s191 + $0x498] sm:$0xff]
        %v468 = vld [vmem:[%s191 + $0x4a0] sm:$0xff]
        %v469 = vld [vmem:[%s191 + $0x4a8] sm:$0xff]
        %v470 = vld [vmem:[%s191 + $0x4b0] sm:$0xff]
        %v471 = vld [vmem:[%s191 + $0x4b8] sm:$0xff]
        %v472 = vld [vmem:[%s191 + $0x4c0] sm:$0xff]
        %v473 = vld [vmem:[%s191 + $0x4c8] sm:$0xff]
        %v474 = vld [vmem:[%s191 + $0x4d0] sm:$0xff]
        %v475 = vld [vmem:[%s191 + $0x4d8] sm:$0xff]
        %v476 = vld [vmem:[%s191 + $0x4e0] sm:$0xff]
        %v477 = vld [vmem:[%s191 + $0x4e8] sm:$0xff]
        %v478 = vld [vmem:[%s191 + $0x4f0] sm:$0xff]
        %v479 = vld [vmem:[%s191 + $0x4f8] sm:$0xff]
        %v480 = vld [vmem:[%s191 + $0x500] sm:$0xff]
        %v481 = vld [vmem:[%s191 + $0x508] sm:$0xff]
        %v482 = vld [vmem:[%s191 + $0x510] sm:$0xff]
        %v483 = vld [vmem:[%s191 + $0x518] sm:$0xff]
        %v484 = vld [vmem:[%s191 + $0x520] sm:$0xff]
        %v485 = vld [vmem:[%s191 + $0x528] sm:$0xff]
        %v486 = vld [vmem:[%s191 + $0x530] sm:$0xff]
        %v487 = vld [vmem:[%s191 + $0x538] sm:$0xff]
        %v488 = vld [vmem:[%s191 + $0x540] sm:$0xff]
        %v489 = vld [vmem:[%s191 + $0x548] sm:$0xff]
        %v490 = vld [vmem:[%s191 + $0x550] sm:$0xff]
        %v491 = vld [vmem:[%s191 + $0x558] sm:$0xff]
        %v492 = vld [vmem:[%s191 + $0x560] sm:$0xff]
        %v493 = vld [vmem:[%s191 + $0x568] sm:$0xff]
        %v494 = vld [vmem:[%s191 + $0x570] sm:$0xff]
        %v495 = vld [vmem:[%s191 + $0x578] sm:$0xff]
        %v496 = vld [vmem:[%s191 + $0x580] sm:$0xff]
        %v497 = vld [vmem:[%s191 + $0x588] sm:$0xff]
        %v498 = vld [vmem:[%s191 + $0x590] sm:$0xff]
        %v499 = vld [vmem:[%s191 + $0x598] sm:$0xff]
        %v500 = vld [vmem:[%s191 + $0x5a0] sm:$0xff]
        %v501 = vld [vmem:[%s191 + $0x5a8] sm:$0xff]
        %v502 = vld [vmem:[%s191 + $0x5b0] sm:$0xff]
        %v503 = vld [vmem:[%s191 + $0x5b8] sm:$0xff]
        %v504 = vld [vmem:[%s191 + $0x5c0] sm:$0xff]
        %v505 = vld [vmem:[%s191 + $0x5c8] sm:$0xff]
        %v506 = vld [vmem:[%s191 + $0x5d0] sm:$0xff]
        %v507 = vld [vmem:[%s191 + $0x5d8] sm:$0xff]
        %v508 = vld [vmem:[%s191 + $0x5e0] sm:$0xff]
        %v509 = vld [vmem:[%s191 + $0x5e8] sm:$0xff]
        %v510 = vld [vmem:[%s191 + $0x5f0] sm:$0xff]
        %v511 = vld [vmem:[%s191 + $0x5f8] sm:$0xff]
        %v704 = vunpack.c.l.b16 %v320
        %v705 = vunpack.c.h.b16 %v320
        %v706 = vunpack.c.l.b16 %v321
        %v707 = vunpack.c.h.b16 %v321
        %v708 = vunpack.c.l.b16 %v322
        %v709 = vunpack.c.h.b16 %v322
        %v710 = vunpack.c.l.b16 %v323
        %v711 = vunpack.c.h.b16 %v323
        %v712 = vunpack.c.l.b16 %v324
        %v713 = vunpack.c.h.b16 %v324
        %v714 = vunpack.c.l.b16 %v325
        %v715 = vunpack.c.h.b16 %v325
        %v716 = vunpack.c.l.b16 %v326
        %v717 = vunpack.c.h.b16 %v326
        %v718 = vunpack.c.l.b16 %v327
        %v719 = vunpack.c.h.b16 %v327
        %v720 = vunpack.c.l.b16 %v328
        %v721 = vunpack.c.h.b16 %v328
        %v722 = vunpack.c.l.b16 %v329
        %v723 = vunpack.c.h.b16 %v329
        %v724 = vunpack.c.l.b16 %v330
        %v725 = vunpack.c.h.b16 %v330
        %v726 = vunpack.c.l.b16 %v331
        %v727 = vunpack.c.h.b16 %v331
        %v728 = vunpack.c.l.b16 %v332
        %v729 = vunpack.c.h.b16 %v332
        %v730 = vunpack.c.l.b16 %v333
        %v731 = vunpack.c.h.b16 %v333
        %v732 = vunpack.c.l.b16 %v334
        %v733 = vunpack.c.h.b16 %v334
        %v734 = vunpack.c.l.b16 %v335
        %v735 = vunpack.c.h.b16 %v335
        %v736 = vunpack.c.l.b16 %v336
        %v737 = vunpack.c.h.b16 %v336
        %v738 = vunpack.c.l.b16 %v337
        %v739 = vunpack.c.h.b16 %v337
        %v740 = vunpack.c.l.b16 %v338
        %v741 = vunpack.c.h.b16 %v338
        %v742 = vunpack.c.l.b16 %v339
        %v743 = vunpack.c.h.b16 %v339
        %v744 = vunpack.c.l.b16 %v340
        %v745 = vunpack.c.h.b16 %v340
        %v746 = vunpack.c.l.b16 %v341
        %v747 = vunpack.c.h.b16 %v341
        %v748 = vunpack.c.l.b16 %v342
        %v749 = vunpack.c.h.b16 %v342
        %v750 = vunpack.c.l.b16 %v343
        %v751 = vunpack.c.h.b16 %v343
        %v752 = vunpack.c.l.b16 %v344
        %v753 = vunpack.c.h.b16 %v344
        %v754 = vunpack.c.l.b16 %v345
        %v755 = vunpack.c.h.b16 %v345
        %v756 = vunpack.c.l.b16 %v346
        %v757 = vunpack.c.h.b16 %v346
        %v758 = vunpack.c.l.b16 %v347
        %v759 = vunpack.c.h.b16 %v347
        %v760 = vunpack.c.l.b16 %v348
        %v761 = vunpack.c.h.b16 %v348
        %v762 = vunpack.c.l.b16 %v349
        %v763 = vunpack.c.h.b16 %v349
        %v764 = vunpack.c.l.b16 %v350
        %v765 = vunpack.c.h.b16 %v350
        %v766 = vunpack.c.l.b16 %v351
        %v767 = vunpack.c.h.b16 %v351
        %v768 = vunpack.c.l.b16 %v352
        %v769 = vunpack.c.h.b16 %v352
        %v770 = vunpack.c.l.b16 %v353
        %v771 = vunpack.c.h.b16 %v353
        %v772 = vunpack.c.l.b16 %v354
        %v773 = vunpack.c.h.b16 %v354
        %v774 = vunpack.c.l.b16 %v355
        %v775 = vunpack.c.h.b16 %v355
        %v776 = vunpack.c.l.b16 %v356
        %v777 = vunpack.c.h.b16 %v356
        %v778 = vunpack.c.l.b16 %v357
        %v779 = vunpack.c.h.b16 %v357
        %v780 = vunpack.c.l.b16 %v358
        %v781 = vunpack.c.h.b16 %v358
        %v782 = vunpack.c.l.b16 %v359
        %v783 = vunpack.c.h.b16 %v359
        %v784 = vunpack.c.l.b16 %v360
        %v785 = vunpack.c.h.b16 %v360
        %v786 = vunpack.c.l.b16 %v361
        %v787 = vunpack.c.h.b16 %v361
        %v788 = vunpack.c.l.b16 %v362
        %v789 = vunpack.c.h.b16 %v362
        %v790 = vunpack.c.l.b16 %v363
        %v791 = vunpack.c.h.b16 %v363
        %v792 = vunpack.c.l.b16 %v364
        %v793 = vunpack.c.h.b16 %v364
        %v794 = vunpack.c.l.b16 %v365
        %v795 = vunpack.c.h.b16 %v365
        %v796 = vunpack.c.l.b16 %v366
        %v797 = vunpack.c.h.b16 %v366
        %v798 = vunpack.c.l.b16 %v367
        %v799 = vunpack.c.h.b16 %v367
        %v800 = vunpack.c.l.b16 %v368
        %v801 = vunpack.c.h.b16 %v368
        %v802 = vunpack.c.l.b16 %v369
        %v803 = vunpack.c.h.b16 %v369
        %v804 = vunpack.c.l.b16 %v370
        %v805 = vunpack.c.h.b16 %v370
        %v806 = vunpack.c.l.b16 %v371
        %v807 = vunpack.c.h.b16 %v371
        %v808 = vunpack.c.l.b16 %v372
        %v809 = vunpack.c.h.b16 %v372
        %v810 = vunpack.c.l.b16 %v373
        %v811 = vunpack.c.h.b16 %v373
        %v812 = vunpack.c.l.b16 %v374
        %v813 = vunpack.c.h.b16 %v374
        %v814 = vunpack.c.l.b16 %v375
        %v815 = vunpack.c.h.b16 %v375
        %v816 = vunpack.c.l.b16 %v376
        %v817 = vunpack.c.h.b16 %v376
        %v818 = vunpack.c.l.b16 %v377
        %v819 = vunpack.c.h.b16 %v377
        %v820 = vunpack.c.l.b16 %v378
        %v821 = vunpack.c.h.b16 %v378
        %v822 = vunpack.c.l.b16 %v379
        %v823 = vunpack.c.h.b16 %v379
        %v824 = vunpack.c.l.b16 %v380
        %v825 = vunpack.c.h.b16 %v380
        %v826 = vunpack.c.l.b16 %v381
        %v827 = vunpack.c.h.b16 %v381
        %v828 = vunpack.c.l.b16 %v382
        %v829 = vunpack.c.h.b16 %v382
        %v830 = vunpack.c.l.b16 %v383
        %v831 = vunpack.c.h.b16 %v383
        %v832 = vunpack.c.l.b16 %v384
        %v833 = vunpack.c.h.b16 %v384
        %v834 = vunpack.c.l.b16 %v385
        %v835 = vunpack.c.h.b16 %v385
        %v836 = vunpack.c.l.b16 %v386
        %v837 = vunpack.c.h.b16 %v386
        %v838 = vunpack.c.l.b16 %v387
        %v839 = vunpack.c.h.b16 %v387
        %v840 = vunpack.c.l.b16 %v388
        %v841 = vunpack.c.h.b16 %v388
        %v842 = vunpack.c.l.b16 %v389
        %v843 = vunpack.c.h.b16 %v389
        %v844 = vunpack.c.l.b16 %v390
        %v845 = vunpack.c.h.b16 %v390
        %v846 = vunpack.c.l.b16 %v391
        %v847 = vunpack.c.h.b16 %v391
        %v848 = vunpack.c.l.b16 %v392
        %v849 = vunpack.c.h.b16 %v392
        %v850 = vunpack.c.l.b16 %v393
        %v851 = vunpack.c.h.b16 %v393
        %v852 = vunpack.c.l.b16 %v394
        %v853 = vunpack.c.h.b16 %v394
        %v854 = vunpack.c.l.b16 %v395
        %v855 = vunpack.c.h.b16 %v395
        %v856 = vunpack.c.l.b16 %v396
        %v857 = vunpack.c.h.b16 %v396
        %v858 = vunpack.c.l.b16 %v397
        %v859 = vunpack.c.h.b16 %v397
        %v860 = vunpack.c.l.b16 %v398
        %v861 = vunpack.c.h.b16 %v398
        %v862 = vunpack.c.l.b16 %v399
        %v863 = vunpack.c.h.b16 %v399
        %v864 = vunpack.c.l.b16 %v400
        %v865 = vunpack.c.h.b16 %v400
        %v866 = vunpack.c.l.b16 %v401
        %v867 = vunpack.c.h.b16 %v401
        %v868 = vunpack.c.l.b16 %v402
        %v869 = vunpack.c.h.b16 %v402
        %v870 = vunpack.c.l.b16 %v403
        %v871 = vunpack.c.h.b16 %v403
        %v872 = vunpack.c.l.b16 %v404
        %v873 = vunpack.c.h.b16 %v404
        %v874 = vunpack.c.l.b16 %v405
        %v875 = vunpack.c.h.b16 %v405
        %v876 = vunpack.c.l.b16 %v406
        %v877 = vunpack.c.h.b16 %v406
        %v878 = vunpack.c.l.b16 %v407
        %v879 = vunpack.c.h.b16 %v407
        %v880 = vunpack.c.l.b16 %v408
        %v881 = vunpack.c.h.b16 %v408
        %v882 = vunpack.c.l.b16 %v409
        %v883 = vunpack.c.h.b16 %v409
        %v884 = vunpack.c.l.b16 %v410
        %v885 = vunpack.c.h.b16 %v410
        %v886 = vunpack.c.l.b16 %v411
        %v887 = vunpack.c.h.b16 %v411
        %v888 = vunpack.c.l.b16 %v412
        %v889 = vunpack.c.h.b16 %v412
        %v890 = vunpack.c.l.b16 %v413
        %v891 = vunpack.c.h.b16 %v413
        %v892 = vunpack.c.l.b16 %v414
        %v893 = vunpack.c.h.b16 %v414
        %v894 = vunpack.c.l.b16 %v415
        %v895 = vunpack.c.h.b16 %v415
        %v896 = vunpack.c.l.b16 %v416
        %v897 = vunpack.c.h.b16 %v416
        %v898 = vunpack.c.l.b16 %v417
        %v899 = vunpack.c.h.b16 %v417
        %v900 = vunpack.c.l.b16 %v418
        %v901 = vunpack.c.h.b16 %v418
        %v902 = vunpack.c.l.b16 %v419
        %v903 = vunpack.c.h.b16 %v419
        %v904 = vunpack.c.l.b16 %v420
        %v905 = vunpack.c.h.b16 %v420
        %v906 = vunpack.c.l.b16 %v421
        %v907 = vunpack.c.h.b16 %v421
        %v908 = vunpack.c.l.b16 %v422
        %v909 = vunpack.c.h.b16 %v422
        %v910 = vunpack.c.l.b16 %v423
        %v911 = vunpack.c.h.b16 %v423
        %v912 = vunpack.c.l.b16 %v424
        %v913 = vunpack.c.h.b16 %v424
        %v914 = vunpack.c.l.b16 %v425
        %v915 = vunpack.c.h.b16 %v425
        %v916 = vunpack.c.l.b16 %v426
        %v917 = vunpack.c.h.b16 %v426
        %v918 = vunpack.c.l.b16 %v427
        %v919 = vunpack.c.h.b16 %v427
        %v920 = vunpack.c.l.b16 %v428
        %v921 = vunpack.c.h.b16 %v428
        %v922 = vunpack.c.l.b16 %v429
        %v923 = vunpack.c.h.b16 %v429
        %v924 = vunpack.c.l.b16 %v430
        %v925 = vunpack.c.h.b16 %v430
        %v926 = vunpack.c.l.b16 %v431
        %v927 = vunpack.c.h.b16 %v431
        %v928 = vunpack.c.l.b16 %v432
        %v929 = vunpack.c.h.b16 %v432
        %v930 = vunpack.c.l.b16 %v433
        %v931 = vunpack.c.h.b16 %v433
        %v932 = vunpack.c.l.b16 %v434
        %v933 = vunpack.c.h.b16 %v434
        %v934 = vunpack.c.l.b16 %v435
        %v935 = vunpack.c.h.b16 %v435
        %v936 = vunpack.c.l.b16 %v436
        %v937 = vunpack.c.h.b16 %v436
        %v938 = vunpack.c.l.b16 %v437
        %v939 = vunpack.c.h.b16 %v437
        %v940 = vunpack.c.l.b16 %v438
        %v941 = vunpack.c.h.b16 %v438
        %v942 = vunpack.c.l.b16 %v439
        %v943 = vunpack.c.h.b16 %v439
        %v944 = vunpack.c.l.b16 %v440
        %v945 = vunpack.c.h.b16 %v440
        %v946 = vunpack.c.l.b16 %v441
        %v947 = vunpack.c.h.b16 %v441
        %v948 = vunpack.c.l.b16 %v442
        %v949 = vunpack.c.h.b16 %v442
        %v950 = vunpack.c.l.b16 %v443
        %v951 = vunpack.c.h.b16 %v443
        %v952 = vunpack.c.l.b16 %v444
        %v953 = vunpack.c.h.b16 %v444
        %v954 = vunpack.c.l.b16 %v445
        %v955 = vunpack.c.h.b16 %v445
        %v956 = vunpack.c.l.b16 %v446
        %v957 = vunpack.c.h.b16 %v446
        %v958 = vunpack.c.l.b16 %v447
        %v959 = vunpack.c.h.b16 %v447
        %v960 = vunpack.c.l.b16 %v448
        %v961 = vunpack.c.h.b16 %v448
        %v962 = vunpack.c.l.b16 %v449
        %v963 = vunpack.c.h.b16 %v449
        %v964 = vunpack.c.l.b16 %v450
        %v965 = vunpack.c.h.b16 %v450
        %v966 = vunpack.c.l.b16 %v451
        %v967 = vunpack.c.h.b16 %v451
        %v968 = vunpack.c.l.b16 %v452
        %v969 = vunpack.c.h.b16 %v452
        %v970 = vunpack.c.l.b16 %v453
        %v971 = vunpack.c.h.b16 %v453
        %v972 = vunpack.c.l.b16 %v454
        %v973 = vunpack.c.h.b16 %v454
        %v974 = vunpack.c.l.b16 %v455
        %v975 = vunpack.c.h.b16 %v455
        %v976 = vunpack.c.l.b16 %v456
        %v977 = vunpack.c.h.b16 %v456
        %v978 = vunpack.c.l.b16 %v457
        %v979 = vunpack.c.h.b16 %v457
        %v980 = vunpack.c.l.b16 %v458
        %v981 = vunpack.c.h.b16 %v458
        %v982 = vunpack.c.l.b16 %v459
        %v983 = vunpack.c.h.b16 %v459
        %v984 = vunpack.c.l.b16 %v460
        %v985 = vunpack.c.h.b16 %v460
        %v986 = vunpack.c.l.b16 %v461
        %v987 = vunpack.c.h.b16 %v461
        %v988 = vunpack.c.l.b16 %v462
        %v989 = vunpack.c.h.b16 %v462
        %v990 = vunpack.c.l.b16 %v463
        %v991 = vunpack.c.h.b16 %v463
        %v992 = vunpack.c.l.b16 %v464
        %v993 = vunpack.c.h.b16 %v464
        %v994 = vunpack.c.l.b16 %v465
        %v995 = vunpack.c.h.b16 %v465
        %v996 = vunpack.c.l.b16 %v466
        %v997 = vunpack.c.h.b16 %v466
        %v998 = vunpack.c.l.b16 %v467
        %v999 = vunpack.c.h.b16 %v467
        %v1000 = vunpack.c.l.b16 %v468
        %v1001 = vunpack.c.h.b16 %v468
        %v1002 = vunpack.c.l.b16 %v469
        %v1003 = vunpack.c.h.b16 %v469
        %v1004 = vunpack.c.l.b16 %v470
        %v1005 = vunpack.c.h.b16 %v470
        %v1006 = vunpack.c.l.b16 %v471
        %v1007 = vunpack.c.h.b16 %v471
        %v1008 = vunpack.c.l.b16 %v472
        %v1009 = vunpack.c.h.b16 %v472
        %v1010 = vunpack.c.l.b16 %v473
        %v1011 = vunpack.c.h.b16 %v473
        %v1012 = vunpack.c.l.b16 %v474
        %v1013 = vunpack.c.h.b16 %v474
        %v1014 = vunpack.c.l.b16 %v475
        %v1015 = vunpack.c.h.b16 %v475
        %v1016 = vunpack.c.l.b16 %v476
        %v1017 = vunpack.c.h.b16 %v476
        %v1018 = vunpack.c.l.b16 %v477
        %v1019 = vunpack.c.h.b16 %v477
        %v1020 = vunpack.c.l.b16 %v478
        %v1021 = vunpack.c.h.b16 %v478
        %v1022 = vunpack.c.l.b16 %v479
        %v1023 = vunpack.c.h.b16 %v479
        %v1024 = vunpack.c.l.b16 %v480
        %v1025 = vunpack.c.h.b16 %v480
        %v1026 = vunpack.c.l.b16 %v481
        %v1027 = vunpack.c.h.b16 %v481
        %v1028 = vunpack.c.l.b16 %v482
        %v1029 = vunpack.c.h.b16 %v482
        %v1030 = vunpack.c.l.b16 %v483
        %v1031 = vunpack.c.h.b16 %v483
        %v1032 = vunpack.c.l.b16 %v484
        %v1033 = vunpack.c.h.b16 %v484
        %v1034 = vunpack.c.l.b16 %v485
        %v1035 = vunpack.c.h.b16 %v485
        %v1036 = vunpack.c.l.b16 %v486
        %v1037 = vunpack.c.h.b16 %v486
        %v1038 = vunpack.c.l.b16 %v487
        %v1039 = vunpack.c.h.b16 %v487
        %v1040 = vunpack.c.l.b16 %v488
        %v1041 = vunpack.c.h.b16 %v488
        %v1042 = vunpack.c.l.b16 %v489
        %v1043 = vunpack.c.h.b16 %v489
        %v1044 = vunpack.c.l.b16 %v490
        %v1045 = vunpack.c.h.b16 %v490
        %v1046 = vunpack.c.l.b16 %v491
        %v1047 = vunpack.c.h.b16 %v491
        %v1048 = vunpack.c.l.b16 %v492
        %v1049 = vunpack.c.h.b16 %v492
        %v1050 = vunpack.c.l.b16 %v493
        %v1051 = vunpack.c.h.b16 %v493
        %v1052 = vunpack.c.l.b16 %v494
        %v1053 = vunpack.c.h.b16 %v494
        %v1054 = vunpack.c.l.b16 %v495
        %v1055 = vunpack.c.h.b16 %v495
        %v1056 = vunpack.c.l.b16 %v496
        %v1057 = vunpack.c.h.b16 %v496
        %v1058 = vunpack.c.l.b16 %v497
        %v1059 = vunpack.c.h.b16 %v497
        %v1060 = vunpack.c.l.b16 %v498
        %v1061 = vunpack.c.h.b16 %v498
        %v1062 = vunpack.c.l.b16 %v499
        %v1063 = vunpack.c.h.b16 %v499
        %v1064 = vunpack.c.l.b16 %v500
        %v1065 = vunpack.c.h.b16 %v500
        %v1066 = vunpack.c.l.b16 %v501
        %v1067 = vunpack.c.h.b16 %v501
        %v1068 = vunpack.c.l.b16 %v502
        %v1069 = vunpack.c.h.b16 %v502
        %v1070 = vunpack.c.l.b16 %v503
        %v1071 = vunpack.c.h.b16 %v503
        %v1072 = vunpack.c.l.b16 %v504
        %v1073 = vunpack.c.h.b16 %v504
        %v1074 = vunpack.c.l.b16 %v505
        %v1075 = vunpack.c.h.b16 %v505
        %v1076 = vunpack.c.l.b16 %v506
        %v1077 = vunpack.c.h.b16 %v506
        %v1078 = vunpack.c.l.b16 %v507
        %v1079 = vunpack.c.h.b16 %v507
        %v1080 = vunpack.c.l.b16 %v508
        %v1081 = vunpack.c.h.b16 %v508
        %v1082 = vunpack.c.l.b16 %v509
        %v1083 = vunpack.c.h.b16 %v509
        %v1084 = vunpack.c.l.b16 %v510
        %v1085 = vunpack.c.h.b16 %v510
        %v1086 = vunpack.c.l.b16 %v511
        %v1087 = vunpack.c.h.b16 %v511
        %v1088 = vpack.c.b16 %v768, %v704
        %v1089 = vpack.c.b16 %v769, %v705
        %v1090 = vpack.c.b16 %v770, %v706
        %v1091 = vpack.c.b16 %v771, %v707
        %v1092 = vpack.c.b16 %v772, %v708
        %v1093 = vpack.c.b16 %v773, %v709
        %v1094 = vpack.c.b16 %v774, %v710
        %v1095 = vpack.c.b16 %v775, %v711
        %v1096 = vpack.c.b16 %v776, %v712
        %v1097 = vpack.c.b16 %v777, %v713
        %v1098 = vpack.c.b16 %v778, %v714
        %v1099 = vpack.c.b16 %v779, %v715
        %v1100 = vpack.c.b16 %v780, %v716
        %v1101 = vpack.c.b16 %v781, %v717
        %v1102 = vpack.c.b16 %v782, %v718
        %v1103 = vpack.c.b16 %v783, %v719
        %v1104 = vpack.c.b16 %v784, %v720
        %v1105 = vpack.c.b16 %v785, %v721
        %v1106 = vpack.c.b16 %v786, %v722
        %v1107 = vpack.c.b16 %v787, %v723
        %v1108 = vpack.c.b16 %v788, %v724
        %v1109 = vpack.c.b16 %v789, %v725
        %v1110 = vpack.c.b16 %v790, %v726
        %v1111 = vpack.c.b16 %v791, %v727
        %v1112 = vpack.c.b16 %v792, %v728
        %v1113 = vpack.c.b16 %v793, %v729
        %v1114 = vpack.c.b16 %v794, %v730
        %v1115 = vpack.c.b16 %v795, %v731
        %v1116 = vpack.c.b16 %v796, %v732
        %v1117 = vpack.c.b16 %v797, %v733
        %v1118 = vpack.c.b16 %v798, %v734
        %v1119 = vpack.c.b16 %v799, %v735
        %v1120 = vpack.c.b16 %v800, %v736
        %v1121 = vpack.c.b16 %v801, %v737
        %v1122 = vpack.c.b16 %v802, %v738
        %v1123 = vpack.c.b16 %v803, %v739
        %v1124 = vpack.c.b16 %v804, %v740
        %v1125 = vpack.c.b16 %v805, %v741
        %v1126 = vpack.c.b16 %v806, %v742
        %v1127 = vpack.c.b16 %v807, %v743
        %v1128 = vpack.c.b16 %v808, %v744
        %v1129 = vpack.c.b16 %v809, %v745
        %v1130 = vpack.c.b16 %v810, %v746
        %v1131 = vpack.c.b16 %v811, %v747
        %v1132 = vpack.c.b16 %v812, %v748
        %v1133 = vpack.c.b16 %v813, %v749
        %v1134 = vpack.c.b16 %v814, %v750
        %v1135 = vpack.c.b16 %v815, %v751
        %v1136 = vpack.c.b16 %v816, %v752
        %v1137 = vpack.c.b16 %v817, %v753
        %v1138 = vpack.c.b16 %v818, %v754
        %v1139 = vpack.c.b16 %v819, %v755
        %v1140 = vpack.c.b16 %v820, %v756
        %v1141 = vpack.c.b16 %v821, %v757
        %v1142 = vpack.c.b16 %v822, %v758
        %v1143 = vpack.c.b16 %v823, %v759
        %v1144 = vpack.c.b16 %v824, %v760
        %v1145 = vpack.c.b16 %v825, %v761
        %v1146 = vpack.c.b16 %v826, %v762
        %v1147 = vpack.c.b16 %v827, %v763
        %v1148 = vpack.c.b16 %v828, %v764
        %v1149 = vpack.c.b16 %v829, %v765
        %v1150 = vpack.c.b16 %v830, %v766
        %v1151 = vpack.c.b16 %v831, %v767
        %v1152 = vpack.c.b16 %v896, %v832
        %v1153 = vpack.c.b16 %v897, %v833
        %v1154 = vpack.c.b16 %v898, %v834
        %v1155 = vpack.c.b16 %v899, %v835
        %v1156 = vpack.c.b16 %v900, %v836
        %v1157 = vpack.c.b16 %v901, %v837
        %v1158 = vpack.c.b16 %v902, %v838
        %v1159 = vpack.c.b16 %v903, %v839
        %v1160 = vpack.c.b16 %v904, %v840
        %v1161 = vpack.c.b16 %v905, %v841
        %v1162 = vpack.c.b16 %v906, %v842
        %v1163 = vpack.c.b16 %v907, %v843
        %v1164 = vpack.c.b16 %v908, %v844
        %v1165 = vpack.c.b16 %v909, %v845
        %v1166 = vpack.c.b16 %v910, %v846
        %v1167 = vpack.c.b16 %v911, %v847
        %v1168 = vpack.c.b16 %v912, %v848
        %v1169 = vpack.c.b16 %v913, %v849
        %v1170 = vpack.c.b16 %v914, %v850
        %v1171 = vpack.c.b16 %v915, %v851
        %v1172 = vpack.c.b16 %v916, %v852
        %v1173 = vpack.c.b16 %v917, %v853
        %v1174 = vpack.c.b16 %v918, %v854
        %v1175 = vpack.c.b16 %v919, %v855
        %v1176 = vpack.c.b16 %v920, %v856
        %v1177 = vpack.c.b16 %v921, %v857
        %v1178 = vpack.c.b16 %v922, %v858
        %v1179 = vpack.c.b16 %v923, %v859
        %v1180 = vpack.c.b16 %v924, %v860
        %v1181 = vpack.c.b16 %v925, %v861
        %v1182 = vpack.c.b16 %v926, %v862
        %v1183 = vpack.c.b16 %v927, %v863
        %v1184 = vpack.c.b16 %v928, %v864
        %v1185 = vpack.c.b16 %v929, %v865
        %v1186 = vpack.c.b16 %v930, %v866
        %v1187 = vpack.c.b16 %v931, %v867
        %v1188 = vpack.c.b16 %v932, %v868
        %v1189 = vpack.c.b16 %v933, %v869
        %v1190 = vpack.c.b16 %v934, %v870
        %v1191 = vpack.c.b16 %v935, %v871
        %v1192 = vpack.c.b16 %v936, %v872
        %v1193 = vpack.c.b16 %v937, %v873
        %v1194 = vpack.c.b16 %v938, %v874
        %v1195 = vpack.c.b16 %v939, %v875
        %v1196 = vpack.c.b16 %v940, %v876
        %v1197 = vpack.c.b16 %v941, %v877
        %v1198 = vpack.c.b16 %v942, %v878
        %v1199 = vpack.c.b16 %v943, %v879
        %v1200 = vpack.c.b16 %v944, %v880
        %v1201 = vpack.c.b16 %v945, %v881
        %v1202 = vpack.c.b16 %v946, %v882
        %v1203 = vpack.c.b16 %v947, %v883
        %v1204 = vpack.c.b16 %v948, %v884
        %v1205 = vpack.c.b16 %v949, %v885
        %v1206 = vpack.c.b16 %v950, %v886
        %v1207 = vpack.c.b16 %v951, %v887
        %v1208 = vpack.c.b16 %v952, %v888
        %v1209 = vpack.c.b16 %v953, %v889
        %v1210 = vpack.c.b16 %v954, %v890
        %v1211 = vpack.c.b16 %v955, %v891
        %v1212 = vpack.c.b16 %v956, %v892
        %v1213 = vpack.c.b16 %v957, %v893
        %v1214 = vpack.c.b16 %v958, %v894
        %v1215 = vpack.c.b16 %v959, %v895
        %v1216 = vpack.c.b16 %v1024, %v960
        %v1217 = vpack.c.b16 %v1025, %v961
        %v1218 = vpack.c.b16 %v1026, %v962
        %v1219 = vpack.c.b16 %v1027, %v963
        %v1220 = vpack.c.b16 %v1028, %v964
        %v1221 = vpack.c.b16 %v1029, %v965
        %v1222 = vpack.c.b16 %v1030, %v966
        %v1223 = vpack.c.b16 %v1031, %v967
        %v1224 = vpack.c.b16 %v1032, %v968
        %v1225 = vpack.c.b16 %v1033, %v969
        %v1226 = vpack.c.b16 %v1034, %v970
        %v1227 = vpack.c.b16 %v1035, %v971
        %v1228 = vpack.c.b16 %v1036, %v972
        %v1229 = vpack.c.b16 %v1037, %v973
        %v1230 = vpack.c.b16 %v1038, %v974
        %v1231 = vpack.c.b16 %v1039, %v975
        %v1232 = vpack.c.b16 %v1040, %v976
        %v1233 = vpack.c.b16 %v1041, %v977
        %v1234 = vpack.c.b16 %v1042, %v978
        %v1235 = vpack.c.b16 %v1043, %v979
        %v1236 = vpack.c.b16 %v1044, %v980
        %v1237 = vpack.c.b16 %v1045, %v981
        %v1238 = vpack.c.b16 %v1046, %v982
        %v1239 = vpack.c.b16 %v1047, %v983
        %v1240 = vpack.c.b16 %v1048, %v984
        %v1241 = vpack.c.b16 %v1049, %v985
        %v1242 = vpack.c.b16 %v1050, %v986
        %v1243 = vpack.c.b16 %v1051, %v987
        %v1244 = vpack.c.b16 %v1052, %v988
        %v1245 = vpack.c.b16 %v1053, %v989
        %v1246 = vpack.c.b16 %v1054, %v990
        %v1247 = vpack.c.b16 %v1055, %v991
        %v1248 = vpack.c.b16 %v1056, %v992
        %v1249 = vpack.c.b16 %v1057, %v993
        %v1250 = vpack.c.b16 %v1058, %v994
        %v1251 = vpack.c.b16 %v1059, %v995
        %v1252 = vpack.c.b16 %v1060, %v996
        %v1253 = vpack.c.b16 %v1061, %v997
        %v1254 = vpack.c.b16 %v1062, %v998
        %v1255 = vpack.c.b16 %v1063, %v999
        %v1256 = vpack.c.b16 %v1064, %v1000
        %v1257 = vpack.c.b16 %v1065, %v1001
        %v1258 = vpack.c.b16 %v1066, %v1002
        %v1259 = vpack.c.b16 %v1067, %v1003
        %v1260 = vpack.c.b16 %v1068, %v1004
        %v1261 = vpack.c.b16 %v1069, %v1005
        %v1262 = vpack.c.b16 %v1070, %v1006
        %v1263 = vpack.c.b16 %v1071, %v1007
        %v1264 = vpack.c.b16 %v1072, %v1008
        %v1265 = vpack.c.b16 %v1073, %v1009
        %v1266 = vpack.c.b16 %v1074, %v1010
        %v1267 = vpack.c.b16 %v1075, %v1011
        %v1268 = vpack.c.b16 %v1076, %v1012
        %v1269 = vpack.c.b16 %v1077, %v1013
        %v1270 = vpack.c.b16 %v1078, %v1014
        %v1271 = vpack.c.b16 %v1079, %v1015
        %v1272 = vpack.c.b16 %v1080, %v1016
        %v1273 = vpack.c.b16 %v1081, %v1017
        %v1274 = vpack.c.b16 %v1082, %v1018
        %v1275 = vpack.c.b16 %v1083, %v1019
        %v1276 = vpack.c.b16 %v1084, %v1020
        %v1277 = vpack.c.b16 %v1085, %v1021
        %v1278 = vpack.c.b16 %v1086, %v1022
        %v1279 = vpack.c.b16 %v1087, %v1023
        %v1536 = vunpack.c.l.b16 %v250
        %v1537 = vunpack.c.h.b16 %v250
        %v1538 = vunpack.c.l.b16 %v251
        %v1539 = vunpack.c.h.b16 %v251
        %v1540 = vunpack.c.l.b16 %v252
        %v1541 = vunpack.c.h.b16 %v252
        %v1542 = vunpack.c.l.b16 %v253
        %v1543 = vunpack.c.h.b16 %v253
        %v1544 = vunpack.c.l.b16 %v254
        %v1545 = vunpack.c.h.b16 %v254
        %v1546 = vunpack.c.l.b16 %v255
        %v1547 = vunpack.c.h.b16 %v255
        %v1548 = vunpack.c.l.b16 %v256
        %v1549 = vunpack.c.h.b16 %v256
        %v1550 = vunpack.c.l.b16 %v257
        %v1551 = vunpack.c.h.b16 %v257
        %v1552 = vunpack.c.l.b16 %v258
        %v1553 = vunpack.c.h.b16 %v258
        %v1554 = vunpack.c.l.b16 %v259
        %v1555 = vunpack.c.h.b16 %v259
        %v1556 = vunpack.c.l.b16 %v260
        %v1557 = vunpack.c.h.b16 %v260
        %v1558 = vunpack.c.l.b16 %v261
        %v1559 = vunpack.c.h.b16 %v261
        %v1560 = vunpack.c.l.b16 %v262
        %v1561 = vunpack.c.h.b16 %v262
        %v1562 = vunpack.c.l.b16 %v263
        %v1563 = vunpack.c.h.b16 %v263
        %v1564 = vunpack.c.l.b16 %v264
        %v1565 = vunpack.c.h.b16 %v264
        %v1566 = vunpack.c.l.b16 %v265
        %v1567 = vunpack.c.h.b16 %v265
        %v1568 = vunpack.c.l.b16 %v266
        %v1569 = vunpack.c.h.b16 %v266
        %v1570 = vunpack.c.l.b16 %v267
        %v1571 = vunpack.c.h.b16 %v267
        %v1572 = vunpack.c.l.b16 %v268
        %v1573 = vunpack.c.h.b16 %v268
        %v1574 = vunpack.c.l.b16 %v269
        %v1575 = vunpack.c.h.b16 %v269
        %v1576 = vunpack.c.l.b16 %v270
        %v1577 = vunpack.c.h.b16 %v270
        %v1578 = vunpack.c.l.b16 %v271
        %v1579 = vunpack.c.h.b16 %v271
        %v1580 = vunpack.c.l.b16 %v272
        %v1581 = vunpack.c.h.b16 %v272
        %v1582 = vunpack.c.l.b16 %v273
        %v1583 = vunpack.c.h.b16 %v273
        %v1584 = vunpack.c.l.b16 %v274
        %v1585 = vunpack.c.h.b16 %v274
        %v1586 = vunpack.c.l.b16 %v275
        %v1587 = vunpack.c.h.b16 %v275
        %v1588 = vunpack.c.l.b16 %v276
        %v1589 = vunpack.c.h.b16 %v276
        %v1590 = vunpack.c.l.b16 %v277
        %v1591 = vunpack.c.h.b16 %v277
        %v1592 = vunpack.c.l.b16 %v278
        %v1593 = vunpack.c.h.b16 %v278
        %v1594 = vunpack.c.l.b16 %v279
        %v1595 = vunpack.c.h.b16 %v279
        %v1596 = vunpack.c.l.b16 %v280
        %v1597 = vunpack.c.h.b16 %v280
        %v1598 = vunpack.c.l.b16 %v281
        %v1599 = vunpack.c.h.b16 %v281
        %v1600 = vunpack.c.l.b16 %v282
        %v1601 = vunpack.c.h.b16 %v282
        %v1602 = vunpack.c.l.b16 %v283
        %v1603 = vunpack.c.h.b16 %v283
        %v1604 = vunpack.c.l.b16 %v284
        %v1605 = vunpack.c.h.b16 %v284
        %v1606 = vunpack.c.l.b16 %v285
        %v1607 = vunpack.c.h.b16 %v285
        %v1608 = vunpack.c.l.b16 %v286
        %v1609 = vunpack.c.h.b16 %v286
        %v1610 = vunpack.c.l.b16 %v287
        %v1611 = vunpack.c.h.b16 %v287
        %v1612 = vunpack.c.l.b16 %v288
        %v1613 = vunpack.c.h.b16 %v288
        %v1614 = vunpack.c.l.b16 %v289
        %v1615 = vunpack.c.h.b16 %v289
        %v1616 = vunpack.c.l.b16 %v290
        %v1617 = vunpack.c.h.b16 %v290
        %v1618 = vunpack.c.l.b16 %v291
        %v1619 = vunpack.c.h.b16 %v291
        %v1620 = vunpack.c.l.b16 %v292
        %v1621 = vunpack.c.h.b16 %v292
        %v1622 = vunpack.c.l.b16 %v293
        %v1623 = vunpack.c.h.b16 %v293
        %v1624 = vunpack.c.l.b16 %v294
        %v1625 = vunpack.c.h.b16 %v294
        %v1626 = vunpack.c.l.b16 %v295
        %v1627 = vunpack.c.h.b16 %v295
        %v1628 = vunpack.c.l.b16 %v296
        %v1629 = vunpack.c.h.b16 %v296
        %v1630 = vunpack.c.l.b16 %v297
        %v1631 = vunpack.c.h.b16 %v297
        %v1632 = vunpack.c.l.b16 %v298
        %v1633 = vunpack.c.h.b16 %v298
        %v1634 = vunpack.c.l.b16 %v299
        %v1635 = vunpack.c.h.b16 %v299
        %v1636 = vunpack.c.l.b16 %v300
        %v1637 = vunpack.c.h.b16 %v300
        %v1638 = vunpack.c.l.b16 %v301
        %v1639 = vunpack.c.h.b16 %v301
        %v1640 = vunpack.c.l.b16 %v302
        %v1641 = vunpack.c.h.b16 %v302
        %v1642 = vunpack.c.l.b16 %v303
        %v1643 = vunpack.c.h.b16 %v303
        %v1644 = vunpack.c.l.b16 %v304
        %v1645 = vunpack.c.h.b16 %v304
        %v1646 = vunpack.c.l.b16 %v305
        %v1647 = vunpack.c.h.b16 %v305
        %v1648 = vunpack.c.l.b16 %v306
        %v1649 = vunpack.c.h.b16 %v306
        %v1650 = vunpack.c.l.b16 %v307
        %v1651 = vunpack.c.h.b16 %v307
        %v1652 = vunpack.c.l.b16 %v308
        %v1653 = vunpack.c.h.b16 %v308
        %v1654 = vunpack.c.l.b16 %v309
        %v1655 = vunpack.c.h.b16 %v309
        %v1656 = vunpack.c.l.b16 %v310
        %v1657 = vunpack.c.h.b16 %v310
        %v1658 = vunpack.c.l.b16 %v311
        %v1659 = vunpack.c.h.b16 %v311
        %v1660 = vunpack.c.l.b16 %v312
        %v1661 = vunpack.c.h.b16 %v312
        %v1662 = vunpack.c.l.b16 %v313
        %v1663 = vunpack.c.h.b16 %v313
        %v1664 = vpack.c.b16 %v1600, %v1536
        %v1665 = vpack.c.b16 %v1601, %v1537
        %v1666 = vpack.c.b16 %v1602, %v1538
        %v1667 = vpack.c.b16 %v1603, %v1539
        %v1668 = vpack.c.b16 %v1604, %v1540
        %v1669 = vpack.c.b16 %v1605, %v1541
        %v1670 = vpack.c.b16 %v1606, %v1542
        %v1671 = vpack.c.b16 %v1607, %v1543
        %v1672 = vpack.c.b16 %v1608, %v1544
        %v1673 = vpack.c.b16 %v1609, %v1545
        %v1674 = vpack.c.b16 %v1610, %v1546
        %v1675 = vpack.c.b16 %v1611, %v1547
        %v1676 = vpack.c.b16 %v1612, %v1548
        %v1677 = vpack.c.b16 %v1613, %v1549
        %v1678 = vpack.c.b16 %v1614, %v1550
        %v1679 = vpack.c.b16 %v1615, %v1551
        %v1680 = vpack.c.b16 %v1616, %v1552
        %v1681 = vpack.c.b16 %v1617, %v1553
        %v1682 = vpack.c.b16 %v1618, %v1554
        %v1683 = vpack.c.b16 %v1619, %v1555
        %v1684 = vpack.c.b16 %v1620, %v1556
        %v1685 = vpack.c.b16 %v1621, %v1557
        %v1686 = vpack.c.b16 %v1622, %v1558
        %v1687 = vpack.c.b16 %v1623, %v1559
        %v1688 = vpack.c.b16 %v1624, %v1560
        %v1689 = vpack.c.b16 %v1625, %v1561
        %v1690 = vpack.c.b16 %v1626, %v1562
        %v1691 = vpack.c.b16 %v1627, %v1563
        %v1692 = vpack.c.b16 %v1628, %v1564
        %v1693 = vpack.c.b16 %v1629, %v1565
        %v1694 = vpack.c.b16 %v1630, %v1566
        %v1695 = vpack.c.b16 %v1631, %v1567
        %v1696 = vpack.c.b16 %v1632, %v1568
        %v1697 = vpack.c.b16 %v1633, %v1569
        %v1698 = vpack.c.b16 %v1634, %v1570
        %v1699 = vpack.c.b16 %v1635, %v1571
        %v1700 = vpack.c.b16 %v1636, %v1572
        %v1701 = vpack.c.b16 %v1637, %v1573
        %v1702 = vpack.c.b16 %v1638, %v1574
        %v1703 = vpack.c.b16 %v1639, %v1575
        %v1704 = vpack.c.b16 %v1640, %v1576
        %v1705 = vpack.c.b16 %v1641, %v1577
        %v1706 = vpack.c.b16 %v1642, %v1578
        %v1707 = vpack.c.b16 %v1643, %v1579
        %v1708 = vpack.c.b16 %v1644, %v1580
        %v1709 = vpack.c.b16 %v1645, %v1581
        %v1710 = vpack.c.b16 %v1646, %v1582
        %v1711 = vpack.c.b16 %v1647, %v1583
        %v1712 = vpack.c.b16 %v1648, %v1584
        %v1713 = vpack.c.b16 %v1649, %v1585
        %v1714 = vpack.c.b16 %v1650, %v1586
        %v1715 = vpack.c.b16 %v1651, %v1587
        %v1716 = vpack.c.b16 %v1652, %v1588
        %v1717 = vpack.c.b16 %v1653, %v1589
        %v1718 = vpack.c.b16 %v1654, %v1590
        %v1719 = vpack.c.b16 %v1655, %v1591
        %v1720 = vpack.c.b16 %v1656, %v1592
        %v1721 = vpack.c.b16 %v1657, %v1593
        %v1722 = vpack.c.b16 %v1658, %v1594
        %v1723 = vpack.c.b16 %v1659, %v1595
        %v1724 = vpack.c.b16 %v1660, %v1596
        %v1725 = vpack.c.b16 %v1661, %v1597
        %v1726 = vpack.c.b16 %v1662, %v1598
        %v1727 = vpack.c.b16 %v1663, %v1599
        %1792 = vmatprep.subr.bf16.mxu0 0
        %1793 = vmatpush1.bf16.xpose.msra.mxu0 0
        %1794 = vmatprep.subr.bf16.mxu0 0
        %1795 = vmatpush1.bf16.xpose.msra.mxu0 0
        %1796 = vmatprep.subr.bf16.mxu0 0
        %1797 = vmatpush1.bf16.xpose.msra.mxu0 0
        %1798 = vmatprep.subr.bf16.mxu0 0
        %1799 = vmatpush1.bf16.xpose.msra.mxu0 0
        %1800 = vmatprep.subr.bf16.mxu0 0
        %1801 = vmatpush1.bf16.xpose.msra.mxu0 0
        %1802 = vmatprep.subr.bf16.mxu0 0
        %1803 = vmatpush1.bf16.xpose.msra.mxu0 0
        %1804 = vmatprep.subr.bf16.mxu0 0
        %1805 = vmatpush1.bf16.xpose.msra.mxu0 0
        %1806 = vmatprep.subr.bf16.mxu0 %v1665
        %1807 = vmatpush1.bf16.xpose.msra.mxu0 %v1664
        %1808 = vmatprep.subr.bf16.mxu0 0
        %1809 = vmatpush2.bf16.xpose.msra.mxu0 0
        %1810 = vmatprep.subr.bf16.mxu0 0
        %1811 = vmatpush2.bf16.xpose.msra.mxu0 0
        %1812 = vmatprep.subr.bf16.mxu0 0
        %1813 = vmatpush2.bf16.xpose.msra.mxu0 0
        %1814 = vmatprep.subr.bf16.mxu0 0
        %1815 = vmatpush2.bf16.xpose.msra.mxu0 0
        %1816 = vmatprep.subr.bf16.mxu0 0
        %1817 = vmatpush2.bf16.xpose.msra.mxu0 0
        %1818 = vmatprep.subr.bf16.mxu0 0
        %1819 = vmatpush2.bf16.xpose.msra.mxu0 0
        %1820 = vmatprep.subr.bf16.mxu0 0
        %1821 = vmatpush2.bf16.xpose.msra.mxu0 0
        %1822 = vmatprep.subr.bf16.mxu0 0
        %1823 = vmatpush2.bf16.xpose.msra.mxu0 0
        %1824 = vmatprep.mubr.bf16.mxu0 %v1089
        %1825 = vmatmul.mubr.bf16.gmra.mxu0 %v1088
        %v1826 = vpop.f32.mrf.mxu0
        %v1827 = vadd.f32 0.0, %v1826
        %v1828 = vpop.f32.mrf.mxu0
        %v1829 = vpop.f32.mrf.mxu0
        %v1830 = vadd.f32 0.0, %v1829
        %v1831 = vpop.f32.mrf.mxu0
        %1832 = vmatprep.mubr.bf16.mxu0 %v1153
        %1833 = vmatmul.mubr.bf16.gmra.mxu0 %v1152
        %v1834 = vpop.f32.mrf.mxu0
        %v1835 = vadd.f32 0.0, %v1834
        %v1836 = vpop.f32.mrf.mxu0
        %v1837 = vpop.f32.mrf.mxu0
        %v1838 = vadd.f32 0.0, %v1837
        %v1839 = vpop.f32.mrf.mxu0
        %1840 = vmatprep.mubr.bf16.mxu0 %v1217
        %1841 = vmatmul.mubr.bf16.gmra.mxu0 %v1216
        %v1842 = vpop.f32.mrf.mxu0
        %v1843 = vadd.f32 0.0, %v1842
        %v1844 = vpop.f32.mrf.mxu0
        %v1845 = vpop.f32.mrf.mxu0
        %v1846 = vadd.f32 0.0, %v1845
        %v1847 = vpop.f32.mrf.mxu0
        %1848 = vdwg.mxu0
        %1849 = vmatprep.subr.bf16.mxu0 0
        %1850 = vmatpush1.bf16.xpose.msra.mxu0 0
        %1851 = vmatprep.subr.bf16.mxu0 0
        %1852 = vmatpush1.bf16.xpose.msra.mxu0 0
        %1853 = vmatprep.subr.bf16.mxu0 0
        %1854 = vmatpush1.bf16.xpose.msra.mxu0 0
        %1855 = vmatprep.subr.bf16.mxu0 0
        %1856 = vmatpush1.bf16.xpose.msra.mxu0 0
        %1857 = vmatprep.subr.bf16.mxu0 0
        %1858 = vmatpush1.bf16.xpose.msra.mxu0 0
        %1859 = vmatprep.subr.bf16.mxu0 0
        %1860 = vmatpush1.bf16.xpose.msra.mxu0 0
        %1861 = vmatprep.subr.bf16.mxu0 0
        %1862 = vmatpush1.bf16.xpose.msra.mxu0 0
        %1863 = vmatprep.subr.bf16.mxu0 %v1667
        %1864 = vmatpush1.bf16.xpose.msra.mxu0 %v1666
        %1865 = vmatprep.subr.bf16.mxu0 0
        %1866 = vmatpush2.bf16.xpose.msra.mxu0 0
        %1867 = vmatprep.subr.bf16.mxu0 0
        %1868 = vmatpush2.bf16.xpose.msra.mxu0 0
        %1869 = vmatprep.subr.bf16.mxu0 0
        %1870 = vmatpush2.bf16.xpose.msra.mxu0 0
        %1871 = vmatprep.subr.bf16.mxu0 0
        %1872 = vmatpush2.bf16.xpose.msra.mxu0 0
        %1873 = vmatprep.subr.bf16.mxu0 0
        %1874 = vmatpush2.bf16.xpose.msra.mxu0 0
        %1875 = vmatprep.subr.bf16.mxu0 0
        %1876 = vmatpush2.bf16.xpose.msra.mxu0 0
        %1877 = vmatprep.subr.bf16.mxu0 0
        %1878 = vmatpush2.bf16.xpose.msra.mxu0 0
        %1879 = vmatprep.subr.bf16.mxu0 0
        %1880 = vmatpush2.bf16.xpose.msra.mxu0 0
        %1881 = vmatprep.mubr.bf16.mxu0 %v1091
        %1882 = vmatmul.mubr.bf16.gmra.mxu0 %v1090
        %v1883 = vpop.f32.mrf.mxu0
        %v1884 = vadd.f32 %v1827, %v1883
        %v1885 = vpop.f32.mrf.mxu0
        %v1886 = vpop.f32.mrf.mxu0
        %v1887 = vadd.f32 %v1830, %v1886
        %v1888 = vpop.f32.mrf.mxu0
        %1889 = vmatprep.mubr.bf16.mxu0 %v1155
        %1890 = vmatmul.mubr.bf16.gmra.mxu0 %v1154
        %v1891 = vpop.f32.mrf.mxu0
        %v1892 = vadd.f32 %v1835, %v1891
        %v1893 = vpop.f32.mrf.mxu0
        %v1894 = vpop.f32.mrf.mxu0
        %v1895 = vadd.f32 %v1838, %v1894
        %v1896 = vpop.f32.mrf.mxu0
        %1897 = vmatprep.mubr.bf16.mxu0 %v1219
        %1898 = vmatmul.mubr.bf16.gmra.mxu0 %v1218
        %v1899 = vpop.f32.mrf.mxu0
        %v1900 = vadd.f32 %v1843, %v1899
        %v1901 = vpop.f32.mrf.mxu0
        %v1902 = vpop.f32.mrf.mxu0
        %v1903 = vadd.f32 %v1846, %v1902
        %v1904 = vpop.f32.mrf.mxu0
        %1905 = vdwg.mxu0
        %1906 = vmatprep.subr.bf16.mxu0 0
        %1907 = vmatpush1.bf16.xpose.msra.mxu0 0
        %1908 = vmatprep.subr.bf16.mxu0 0
        %1909 = vmatpush1.bf16.xpose.msra.mxu0 0
        %1910 = vmatprep.subr.bf16.mxu0 0
        %1911 = vmatpush1.bf16.xpose.msra.mxu0 0
        %1912 = vmatprep.subr.bf16.mxu0 0
        %1913 = vmatpush1.bf16.xpose.msra.mxu0 0
        %1914 = vmatprep.subr.bf16.mxu0 0
        %1915 = vmatpush1.bf16.xpose.msra.mxu0 0
        %1916 = vmatprep.subr.bf16.mxu0 0
        %1917 = vmatpush1.bf16.xpose.msra.mxu0 0
        %1918 = vmatprep.subr.bf16.mxu0 0
        %1919 = vmatpush1.bf16.xpose.msra.mxu0 0
        %1920 = vmatprep.subr.bf16.mxu0 %v1669
        %1921 = vmatpush1.bf16.xpose.msra.mxu0 %v1668
        %1922 = vmatprep.subr.bf16.mxu0 0
        %1923 = vmatpush2.bf16.xpose.msra.mxu0 0
        %1924 = vmatprep.subr.bf16.mxu0 0
        %1925 = vmatpush2.bf16.xpose.msra.mxu0 0
        %1926 = vmatprep.subr.bf16.mxu0 0
        %1927 = vmatpush2.bf16.xpose.msra.mxu0 0
        %1928 = vmatprep.subr.bf16.mxu0 0
        %1929 = vmatpush2.bf16.xpose.msra.mxu0 0
        %1930 = vmatprep.subr.bf16.mxu0 0
        %1931 = vmatpush2.bf16.xpose.msra.mxu0 0
        %1932 = vmatprep.subr.bf16.mxu0 0
        %1933 = vmatpush2.bf16.xpose.msra.mxu0 0
        %1934 = vmatprep.subr.bf16.mxu0 0
        %1935 = vmatpush2.bf16.xpose.msra.mxu0 0
        %1936 = vmatprep.subr.bf16.mxu0 0
        %1937 = vmatpush2.bf16.xpose.msra.mxu0 0
        %1938 = vmatprep.mubr.bf16.mxu0 %v1093
        %1939 = vmatmul.mubr.bf16.gmra.mxu0 %v1092
        %v1940 = vpop.f32.mrf.mxu0
        %v1941 = vadd.f32 %v1884, %v1940
        %v1942 = vpop.f32.mrf.mxu0
        %v1943 = vpop.f32.mrf.mxu0
        %v1944 = vadd.f32 %v1887, %v1943
        %v1945 = vpop.f32.mrf.mxu0
        %1946 = vmatprep.mubr.bf16.mxu0 %v1157
        %1947 = vmatmul.mubr.bf16.gmra.mxu0 %v1156
        %v1948 = vpop.f32.mrf.mxu0
        %v1949 = vadd.f32 %v1892, %v1948
        %v1950 = vpop.f32.mrf.mxu0
        %v1951 = vpop.f32.mrf.mxu0
        %v1952 = vadd.f32 %v1895, %v1951
        %v1953 = vpop.f32.mrf.mxu0
        %1954 = vmatprep.mubr.bf16.mxu0 %v1221
        %1955 = vmatmul.mubr.bf16.gmra.mxu0 %v1220
        %v1956 = vpop.f32.mrf.mxu0
        %v1957 = vadd.f32 %v1900, %v1956
        %v1958 = vpop.f32.mrf.mxu0
        %v1959 = vpop.f32.mrf.mxu0
        %v1960 = vadd.f32 %v1903, %v1959
        %v1961 = vpop.f32.mrf.mxu0
        %1962 = vdwg.mxu0
        %1963 = vmatprep.subr.bf16.mxu0 0
        %1964 = vmatpush1.bf16.xpose.msra.mxu0 0
        %1965 = vmatprep.subr.bf16.mxu0 0
        %1966 = vmatpush1.bf16.xpose.msra.mxu0 0
        %1967 = vmatprep.subr.bf16.mxu0 0
        %1968 = vmatpush1.bf16.xpose.msra.mxu0 0
        %1969 = vmatprep.subr.bf16.mxu0 0
        %1970 = vmatpush1.bf16.xpose.msra.mxu0 0
        %1971 = vmatprep.subr.bf16.mxu0 0
        %1972 = vmatpush1.bf16.xpose.msra.mxu0 0
        %1973 = vmatprep.subr.bf16.mxu0 0
        %1974 = vmatpush1.bf16.xpose.msra.mxu0 0
        %1975 = vmatprep.subr.bf16.mxu0 0
        %1976 = vmatpush1.bf16.xpose.msra.mxu0 0
        %1977 = vmatprep.subr.bf16.mxu0 %v1671
        %1978 = vmatpush1.bf16.xpose.msra.mxu0 %v1670
        %1979 = vmatprep.subr.bf16.mxu0 0
        %1980 = vmatpush2.bf16.xpose.msra.mxu0 0
        %1981 = vmatprep.subr.bf16.mxu0 0
        %1982 = vmatpush2.bf16.xpose.msra.mxu0 0
        %1983 = vmatprep.subr.bf16.mxu0 0
        %1984 = vmatpush2.bf16.xpose.msra.mxu0 0
        %1985 = vmatprep.subr.bf16.mxu0 0
        %1986 = vmatpush2.bf16.xpose.msra.mxu0 0
        %1987 = vmatprep.subr.bf16.mxu0 0
        %1988 = vmatpush2.bf16.xpose.msra.mxu0 0
        %1989 = vmatprep.subr.bf16.mxu0 0
        %1990 = vmatpush2.bf16.xpose.msra.mxu0 0
        %1991 = vmatprep.subr.bf16.mxu0 0
        %1992 = vmatpush2.bf16.xpose.msra.mxu0 0
        %1993 = vmatprep.subr.bf16.mxu0 0
        %1994 = vmatpush2.bf16.xpose.msra.mxu0 0
        %1995 = vmatprep.mubr.bf16.mxu0 %v1095
        %1996 = vmatmul.mubr.bf16.gmra.mxu0 %v1094
        %v1997 = vpop.f32.mrf.mxu0
        %v1998 = vadd.f32 %v1941, %v1997
        %v1999 = vpop.f32.mrf.mxu0
        %v2000 = vpop.f32.mrf.mxu0
        %v2001 = vadd.f32 %v1944, %v2000
        %v2002 = vpop.f32.mrf.mxu0
        %2003 = vmatprep.mubr.bf16.mxu0 %v1159
        %2004 = vmatmul.mubr.bf16.gmra.mxu0 %v1158
        %v2005 = vpop.f32.mrf.mxu0
        %v2006 = vadd.f32 %v1949, %v2005
        %v2007 = vpop.f32.mrf.mxu0
        %v2008 = vpop.f32.mrf.mxu0
        %v2009 = vadd.f32 %v1952, %v2008
        %v2010 = vpop.f32.mrf.mxu0
        %2011 = vmatprep.mubr.bf16.mxu0 %v1223
        %2012 = vmatmul.mubr.bf16.gmra.mxu0 %v1222
        %v2013 = vpop.f32.mrf.mxu0
        %v2014 = vadd.f32 %v1957, %v2013
        %v2015 = vpop.f32.mrf.mxu0
        %v2016 = vpop.f32.mrf.mxu0
        %v2017 = vadd.f32 %v1960, %v2016
        %v2018 = vpop.f32.mrf.mxu0
        %2019 = vdwg.mxu0
        %2020 = vmatprep.subr.bf16.mxu0 0
        %2021 = vmatpush1.bf16.xpose.msra.mxu0 0
        %2022 = vmatprep.subr.bf16.mxu0 0
        %2023 = vmatpush1.bf16.xpose.msra.mxu0 0
        %2024 = vmatprep.subr.bf16.mxu0 0
        %2025 = vmatpush1.bf16.xpose.msra.mxu0 0
        %2026 = vmatprep.subr.bf16.mxu0 0
        %2027 = vmatpush1.bf16.xpose.msra.mxu0 0
        %2028 = vmatprep.subr.bf16.mxu0 0
        %2029 = vmatpush1.bf16.xpose.msra.mxu0 0
        %2030 = vmatprep.subr.bf16.mxu0 0
        %2031 = vmatpush1.bf16.xpose.msra.mxu0 0
        %2032 = vmatprep.subr.bf16.mxu0 0
        %2033 = vmatpush1.bf16.xpose.msra.mxu0 0
        %2034 = vmatprep.subr.bf16.mxu0 %v1673
        %2035 = vmatpush1.bf16.xpose.msra.mxu0 %v1672
        %2036 = vmatprep.subr.bf16.mxu0 0
        %2037 = vmatpush2.bf16.xpose.msra.mxu0 0
        %2038 = vmatprep.subr.bf16.mxu0 0
        %2039 = vmatpush2.bf16.xpose.msra.mxu0 0
        %2040 = vmatprep.subr.bf16.mxu0 0
        %2041 = vmatpush2.bf16.xpose.msra.mxu0 0
        %2042 = vmatprep.subr.bf16.mxu0 0
        %2043 = vmatpush2.bf16.xpose.msra.mxu0 0
        %2044 = vmatprep.subr.bf16.mxu0 0
        %2045 = vmatpush2.bf16.xpose.msra.mxu0 0
        %2046 = vmatprep.subr.bf16.mxu0 0
        %2047 = vmatpush2.bf16.xpose.msra.mxu0 0
        %2048 = vmatprep.subr.bf16.mxu0 0
        %2049 = vmatpush2.bf16.xpose.msra.mxu0 0
        %2050 = vmatprep.subr.bf16.mxu0 0
        %2051 = vmatpush2.bf16.xpose.msra.mxu0 0
        %2052 = vmatprep.mubr.bf16.mxu0 %v1097
        %2053 = vmatmul.mubr.bf16.gmra.mxu0 %v1096
        %v2054 = vpop.f32.mrf.mxu0
        %v2055 = vadd.f32 %v1998, %v2054
        %v2056 = vpop.f32.mrf.mxu0
        %v2057 = vpop.f32.mrf.mxu0
        %v2058 = vadd.f32 %v2001, %v2057
        %v2059 = vpop.f32.mrf.mxu0
        %2060 = vmatprep.mubr.bf16.mxu0 %v1161
        %2061 = vmatmul.mubr.bf16.gmra.mxu0 %v1160
        %v2062 = vpop.f32.mrf.mxu0
        %v2063 = vadd.f32 %v2006, %v2062
        %v2064 = vpop.f32.mrf.mxu0
        %v2065 = vpop.f32.mrf.mxu0
        %v2066 = vadd.f32 %v2009, %v2065
        %v2067 = vpop.f32.mrf.mxu0
        %2068 = vmatprep.mubr.bf16.mxu0 %v1225
        %2069 = vmatmul.mubr.bf16.gmra.mxu0 %v1224
        %v2070 = vpop.f32.mrf.mxu0
        %v2071 = vadd.f32 %v2014, %v2070
        %v2072 = vpop.f32.mrf.mxu0
        %v2073 = vpop.f32.mrf.mxu0
        %v2074 = vadd.f32 %v2017, %v2073
        %v2075 = vpop.f32.mrf.mxu0
        %2076 = vdwg.mxu0
        %2077 = vmatprep.subr.bf16.mxu0 0
        %2078 = vmatpush1.bf16.xpose.msra.mxu0 0
        %2079 = vmatprep.subr.bf16.mxu0 0
        %2080 = vmatpush1.bf16.xpose.msra.mxu0 0
        %2081 = vmatprep.subr.bf16.mxu0 0
        %2082 = vmatpush1.bf16.xpose.msra.mxu0 0
        %2083 = vmatprep.subr.bf16.mxu0 0
        %2084 = vmatpush1.bf16.xpose.msra.mxu0 0
        %2085 = vmatprep.subr.bf16.mxu0 0
        %2086 = vmatpush1.bf16.xpose.msra.mxu0 0
        %2087 = vmatprep.subr.bf16.mxu0 0
        %2088 = vmatpush1.bf16.xpose.msra.mxu0 0
        %2089 = vmatprep.subr.bf16.mxu0 0
        %2090 = vmatpush1.bf16.xpose.msra.mxu0 0
        %2091 = vmatprep.subr.bf16.mxu0 %v1675
        %2092 = vmatpush1.bf16.xpose.msra.mxu0 %v1674
        %2093 = vmatprep.subr.bf16.mxu0 0
        %2094 = vmatpush2.bf16.xpose.msra.mxu0 0
        %2095 = vmatprep.subr.bf16.mxu0 0
        %2096 = vmatpush2.bf16.xpose.msra.mxu0 0
        %2097 = vmatprep.subr.bf16.mxu0 0
        %2098 = vmatpush2.bf16.xpose.msra.mxu0 0
        %2099 = vmatprep.subr.bf16.mxu0 0
        %2100 = vmatpush2.bf16.xpose.msra.mxu0 0
        %2101 = vmatprep.subr.bf16.mxu0 0
        %2102 = vmatpush2.bf16.xpose.msra.mxu0 0
        %2103 = vmatprep.subr.bf16.mxu0 0
        %2104 = vmatpush2.bf16.xpose.msra.mxu0 0
        %2105 = vmatprep.subr.bf16.mxu0 0
        %2106 = vmatpush2.bf16.xpose.msra.mxu0 0
        %2107 = vmatprep.subr.bf16.mxu0 0
        %2108 = vmatpush2.bf16.xpose.msra.mxu0 0
        %2109 = vmatprep.mubr.bf16.mxu0 %v1099
        %2110 = vmatmul.mubr.bf16.gmra.mxu0 %v1098
        %v2111 = vpop.f32.mrf.mxu0
        %v2112 = vadd.f32 %v2055, %v2111
        %v2113 = vpop.f32.mrf.mxu0
        %v2114 = vpop.f32.mrf.mxu0
        %v2115 = vadd.f32 %v2058, %v2114
        %v2116 = vpop.f32.mrf.mxu0
        %2117 = vmatprep.mubr.bf16.mxu0 %v1163
        %2118 = vmatmul.mubr.bf16.gmra.mxu0 %v1162
        %v2119 = vpop.f32.mrf.mxu0
        %v2120 = vadd.f32 %v2063, %v2119
        %v2121 = vpop.f32.mrf.mxu0
        %v2122 = vpop.f32.mrf.mxu0
        %v2123 = vadd.f32 %v2066, %v2122
        %v2124 = vpop.f32.mrf.mxu0
        %2125 = vmatprep.mubr.bf16.mxu0 %v1227
        %2126 = vmatmul.mubr.bf16.gmra.mxu0 %v1226
        %v2127 = vpop.f32.mrf.mxu0
        %v2128 = vadd.f32 %v2071, %v2127
        %v2129 = vpop.f32.mrf.mxu0
        %v2130 = vpop.f32.mrf.mxu0
        %v2131 = vadd.f32 %v2074, %v2130
        %v2132 = vpop.f32.mrf.mxu0
        %2133 = vdwg.mxu0
        %2134 = vmatprep.subr.bf16.mxu0 0
        %2135 = vmatpush1.bf16.xpose.msra.mxu0 0
        %2136 = vmatprep.subr.bf16.mxu0 0
        %2137 = vmatpush1.bf16.xpose.msra.mxu0 0
        %2138 = vmatprep.subr.bf16.mxu0 0
        %2139 = vmatpush1.bf16.xpose.msra.mxu0 0
        %2140 = vmatprep.subr.bf16.mxu0 0
        %2141 = vmatpush1.bf16.xpose.msra.mxu0 0
        %2142 = vmatprep.subr.bf16.mxu0 0
        %2143 = vmatpush1.bf16.xpose.msra.mxu0 0
        %2144 = vmatprep.subr.bf16.mxu0 0
        %2145 = vmatpush1.bf16.xpose.msra.mxu0 0
        %2146 = vmatprep.subr.bf16.mxu0 0
        %2147 = vmatpush1.bf16.xpose.msra.mxu0 0
        %2148 = vmatprep.subr.bf16.mxu0 %v1677
        %2149 = vmatpush1.bf16.xpose.msra.mxu0 %v1676
        %2150 = vmatprep.subr.bf16.mxu0 0
        %2151 = vmatpush2.bf16.xpose.msra.mxu0 0
        %2152 = vmatprep.subr.bf16.mxu0 0
        %2153 = vmatpush2.bf16.xpose.msra.mxu0 0
        %2154 = vmatprep.subr.bf16.mxu0 0
        %2155 = vmatpush2.bf16.xpose.msra.mxu0 0
        %2156 = vmatprep.subr.bf16.mxu0 0
        %2157 = vmatpush2.bf16.xpose.msra.mxu0 0
        %2158 = vmatprep.subr.bf16.mxu0 0
        %2159 = vmatpush2.bf16.xpose.msra.mxu0 0
        %2160 = vmatprep.subr.bf16.mxu0 0
        %2161 = vmatpush2.bf16.xpose.msra.mxu0 0
        %2162 = vmatprep.subr.bf16.mxu0 0
        %2163 = vmatpush2.bf16.xpose.msra.mxu0 0
        %2164 = vmatprep.subr.bf16.mxu0 0
        %2165 = vmatpush2.bf16.xpose.msra.mxu0 0
        %2166 = vmatprep.mubr.bf16.mxu0 %v1101
        %2167 = vmatmul.mubr.bf16.gmra.mxu0 %v1100
        %v2168 = vpop.f32.mrf.mxu0
        %v2169 = vadd.f32 %v2112, %v2168
        %v2170 = vpop.f32.mrf.mxu0
        %v2171 = vpop.f32.mrf.mxu0
        %v2172 = vadd.f32 %v2115, %v2171
        %v2173 = vpop.f32.mrf.mxu0
        %2174 = vmatprep.mubr.bf16.mxu0 %v1165
        %2175 = vmatmul.mubr.bf16.gmra.mxu0 %v1164
        %v2176 = vpop.f32.mrf.mxu0
        %v2177 = vadd.f32 %v2120, %v2176
        %v2178 = vpop.f32.mrf.mxu0
        %v2179 = vpop.f32.mrf.mxu0
        %v2180 = vadd.f32 %v2123, %v2179
        %v2181 = vpop.f32.mrf.mxu0
        %2182 = vmatprep.mubr.bf16.mxu0 %v1229
        %2183 = vmatmul.mubr.bf16.gmra.mxu0 %v1228
        %v2184 = vpop.f32.mrf.mxu0
        %v2185 = vadd.f32 %v2128, %v2184
        %v2186 = vpop.f32.mrf.mxu0
        %v2187 = vpop.f32.mrf.mxu0
        %v2188 = vadd.f32 %v2131, %v2187
        %v2189 = vpop.f32.mrf.mxu0
        %2190 = vdwg.mxu0
        %2191 = vmatprep.subr.bf16.mxu0 0
        %2192 = vmatpush1.bf16.xpose.msra.mxu0 0
        %2193 = vmatprep.subr.bf16.mxu0 0
        %2194 = vmatpush1.bf16.xpose.msra.mxu0 0
        %2195 = vmatprep.subr.bf16.mxu0 0
        %2196 = vmatpush1.bf16.xpose.msra.mxu0 0
        %2197 = vmatprep.subr.bf16.mxu0 0
        %2198 = vmatpush1.bf16.xpose.msra.mxu0 0
        %2199 = vmatprep.subr.bf16.mxu0 0
        %2200 = vmatpush1.bf16.xpose.msra.mxu0 0
        %2201 = vmatprep.subr.bf16.mxu0 0
        %2202 = vmatpush1.bf16.xpose.msra.mxu0 0
        %2203 = vmatprep.subr.bf16.mxu0 0
        %2204 = vmatpush1.bf16.xpose.msra.mxu0 0
        %2205 = vmatprep.subr.bf16.mxu0 %v1679
        %2206 = vmatpush1.bf16.xpose.msra.mxu0 %v1678
        %2207 = vmatprep.subr.bf16.mxu0 0
        %2208 = vmatpush2.bf16.xpose.msra.mxu0 0
        %2209 = vmatprep.subr.bf16.mxu0 0
        %2210 = vmatpush2.bf16.xpose.msra.mxu0 0
        %2211 = vmatprep.subr.bf16.mxu0 0
        %2212 = vmatpush2.bf16.xpose.msra.mxu0 0
        %2213 = vmatprep.subr.bf16.mxu0 0
        %2214 = vmatpush2.bf16.xpose.msra.mxu0 0
        %2215 = vmatprep.subr.bf16.mxu0 0
        %2216 = vmatpush2.bf16.xpose.msra.mxu0 0
        %2217 = vmatprep.subr.bf16.mxu0 0
        %2218 = vmatpush2.bf16.xpose.msra.mxu0 0
        %2219 = vmatprep.subr.bf16.mxu0 0
        %2220 = vmatpush2.bf16.xpose.msra.mxu0 0
        %2221 = vmatprep.subr.bf16.mxu0 0
        %2222 = vmatpush2.bf16.xpose.msra.mxu0 0
        %2223 = vmatprep.mubr.bf16.mxu0 %v1103
        %2224 = vmatmul.mubr.bf16.gmra.mxu0 %v1102
        %v2225 = vpop.f32.mrf.mxu0
        %v2226 = vadd.f32 %v2169, %v2225
        %v2227 = vpop.f32.mrf.mxu0
        %v2228 = vpop.f32.mrf.mxu0
        %v2229 = vadd.f32 %v2172, %v2228
        %v2230 = vpop.f32.mrf.mxu0
        %2231 = vmatprep.mubr.bf16.mxu0 %v1167
        %2232 = vmatmul.mubr.bf16.gmra.mxu0 %v1166
        %v2233 = vpop.f32.mrf.mxu0
        %v2234 = vadd.f32 %v2177, %v2233
        %v2235 = vpop.f32.mrf.mxu0
        %v2236 = vpop.f32.mrf.mxu0
        %v2237 = vadd.f32 %v2180, %v2236
        %v2238 = vpop.f32.mrf.mxu0
        %2239 = vmatprep.mubr.bf16.mxu0 %v1231
        %2240 = vmatmul.mubr.bf16.gmra.mxu0 %v1230
        %v2241 = vpop.f32.mrf.mxu0
        %v2242 = vadd.f32 %v2185, %v2241
        %v2243 = vpop.f32.mrf.mxu0
        %v2244 = vpop.f32.mrf.mxu0
        %v2245 = vadd.f32 %v2188, %v2244
        %v2246 = vpop.f32.mrf.mxu0
        %2247 = vdwg.mxu0
        %2248 = vmatprep.subr.bf16.mxu0 0
        %2249 = vmatpush1.bf16.xpose.msra.mxu0 0
        %2250 = vmatprep.subr.bf16.mxu0 0
        %2251 = vmatpush1.bf16.xpose.msra.mxu0 0
        %2252 = vmatprep.subr.bf16.mxu0 0
        %2253 = vmatpush1.bf16.xpose.msra.mxu0 0
        %2254 = vmatprep.subr.bf16.mxu0 0
        %2255 = vmatpush1.bf16.xpose.msra.mxu0 0
        %2256 = vmatprep.subr.bf16.mxu0 0
        %2257 = vmatpush1.bf16.xpose.msra.mxu0 0
        %2258 = vmatprep.subr.bf16.mxu0 0
        %2259 = vmatpush1.bf16.xpose.msra.mxu0 0
        %2260 = vmatprep.subr.bf16.mxu0 0
        %2261 = vmatpush1.bf16.xpose.msra.mxu0 0
        %2262 = vmatprep.subr.bf16.mxu0 %v1681
        %2263 = vmatpush1.bf16.xpose.msra.mxu0 %v1680
        %2264 = vmatprep.subr.bf16.mxu0 0
        %2265 = vmatpush2.bf16.xpose.msra.mxu0 0
        %2266 = vmatprep.subr.bf16.mxu0 0
        %2267 = vmatpush2.bf16.xpose.msra.mxu0 0
        %2268 = vmatprep.subr.bf16.mxu0 0
        %2269 = vmatpush2.bf16.xpose.msra.mxu0 0
        %2270 = vmatprep.subr.bf16.mxu0 0
        %2271 = vmatpush2.bf16.xpose.msra.mxu0 0
        %2272 = vmatprep.subr.bf16.mxu0 0
        %2273 = vmatpush2.bf16.xpose.msra.mxu0 0
        %2274 = vmatprep.subr.bf16.mxu0 0
        %2275 = vmatpush2.bf16.xpose.msra.mxu0 0
        %2276 = vmatprep.subr.bf16.mxu0 0
        %2277 = vmatpush2.bf16.xpose.msra.mxu0 0
        %2278 = vmatprep.subr.bf16.mxu0 0
        %2279 = vmatpush2.bf16.xpose.msra.mxu0 0
        %2280 = vmatprep.mubr.bf16.mxu0 %v1105
        %2281 = vmatmul.mubr.bf16.gmra.mxu0 %v1104
        %v2282 = vpop.f32.mrf.mxu0
        %v2283 = vadd.f32 %v2226, %v2282
        %v2284 = vpop.f32.mrf.mxu0
        %v2285 = vpop.f32.mrf.mxu0
        %v2286 = vadd.f32 %v2229, %v2285
        %v2287 = vpop.f32.mrf.mxu0
        %2288 = vmatprep.mubr.bf16.mxu0 %v1169
        %2289 = vmatmul.mubr.bf16.gmra.mxu0 %v1168
        %v2290 = vpop.f32.mrf.mxu0
        %v2291 = vadd.f32 %v2234, %v2290
        %v2292 = vpop.f32.mrf.mxu0
        %v2293 = vpop.f32.mrf.mxu0
        %v2294 = vadd.f32 %v2237, %v2293
        %v2295 = vpop.f32.mrf.mxu0
        %2296 = vmatprep.mubr.bf16.mxu0 %v1233
        %2297 = vmatmul.mubr.bf16.gmra.mxu0 %v1232
        %v2298 = vpop.f32.mrf.mxu0
        %v2299 = vadd.f32 %v2242, %v2298
        %v2300 = vpop.f32.mrf.mxu0
        %v2301 = vpop.f32.mrf.mxu0
        %v2302 = vadd.f32 %v2245, %v2301
        %v2303 = vpop.f32.mrf.mxu0
        %2304 = vdwg.mxu0
        %2305 = vmatprep.subr.bf16.mxu0 0
        %2306 = vmatpush1.bf16.xpose.msra.mxu0 0
        %2307 = vmatprep.subr.bf16.mxu0 0
        %2308 = vmatpush1.bf16.xpose.msra.mxu0 0
        %2309 = vmatprep.subr.bf16.mxu0 0
        %2310 = vmatpush1.bf16.xpose.msra.mxu0 0
        %2311 = vmatprep.subr.bf16.mxu0 0
        %2312 = vmatpush1.bf16.xpose.msra.mxu0 0
        %2313 = vmatprep.subr.bf16.mxu0 0
        %2314 = vmatpush1.bf16.xpose.msra.mxu0 0
        %2315 = vmatprep.subr.bf16.mxu0 0
        %2316 = vmatpush1.bf16.xpose.msra.mxu0 0
        %2317 = vmatprep.subr.bf16.mxu0 0
        %2318 = vmatpush1.bf16.xpose.msra.mxu0 0
        %2319 = vmatprep.subr.bf16.mxu0 %v1683
        %2320 = vmatpush1.bf16.xpose.msra.mxu0 %v1682
        %2321 = vmatprep.subr.bf16.mxu0 0
        %2322 = vmatpush2.bf16.xpose.msra.mxu0 0
        %2323 = vmatprep.subr.bf16.mxu0 0
        %2324 = vmatpush2.bf16.xpose.msra.mxu0 0
        %2325 = vmatprep.subr.bf16.mxu0 0
        %2326 = vmatpush2.bf16.xpose.msra.mxu0 0
        %2327 = vmatprep.subr.bf16.mxu0 0
        %2328 = vmatpush2.bf16.xpose.msra.mxu0 0
        %2329 = vmatprep.subr.bf16.mxu0 0
        %2330 = vmatpush2.bf16.xpose.msra.mxu0 0
        %2331 = vmatprep.subr.bf16.mxu0 0
        %2332 = vmatpush2.bf16.xpose.msra.mxu0 0
        %2333 = vmatprep.subr.bf16.mxu0 0
        %2334 = vmatpush2.bf16.xpose.msra.mxu0 0
        %2335 = vmatprep.subr.bf16.mxu0 0
        %2336 = vmatpush2.bf16.xpose.msra.mxu0 0
        %2337 = vmatprep.mubr.bf16.mxu0 %v1107
        %2338 = vmatmul.mubr.bf16.gmra.mxu0 %v1106
        %v2339 = vpop.f32.mrf.mxu0
        %v2340 = vadd.f32 %v2283, %v2339
        %v2341 = vpop.f32.mrf.mxu0
        %v2342 = vpop.f32.mrf.mxu0
        %v2343 = vadd.f32 %v2286, %v2342
        %v2344 = vpop.f32.mrf.mxu0
        %2345 = vmatprep.mubr.bf16.mxu0 %v1171
        %2346 = vmatmul.mubr.bf16.gmra.mxu0 %v1170
        %v2347 = vpop.f32.mrf.mxu0
        %v2348 = vadd.f32 %v2291, %v2347
        %v2349 = vpop.f32.mrf.mxu0
        %v2350 = vpop.f32.mrf.mxu0
        %v2351 = vadd.f32 %v2294, %v2350
        %v2352 = vpop.f32.mrf.mxu0
        %2353 = vmatprep.mubr.bf16.mxu0 %v1235
        %2354 = vmatmul.mubr.bf16.gmra.mxu0 %v1234
        %v2355 = vpop.f32.mrf.mxu0
        %v2356 = vadd.f32 %v2299, %v2355
        %v2357 = vpop.f32.mrf.mxu0
        %v2358 = vpop.f32.mrf.mxu0
        %v2359 = vadd.f32 %v2302, %v2358
        %v2360 = vpop.f32.mrf.mxu0
        %2361 = vdwg.mxu0
        %2362 = vmatprep.subr.bf16.mxu0 0
        %2363 = vmatpush1.bf16.xpose.msra.mxu0 0
        %2364 = vmatprep.subr.bf16.mxu0 0
        %2365 = vmatpush1.bf16.xpose.msra.mxu0 0
        %2366 = vmatprep.subr.bf16.mxu0 0
        %2367 = vmatpush1.bf16.xpose.msra.mxu0 0
        %2368 = vmatprep.subr.bf16.mxu0 0
        %2369 = vmatpush1.bf16.xpose.msra.mxu0 0
        %2370 = vmatprep.subr.bf16.mxu0 0
        %2371 = vmatpush1.bf16.xpose.msra.mxu0 0
        %2372 = vmatprep.subr.bf16.mxu0 0
        %2373 = vmatpush1.bf16.xpose.msra.mxu0 0
        %2374 = vmatprep.subr.bf16.mxu0 0
        %2375 = vmatpush1.bf16.xpose.msra.mxu0 0
        %2376 = vmatprep.subr.bf16.mxu0 %v1685
        %2377 = vmatpush1.bf16.xpose.msra.mxu0 %v1684
        %2378 = vmatprep.subr.bf16.mxu0 0
        %2379 = vmatpush2.bf16.xpose.msra.mxu0 0
        %2380 = vmatprep.subr.bf16.mxu0 0
        %2381 = vmatpush2.bf16.xpose.msra.mxu0 0
        %2382 = vmatprep.subr.bf16.mxu0 0
        %2383 = vmatpush2.bf16.xpose.msra.mxu0 0
        %2384 = vmatprep.subr.bf16.mxu0 0
        %2385 = vmatpush2.bf16.xpose.msra.mxu0 0
        %2386 = vmatprep.subr.bf16.mxu0 0
        %2387 = vmatpush2.bf16.xpose.msra.mxu0 0
        %2388 = vmatprep.subr.bf16.mxu0 0
        %2389 = vmatpush2.bf16.xpose.msra.mxu0 0
        %2390 = vmatprep.subr.bf16.mxu0 0
        %2391 = vmatpush2.bf16.xpose.msra.mxu0 0
        %2392 = vmatprep.subr.bf16.mxu0 0
        %2393 = vmatpush2.bf16.xpose.msra.mxu0 0
        %2394 = vmatprep.mubr.bf16.mxu0 %v1109
        %2395 = vmatmul.mubr.bf16.gmra.mxu0 %v1108
        %v2396 = vpop.f32.mrf.mxu0
        %v2397 = vadd.f32 %v2340, %v2396
        %v2398 = vpop.f32.mrf.mxu0
        %v2399 = vpop.f32.mrf.mxu0
        %v2400 = vadd.f32 %v2343, %v2399
        %v2401 = vpop.f32.mrf.mxu0
        %2402 = vmatprep.mubr.bf16.mxu0 %v1173
        %2403 = vmatmul.mubr.bf16.gmra.mxu0 %v1172
        %v2404 = vpop.f32.mrf.mxu0
        %v2405 = vadd.f32 %v2348, %v2404
        %v2406 = vpop.f32.mrf.mxu0
        %v2407 = vpop.f32.mrf.mxu0
        %v2408 = vadd.f32 %v2351, %v2407
        %v2409 = vpop.f32.mrf.mxu0
        %2410 = vmatprep.mubr.bf16.mxu0 %v1237
        %2411 = vmatmul.mubr.bf16.gmra.mxu0 %v1236
        %v2412 = vpop.f32.mrf.mxu0
        %v2413 = vadd.f32 %v2356, %v2412
        %v2414 = vpop.f32.mrf.mxu0
        %v2415 = vpop.f32.mrf.mxu0
        %v2416 = vadd.f32 %v2359, %v2415
        %v2417 = vpop.f32.mrf.mxu0
        %2418 = vdwg.mxu0
        %2419 = vmatprep.subr.bf16.mxu0 0
        %2420 = vmatpush1.bf16.xpose.msra.mxu0 0
        %2421 = vmatprep.subr.bf16.mxu0 0
        %2422 = vmatpush1.bf16.xpose.msra.mxu0 0
        %2423 = vmatprep.subr.bf16.mxu0 0
        %2424 = vmatpush1.bf16.xpose.msra.mxu0 0
        %2425 = vmatprep.subr.bf16.mxu0 0
        %2426 = vmatpush1.bf16.xpose.msra.mxu0 0
        %2427 = vmatprep.subr.bf16.mxu0 0
        %2428 = vmatpush1.bf16.xpose.msra.mxu0 0
        %2429 = vmatprep.subr.bf16.mxu0 0
        %2430 = vmatpush1.bf16.xpose.msra.mxu0 0
        %2431 = vmatprep.subr.bf16.mxu0 0
        %2432 = vmatpush1.bf16.xpose.msra.mxu0 0
        %2433 = vmatprep.subr.bf16.mxu0 %v1687
        %2434 = vmatpush1.bf16.xpose.msra.mxu0 %v1686
        %2435 = vmatprep.subr.bf16.mxu0 0
        %2436 = vmatpush2.bf16.xpose.msra.mxu0 0
        %2437 = vmatprep.subr.bf16.mxu0 0
        %2438 = vmatpush2.bf16.xpose.msra.mxu0 0
        %2439 = vmatprep.subr.bf16.mxu0 0
        %2440 = vmatpush2.bf16.xpose.msra.mxu0 0
        %2441 = vmatprep.subr.bf16.mxu0 0
        %2442 = vmatpush2.bf16.xpose.msra.mxu0 0
        %2443 = vmatprep.subr.bf16.mxu0 0
        %2444 = vmatpush2.bf16.xpose.msra.mxu0 0
        %2445 = vmatprep.subr.bf16.mxu0 0
        %2446 = vmatpush2.bf16.xpose.msra.mxu0 0
        %2447 = vmatprep.subr.bf16.mxu0 0
        %2448 = vmatpush2.bf16.xpose.msra.mxu0 0
        %2449 = vmatprep.subr.bf16.mxu0 0
        %2450 = vmatpush2.bf16.xpose.msra.mxu0 0
        %2451 = vmatprep.mubr.bf16.mxu0 %v1111
        %2452 = vmatmul.mubr.bf16.gmra.mxu0 %v1110
        %v2453 = vpop.f32.mrf.mxu0
        %v2454 = vadd.f32 %v2397, %v2453
        %v2455 = vpop.f32.mrf.mxu0
        %v2456 = vpop.f32.mrf.mxu0
        %v2457 = vadd.f32 %v2400, %v2456
        %v2458 = vpop.f32.mrf.mxu0
        %2459 = vmatprep.mubr.bf16.mxu0 %v1175
        %2460 = vmatmul.mubr.bf16.gmra.mxu0 %v1174
        %v2461 = vpop.f32.mrf.mxu0
        %v2462 = vadd.f32 %v2405, %v2461
        %v2463 = vpop.f32.mrf.mxu0
        %v2464 = vpop.f32.mrf.mxu0
        %v2465 = vadd.f32 %v2408, %v2464
        %v2466 = vpop.f32.mrf.mxu0
        %2467 = vmatprep.mubr.bf16.mxu0 %v1239
        %2468 = vmatmul.mubr.bf16.gmra.mxu0 %v1238
        %v2469 = vpop.f32.mrf.mxu0
        %v2470 = vadd.f32 %v2413, %v2469
        %v2471 = vpop.f32.mrf.mxu0
        %v2472 = vpop.f32.mrf.mxu0
        %v2473 = vadd.f32 %v2416, %v2472
        %v2474 = vpop.f32.mrf.mxu0
        %2475 = vdwg.mxu0
        %2476 = vmatprep.subr.bf16.mxu0 0
        %2477 = vmatpush1.bf16.xpose.msra.mxu0 0
        %2478 = vmatprep.subr.bf16.mxu0 0
        %2479 = vmatpush1.bf16.xpose.msra.mxu0 0
        %2480 = vmatprep.subr.bf16.mxu0 0
        %2481 = vmatpush1.bf16.xpose.msra.mxu0 0
        %2482 = vmatprep.subr.bf16.mxu0 0
        %2483 = vmatpush1.bf16.xpose.msra.mxu0 0
        %2484 = vmatprep.subr.bf16.mxu0 0
        %2485 = vmatpush1.bf16.xpose.msra.mxu0 0
        %2486 = vmatprep.subr.bf16.mxu0 0
        %2487 = vmatpush1.bf16.xpose.msra.mxu0 0
        %2488 = vmatprep.subr.bf16.mxu0 0
        %2489 = vmatpush1.bf16.xpose.msra.mxu0 0
        %2490 = vmatprep.subr.bf16.mxu0 %v1689
        %2491 = vmatpush1.bf16.xpose.msra.mxu0 %v1688
        %2492 = vmatprep.subr.bf16.mxu0 0
        %2493 = vmatpush2.bf16.xpose.msra.mxu0 0
        %2494 = vmatprep.subr.bf16.mxu0 0
        %2495 = vmatpush2.bf16.xpose.msra.mxu0 0
        %2496 = vmatprep.subr.bf16.mxu0 0
        %2497 = vmatpush2.bf16.xpose.msra.mxu0 0
        %2498 = vmatprep.subr.bf16.mxu0 0
        %2499 = vmatpush2.bf16.xpose.msra.mxu0 0
        %2500 = vmatprep.subr.bf16.mxu0 0
        %2501 = vmatpush2.bf16.xpose.msra.mxu0 0
        %2502 = vmatprep.subr.bf16.mxu0 0
        %2503 = vmatpush2.bf16.xpose.msra.mxu0 0
        %2504 = vmatprep.subr.bf16.mxu0 0
        %2505 = vmatpush2.bf16.xpose.msra.mxu0 0
        %2506 = vmatprep.subr.bf16.mxu0 0
        %2507 = vmatpush2.bf16.xpose.msra.mxu0 0
        %2508 = vmatprep.mubr.bf16.mxu0 %v1113
        %2509 = vmatmul.mubr.bf16.gmra.mxu0 %v1112
        %v2510 = vpop.f32.mrf.mxu0
        %v2511 = vadd.f32 %v2454, %v2510
        %v2512 = vpop.f32.mrf.mxu0
        %v2513 = vpop.f32.mrf.mxu0
        %v2514 = vadd.f32 %v2457, %v2513
        %v2515 = vpop.f32.mrf.mxu0
        %2516 = vmatprep.mubr.bf16.mxu0 %v1177
        %2517 = vmatmul.mubr.bf16.gmra.mxu0 %v1176
        %v2518 = vpop.f32.mrf.mxu0
        %v2519 = vadd.f32 %v2462, %v2518
        %v2520 = vpop.f32.mrf.mxu0
        %v2521 = vpop.f32.mrf.mxu0
        %v2522 = vadd.f32 %v2465, %v2521
        %v2523 = vpop.f32.mrf.mxu0
        %2524 = vmatprep.mubr.bf16.mxu0 %v1241
        %2525 = vmatmul.mubr.bf16.gmra.mxu0 %v1240
        %v2526 = vpop.f32.mrf.mxu0
        %v2527 = vadd.f32 %v2470, %v2526
        %v2528 = vpop.f32.mrf.mxu0
        %v2529 = vpop.f32.mrf.mxu0
        %v2530 = vadd.f32 %v2473, %v2529
        %v2531 = vpop.f32.mrf.mxu0
        %2532 = vdwg.mxu0
        %2533 = vmatprep.subr.bf16.mxu0 0
        %2534 = vmatpush1.bf16.xpose.msra.mxu0 0
        %2535 = vmatprep.subr.bf16.mxu0 0
        %2536 = vmatpush1.bf16.xpose.msra.mxu0 0
        %2537 = vmatprep.subr.bf16.mxu0 0
        %2538 = vmatpush1.bf16.xpose.msra.mxu0 0
        %2539 = vmatprep.subr.bf16.mxu0 0
        %2540 = vmatpush1.bf16.xpose.msra.mxu0 0
        %2541 = vmatprep.subr.bf16.mxu0 0
        %2542 = vmatpush1.bf16.xpose.msra.mxu0 0
        %2543 = vmatprep.subr.bf16.mxu0 0
        %2544 = vmatpush1.bf16.xpose.msra.mxu0 0
        %2545 = vmatprep.subr.bf16.mxu0 0
        %2546 = vmatpush1.bf16.xpose.msra.mxu0 0
        %2547 = vmatprep.subr.bf16.mxu0 %v1691
        %2548 = vmatpush1.bf16.xpose.msra.mxu0 %v1690
        %2549 = vmatprep.subr.bf16.mxu0 0
        %2550 = vmatpush2.bf16.xpose.msra.mxu0 0
        %2551 = vmatprep.subr.bf16.mxu0 0
        %2552 = vmatpush2.bf16.xpose.msra.mxu0 0
        %2553 = vmatprep.subr.bf16.mxu0 0
        %2554 = vmatpush2.bf16.xpose.msra.mxu0 0
        %2555 = vmatprep.subr.bf16.mxu0 0
        %2556 = vmatpush2.bf16.xpose.msra.mxu0 0
        %2557 = vmatprep.subr.bf16.mxu0 0
        %2558 = vmatpush2.bf16.xpose.msra.mxu0 0
        %2559 = vmatprep.subr.bf16.mxu0 0
        %2560 = vmatpush2.bf16.xpose.msra.mxu0 0
        %2561 = vmatprep.subr.bf16.mxu0 0
        %2562 = vmatpush2.bf16.xpose.msra.mxu0 0
        %2563 = vmatprep.subr.bf16.mxu0 0
        %2564 = vmatpush2.bf16.xpose.msra.mxu0 0
        %2565 = vmatprep.mubr.bf16.mxu0 %v1115
        %2566 = vmatmul.mubr.bf16.gmra.mxu0 %v1114
        %v2567 = vpop.f32.mrf.mxu0
        %v2568 = vadd.f32 %v2511, %v2567
        %v2569 = vpop.f32.mrf.mxu0
        %v2570 = vpop.f32.mrf.mxu0
        %v2571 = vadd.f32 %v2514, %v2570
        %v2572 = vpop.f32.mrf.mxu0
        %2573 = vmatprep.mubr.bf16.mxu0 %v1179
        %2574 = vmatmul.mubr.bf16.gmra.mxu0 %v1178
        %v2575 = vpop.f32.mrf.mxu0
        %v2576 = vadd.f32 %v2519, %v2575
        %v2577 = vpop.f32.mrf.mxu0
        %v2578 = vpop.f32.mrf.mxu0
        %v2579 = vadd.f32 %v2522, %v2578
        %v2580 = vpop.f32.mrf.mxu0
        %2581 = vmatprep.mubr.bf16.mxu0 %v1243
        %2582 = vmatmul.mubr.bf16.gmra.mxu0 %v1242
        %v2583 = vpop.f32.mrf.mxu0
        %v2584 = vadd.f32 %v2527, %v2583
        %v2585 = vpop.f32.mrf.mxu0
        %v2586 = vpop.f32.mrf.mxu0
        %v2587 = vadd.f32 %v2530, %v2586
        %v2588 = vpop.f32.mrf.mxu0
        %2589 = vdwg.mxu0
        %2590 = vmatprep.subr.bf16.mxu0 0
        %2591 = vmatpush1.bf16.xpose.msra.mxu0 0
        %2592 = vmatprep.subr.bf16.mxu0 0
        %2593 = vmatpush1.bf16.xpose.msra.mxu0 0
        %2594 = vmatprep.subr.bf16.mxu0 0
        %2595 = vmatpush1.bf16.xpose.msra.mxu0 0
        %2596 = vmatprep.subr.bf16.mxu0 0
        %2597 = vmatpush1.bf16.xpose.msra.mxu0 0
        %2598 = vmatprep.subr.bf16.mxu0 0
        %2599 = vmatpush1.bf16.xpose.msra.mxu0 0
        %2600 = vmatprep.subr.bf16.mxu0 0
        %2601 = vmatpush1.bf16.xpose.msra.mxu0 0
        %2602 = vmatprep.subr.bf16.mxu0 0
        %2603 = vmatpush1.bf16.xpose.msra.mxu0 0
        %2604 = vmatprep.subr.bf16.mxu0 %v1693
        %2605 = vmatpush1.bf16.xpose.msra.mxu0 %v1692
        %2606 = vmatprep.subr.bf16.mxu0 0
        %2607 = vmatpush2.bf16.xpose.msra.mxu0 0
        %2608 = vmatprep.subr.bf16.mxu0 0
        %2609 = vmatpush2.bf16.xpose.msra.mxu0 0
        %2610 = vmatprep.subr.bf16.mxu0 0
        %2611 = vmatpush2.bf16.xpose.msra.mxu0 0
        %2612 = vmatprep.subr.bf16.mxu0 0
        %2613 = vmatpush2.bf16.xpose.msra.mxu0 0
        %2614 = vmatprep.subr.bf16.mxu0 0
        %2615 = vmatpush2.bf16.xpose.msra.mxu0 0
        %2616 = vmatprep.subr.bf16.mxu0 0
        %2617 = vmatpush2.bf16.xpose.msra.mxu0 0
        %2618 = vmatprep.subr.bf16.mxu0 0
        %2619 = vmatpush2.bf16.xpose.msra.mxu0 0
        %2620 = vmatprep.subr.bf16.mxu0 0
        %2621 = vmatpush2.bf16.xpose.msra.mxu0 0
        %2622 = vmatprep.mubr.bf16.mxu0 %v1117
        %2623 = vmatmul.mubr.bf16.gmra.mxu0 %v1116
        %v2624 = vpop.f32.mrf.mxu0
        %v2625 = vadd.f32 %v2568, %v2624
        %v2626 = vpop.f32.mrf.mxu0
        %v2627 = vpop.f32.mrf.mxu0
        %v2628 = vadd.f32 %v2571, %v2627
        %v2629 = vpop.f32.mrf.mxu0
        %2630 = vmatprep.mubr.bf16.mxu0 %v1181
        %2631 = vmatmul.mubr.bf16.gmra.mxu0 %v1180
        %v2632 = vpop.f32.mrf.mxu0
        %v2633 = vadd.f32 %v2576, %v2632
        %v2634 = vpop.f32.mrf.mxu0
        %v2635 = vpop.f32.mrf.mxu0
        %v2636 = vadd.f32 %v2579, %v2635
        %v2637 = vpop.f32.mrf.mxu0
        %2638 = vmatprep.mubr.bf16.mxu0 %v1245
        %2639 = vmatmul.mubr.bf16.gmra.mxu0 %v1244
        %v2640 = vpop.f32.mrf.mxu0
        %v2641 = vadd.f32 %v2584, %v2640
        %v2642 = vpop.f32.mrf.mxu0
        %v2643 = vpop.f32.mrf.mxu0
        %v2644 = vadd.f32 %v2587, %v2643
        %v2645 = vpop.f32.mrf.mxu0
        %2646 = vdwg.mxu0
        %2647 = vmatprep.subr.bf16.mxu0 0
        %2648 = vmatpush1.bf16.xpose.msra.mxu0 0
        %2649 = vmatprep.subr.bf16.mxu0 0
        %2650 = vmatpush1.bf16.xpose.msra.mxu0 0
        %2651 = vmatprep.subr.bf16.mxu0 0
        %2652 = vmatpush1.bf16.xpose.msra.mxu0 0
        %2653 = vmatprep.subr.bf16.mxu0 0
        %2654 = vmatpush1.bf16.xpose.msra.mxu0 0
        %2655 = vmatprep.subr.bf16.mxu0 0
        %2656 = vmatpush1.bf16.xpose.msra.mxu0 0
        %2657 = vmatprep.subr.bf16.mxu0 0
        %2658 = vmatpush1.bf16.xpose.msra.mxu0 0
        %2659 = vmatprep.subr.bf16.mxu0 0
        %2660 = vmatpush1.bf16.xpose.msra.mxu0 0
        %2661 = vmatprep.subr.bf16.mxu0 %v1695
        %2662 = vmatpush1.bf16.xpose.msra.mxu0 %v1694
        %2663 = vmatprep.subr.bf16.mxu0 0
        %2664 = vmatpush2.bf16.xpose.msra.mxu0 0
        %2665 = vmatprep.subr.bf16.mxu0 0
        %2666 = vmatpush2.bf16.xpose.msra.mxu0 0
        %2667 = vmatprep.subr.bf16.mxu0 0
        %2668 = vmatpush2.bf16.xpose.msra.mxu0 0
        %2669 = vmatprep.subr.bf16.mxu0 0
        %2670 = vmatpush2.bf16.xpose.msra.mxu0 0
        %2671 = vmatprep.subr.bf16.mxu0 0
        %2672 = vmatpush2.bf16.xpose.msra.mxu0 0
        %2673 = vmatprep.subr.bf16.mxu0 0
        %2674 = vmatpush2.bf16.xpose.msra.mxu0 0
        %2675 = vmatprep.subr.bf16.mxu0 0
        %2676 = vmatpush2.bf16.xpose.msra.mxu0 0
        %2677 = vmatprep.subr.bf16.mxu0 0
        %2678 = vmatpush2.bf16.xpose.msra.mxu0 0
        %2679 = vmatprep.mubr.bf16.mxu0 %v1119
        %2680 = vmatmul.mubr.bf16.gmra.mxu0 %v1118
        %v2681 = vpop.f32.mrf.mxu0
        %v2682 = vadd.f32 %v2625, %v2681
        %v2683 = vpop.f32.mrf.mxu0
        %v2684 = vpop.f32.mrf.mxu0
        %v2685 = vadd.f32 %v2628, %v2684
        %v2686 = vpop.f32.mrf.mxu0
        %2687 = vmatprep.mubr.bf16.mxu0 %v1183
        %2688 = vmatmul.mubr.bf16.gmra.mxu0 %v1182
        %v2689 = vpop.f32.mrf.mxu0
        %v2690 = vadd.f32 %v2633, %v2689
        %v2691 = vpop.f32.mrf.mxu0
        %v2692 = vpop.f32.mrf.mxu0
        %v2693 = vadd.f32 %v2636, %v2692
        %v2694 = vpop.f32.mrf.mxu0
        %2695 = vmatprep.mubr.bf16.mxu0 %v1247
        %2696 = vmatmul.mubr.bf16.gmra.mxu0 %v1246
        %v2697 = vpop.f32.mrf.mxu0
        %v2698 = vadd.f32 %v2641, %v2697
        %v2699 = vpop.f32.mrf.mxu0
        %v2700 = vpop.f32.mrf.mxu0
        %v2701 = vadd.f32 %v2644, %v2700
        %v2702 = vpop.f32.mrf.mxu0
        %2703 = vdwg.mxu0
        %2704 = vmatprep.subr.bf16.mxu0 0
        %2705 = vmatpush1.bf16.xpose.msra.mxu0 0
        %2706 = vmatprep.subr.bf16.mxu0 0
        %2707 = vmatpush1.bf16.xpose.msra.mxu0 0
        %2708 = vmatprep.subr.bf16.mxu0 0
        %2709 = vmatpush1.bf16.xpose.msra.mxu0 0
        %2710 = vmatprep.subr.bf16.mxu0 0
        %2711 = vmatpush1.bf16.xpose.msra.mxu0 0
        %2712 = vmatprep.subr.bf16.mxu0 0
        %2713 = vmatpush1.bf16.xpose.msra.mxu0 0
        %2714 = vmatprep.subr.bf16.mxu0 0
        %2715 = vmatpush1.bf16.xpose.msra.mxu0 0
        %2716 = vmatprep.subr.bf16.mxu0 0
        %2717 = vmatpush1.bf16.xpose.msra.mxu0 0
        %2718 = vmatprep.subr.bf16.mxu0 %v1697
        %2719 = vmatpush1.bf16.xpose.msra.mxu0 %v1696
        %2720 = vmatprep.subr.bf16.mxu0 0
        %2721 = vmatpush2.bf16.xpose.msra.mxu0 0
        %2722 = vmatprep.subr.bf16.mxu0 0
        %2723 = vmatpush2.bf16.xpose.msra.mxu0 0
        %2724 = vmatprep.subr.bf16.mxu0 0
        %2725 = vmatpush2.bf16.xpose.msra.mxu0 0
        %2726 = vmatprep.subr.bf16.mxu0 0
        %2727 = vmatpush2.bf16.xpose.msra.mxu0 0
        %2728 = vmatprep.subr.bf16.mxu0 0
        %2729 = vmatpush2.bf16.xpose.msra.mxu0 0
        %2730 = vmatprep.subr.bf16.mxu0 0
        %2731 = vmatpush2.bf16.xpose.msra.mxu0 0
        %2732 = vmatprep.subr.bf16.mxu0 0
        %2733 = vmatpush2.bf16.xpose.msra.mxu0 0
        %2734 = vmatprep.subr.bf16.mxu0 0
        %2735 = vmatpush2.bf16.xpose.msra.mxu0 0
        %2736 = vmatprep.mubr.bf16.mxu0 %v1121
        %2737 = vmatmul.mubr.bf16.gmra.mxu0 %v1120
        %v2738 = vpop.f32.mrf.mxu0
        %v2739 = vadd.f32 %v2682, %v2738
        %v2740 = vpop.f32.mrf.mxu0
        %v2741 = vpop.f32.mrf.mxu0
        %v2742 = vadd.f32 %v2685, %v2741
        %v2743 = vpop.f32.mrf.mxu0
        %2744 = vmatprep.mubr.bf16.mxu0 %v1185
        %2745 = vmatmul.mubr.bf16.gmra.mxu0 %v1184
        %v2746 = vpop.f32.mrf.mxu0
        %v2747 = vadd.f32 %v2690, %v2746
        %v2748 = vpop.f32.mrf.mxu0
        %v2749 = vpop.f32.mrf.mxu0
        %v2750 = vadd.f32 %v2693, %v2749
        %v2751 = vpop.f32.mrf.mxu0
        %2752 = vmatprep.mubr.bf16.mxu0 %v1249
        %2753 = vmatmul.mubr.bf16.gmra.mxu0 %v1248
        %v2754 = vpop.f32.mrf.mxu0
        %v2755 = vadd.f32 %v2698, %v2754
        %v2756 = vpop.f32.mrf.mxu0
        %v2757 = vpop.f32.mrf.mxu0
        %v2758 = vadd.f32 %v2701, %v2757
        %v2759 = vpop.f32.mrf.mxu0
        %2760 = vdwg.mxu0
        %2761 = vmatprep.subr.bf16.mxu0 0
        %2762 = vmatpush1.bf16.xpose.msra.mxu0 0
        %2763 = vmatprep.subr.bf16.mxu0 0
        %2764 = vmatpush1.bf16.xpose.msra.mxu0 0
        %2765 = vmatprep.subr.bf16.mxu0 0
        %2766 = vmatpush1.bf16.xpose.msra.mxu0 0
        %2767 = vmatprep.subr.bf16.mxu0 0
        %2768 = vmatpush1.bf16.xpose.msra.mxu0 0
        %2769 = vmatprep.subr.bf16.mxu0 0
        %2770 = vmatpush1.bf16.xpose.msra.mxu0 0
        %2771 = vmatprep.subr.bf16.mxu0 0
        %2772 = vmatpush1.bf16.xpose.msra.mxu0 0
        %2773 = vmatprep.subr.bf16.mxu0 0
        %2774 = vmatpush1.bf16.xpose.msra.mxu0 0
        %2775 = vmatprep.subr.bf16.mxu0 %v1699
        %2776 = vmatpush1.bf16.xpose.msra.mxu0 %v1698
        %2777 = vmatprep.subr.bf16.mxu0 0
        %2778 = vmatpush2.bf16.xpose.msra.mxu0 0
        %2779 = vmatprep.subr.bf16.mxu0 0
        %2780 = vmatpush2.bf16.xpose.msra.mxu0 0
        %2781 = vmatprep.subr.bf16.mxu0 0
        %2782 = vmatpush2.bf16.xpose.msra.mxu0 0
        %2783 = vmatprep.subr.bf16.mxu0 0
        %2784 = vmatpush2.bf16.xpose.msra.mxu0 0
        %2785 = vmatprep.subr.bf16.mxu0 0
        %2786 = vmatpush2.bf16.xpose.msra.mxu0 0
        %2787 = vmatprep.subr.bf16.mxu0 0
        %2788 = vmatpush2.bf16.xpose.msra.mxu0 0
        %2789 = vmatprep.subr.bf16.mxu0 0
        %2790 = vmatpush2.bf16.xpose.msra.mxu0 0
        %2791 = vmatprep.subr.bf16.mxu0 0
        %2792 = vmatpush2.bf16.xpose.msra.mxu0 0
        %2793 = vmatprep.mubr.bf16.mxu0 %v1123
        %2794 = vmatmul.mubr.bf16.gmra.mxu0 %v1122
        %v2795 = vpop.f32.mrf.mxu0
        %v2796 = vadd.f32 %v2739, %v2795
        %v2797 = vpop.f32.mrf.mxu0
        %v2798 = vpop.f32.mrf.mxu0
        %v2799 = vadd.f32 %v2742, %v2798
        %v2800 = vpop.f32.mrf.mxu0
        %2801 = vmatprep.mubr.bf16.mxu0 %v1187
        %2802 = vmatmul.mubr.bf16.gmra.mxu0 %v1186
        %v2803 = vpop.f32.mrf.mxu0
        %v2804 = vadd.f32 %v2747, %v2803
        %v2805 = vpop.f32.mrf.mxu0
        %v2806 = vpop.f32.mrf.mxu0
        %v2807 = vadd.f32 %v2750, %v2806
        %v2808 = vpop.f32.mrf.mxu0
        %2809 = vmatprep.mubr.bf16.mxu0 %v1251
        %2810 = vmatmul.mubr.bf16.gmra.mxu0 %v1250
        %v2811 = vpop.f32.mrf.mxu0
        %v2812 = vadd.f32 %v2755, %v2811
        %v2813 = vpop.f32.mrf.mxu0
        %v2814 = vpop.f32.mrf.mxu0
        %v2815 = vadd.f32 %v2758, %v2814
        %v2816 = vpop.f32.mrf.mxu0
        %2817 = vdwg.mxu0
        %2818 = vmatprep.subr.bf16.mxu0 0
        %2819 = vmatpush1.bf16.xpose.msra.mxu0 0
        %2820 = vmatprep.subr.bf16.mxu0 0
        %2821 = vmatpush1.bf16.xpose.msra.mxu0 0
        %2822 = vmatprep.subr.bf16.mxu0 0
        %2823 = vmatpush1.bf16.xpose.msra.mxu0 0
        %2824 = vmatprep.subr.bf16.mxu0 0
        %2825 = vmatpush1.bf16.xpose.msra.mxu0 0
        %2826 = vmatprep.subr.bf16.mxu0 0
        %2827 = vmatpush1.bf16.xpose.msra.mxu0 0
        %2828 = vmatprep.subr.bf16.mxu0 0
        %2829 = vmatpush1.bf16.xpose.msra.mxu0 0
        %2830 = vmatprep.subr.bf16.mxu0 0
        %2831 = vmatpush1.bf16.xpose.msra.mxu0 0
        %2832 = vmatprep.subr.bf16.mxu0 %v1701
        %2833 = vmatpush1.bf16.xpose.msra.mxu0 %v1700
        %2834 = vmatprep.subr.bf16.mxu0 0
        %2835 = vmatpush2.bf16.xpose.msra.mxu0 0
        %2836 = vmatprep.subr.bf16.mxu0 0
        %2837 = vmatpush2.bf16.xpose.msra.mxu0 0
        %2838 = vmatprep.subr.bf16.mxu0 0
        %2839 = vmatpush2.bf16.xpose.msra.mxu0 0
        %2840 = vmatprep.subr.bf16.mxu0 0
        %2841 = vmatpush2.bf16.xpose.msra.mxu0 0
        %2842 = vmatprep.subr.bf16.mxu0 0
        %2843 = vmatpush2.bf16.xpose.msra.mxu0 0
        %2844 = vmatprep.subr.bf16.mxu0 0
        %2845 = vmatpush2.bf16.xpose.msra.mxu0 0
        %2846 = vmatprep.subr.bf16.mxu0 0
        %2847 = vmatpush2.bf16.xpose.msra.mxu0 0
        %2848 = vmatprep.subr.bf16.mxu0 0
        %2849 = vmatpush2.bf16.xpose.msra.mxu0 0
        %2850 = vmatprep.mubr.bf16.mxu0 %v1125
        %2851 = vmatmul.mubr.bf16.gmra.mxu0 %v1124
        %v2852 = vpop.f32.mrf.mxu0
        %v2853 = vadd.f32 %v2796, %v2852
        %v2854 = vpop.f32.mrf.mxu0
        %v2855 = vpop.f32.mrf.mxu0
        %v2856 = vadd.f32 %v2799, %v2855
        %v2857 = vpop.f32.mrf.mxu0
        %2858 = vmatprep.mubr.bf16.mxu0 %v1189
        %2859 = vmatmul.mubr.bf16.gmra.mxu0 %v1188
        %v2860 = vpop.f32.mrf.mxu0
        %v2861 = vadd.f32 %v2804, %v2860
        %v2862 = vpop.f32.mrf.mxu0
        %v2863 = vpop.f32.mrf.mxu0
        %v2864 = vadd.f32 %v2807, %v2863
        %v2865 = vpop.f32.mrf.mxu0
        %2866 = vmatprep.mubr.bf16.mxu0 %v1253
        %2867 = vmatmul.mubr.bf16.gmra.mxu0 %v1252
        %v2868 = vpop.f32.mrf.mxu0
        %v2869 = vadd.f32 %v2812, %v2868
        %v2870 = vpop.f32.mrf.mxu0
        %v2871 = vpop.f32.mrf.mxu0
        %v2872 = vadd.f32 %v2815, %v2871
        %v2873 = vpop.f32.mrf.mxu0
        %2874 = vdwg.mxu0
        %2875 = vmatprep.subr.bf16.mxu0 0
        %2876 = vmatpush1.bf16.xpose.msra.mxu0 0
        %2877 = vmatprep.subr.bf16.mxu0 0
        %2878 = vmatpush1.bf16.xpose.msra.mxu0 0
        %2879 = vmatprep.subr.bf16.mxu0 0
        %2880 = vmatpush1.bf16.xpose.msra.mxu0 0
        %2881 = vmatprep.subr.bf16.mxu0 0
        %2882 = vmatpush1.bf16.xpose.msra.mxu0 0
        %2883 = vmatprep.subr.bf16.mxu0 0
        %2884 = vmatpush1.bf16.xpose.msra.mxu0 0
        %2885 = vmatprep.subr.bf16.mxu0 0
        %2886 = vmatpush1.bf16.xpose.msra.mxu0 0
        %2887 = vmatprep.subr.bf16.mxu0 0
        %2888 = vmatpush1.bf16.xpose.msra.mxu0 0
        %2889 = vmatprep.subr.bf16.mxu0 %v1703
        %2890 = vmatpush1.bf16.xpose.msra.mxu0 %v1702
        %2891 = vmatprep.subr.bf16.mxu0 0
        %2892 = vmatpush2.bf16.xpose.msra.mxu0 0
        %2893 = vmatprep.subr.bf16.mxu0 0
        %2894 = vmatpush2.bf16.xpose.msra.mxu0 0
        %2895 = vmatprep.subr.bf16.mxu0 0
        %2896 = vmatpush2.bf16.xpose.msra.mxu0 0
        %2897 = vmatprep.subr.bf16.mxu0 0
        %2898 = vmatpush2.bf16.xpose.msra.mxu0 0
        %2899 = vmatprep.subr.bf16.mxu0 0
        %2900 = vmatpush2.bf16.xpose.msra.mxu0 0
        %2901 = vmatprep.subr.bf16.mxu0 0
        %2902 = vmatpush2.bf16.xpose.msra.mxu0 0
        %2903 = vmatprep.subr.bf16.mxu0 0
        %2904 = vmatpush2.bf16.xpose.msra.mxu0 0
        %2905 = vmatprep.subr.bf16.mxu0 0
        %2906 = vmatpush2.bf16.xpose.msra.mxu0 0
        %2907 = vmatprep.mubr.bf16.mxu0 %v1127
        %2908 = vmatmul.mubr.bf16.gmra.mxu0 %v1126
        %v2909 = vpop.f32.mrf.mxu0
        %v2910 = vadd.f32 %v2853, %v2909
        %v2911 = vpop.f32.mrf.mxu0
        %v2912 = vpop.f32.mrf.mxu0
        %v2913 = vadd.f32 %v2856, %v2912
        %v2914 = vpop.f32.mrf.mxu0
        %2915 = vmatprep.mubr.bf16.mxu0 %v1191
        %2916 = vmatmul.mubr.bf16.gmra.mxu0 %v1190
        %v2917 = vpop.f32.mrf.mxu0
        %v2918 = vadd.f32 %v2861, %v2917
        %v2919 = vpop.f32.mrf.mxu0
        %v2920 = vpop.f32.mrf.mxu0
        %v2921 = vadd.f32 %v2864, %v2920
        %v2922 = vpop.f32.mrf.mxu0
        %2923 = vmatprep.mubr.bf16.mxu0 %v1255
        %2924 = vmatmul.mubr.bf16.gmra.mxu0 %v1254
        %v2925 = vpop.f32.mrf.mxu0
        %v2926 = vadd.f32 %v2869, %v2925
        %v2927 = vpop.f32.mrf.mxu0
        %v2928 = vpop.f32.mrf.mxu0
        %v2929 = vadd.f32 %v2872, %v2928
        %v2930 = vpop.f32.mrf.mxu0
        %2931 = vdwg.mxu0
        %2932 = vmatprep.subr.bf16.mxu0 0
        %2933 = vmatpush1.bf16.xpose.msra.mxu0 0
        %2934 = vmatprep.subr.bf16.mxu0 0
        %2935 = vmatpush1.bf16.xpose.msra.mxu0 0
        %2936 = vmatprep.subr.bf16.mxu0 0
        %2937 = vmatpush1.bf16.xpose.msra.mxu0 0
        %2938 = vmatprep.subr.bf16.mxu0 0
        %2939 = vmatpush1.bf16.xpose.msra.mxu0 0
        %2940 = vmatprep.subr.bf16.mxu0 0
        %2941 = vmatpush1.bf16.xpose.msra.mxu0 0
        %2942 = vmatprep.subr.bf16.mxu0 0
        %2943 = vmatpush1.bf16.xpose.msra.mxu0 0
        %2944 = vmatprep.subr.bf16.mxu0 0
        %2945 = vmatpush1.bf16.xpose.msra.mxu0 0
        %2946 = vmatprep.subr.bf16.mxu0 %v1705
        %2947 = vmatpush1.bf16.xpose.msra.mxu0 %v1704
        %2948 = vmatprep.subr.bf16.mxu0 0
        %2949 = vmatpush2.bf16.xpose.msra.mxu0 0
        %2950 = vmatprep.subr.bf16.mxu0 0
        %2951 = vmatpush2.bf16.xpose.msra.mxu0 0
        %2952 = vmatprep.subr.bf16.mxu0 0
        %2953 = vmatpush2.bf16.xpose.msra.mxu0 0
        %2954 = vmatprep.subr.bf16.mxu0 0
        %2955 = vmatpush2.bf16.xpose.msra.mxu0 0
        %2956 = vmatprep.subr.bf16.mxu0 0
        %2957 = vmatpush2.bf16.xpose.msra.mxu0 0
        %2958 = vmatprep.subr.bf16.mxu0 0
        %2959 = vmatpush2.bf16.xpose.msra.mxu0 0
        %2960 = vmatprep.subr.bf16.mxu0 0
        %2961 = vmatpush2.bf16.xpose.msra.mxu0 0
        %2962 = vmatprep.subr.bf16.mxu0 0
        %2963 = vmatpush2.bf16.xpose.msra.mxu0 0
        %2964 = vmatprep.mubr.bf16.mxu0 %v1129
        %2965 = vmatmul.mubr.bf16.gmra.mxu0 %v1128
        %v2966 = vpop.f32.mrf.mxu0
        %v2967 = vadd.f32 %v2910, %v2966
        %v2968 = vpop.f32.mrf.mxu0
        %v2969 = vpop.f32.mrf.mxu0
        %v2970 = vadd.f32 %v2913, %v2969
        %v2971 = vpop.f32.mrf.mxu0
        %2972 = vmatprep.mubr.bf16.mxu0 %v1193
        %2973 = vmatmul.mubr.bf16.gmra.mxu0 %v1192
        %v2974 = vpop.f32.mrf.mxu0
        %v2975 = vadd.f32 %v2918, %v2974
        %v2976 = vpop.f32.mrf.mxu0
        %v2977 = vpop.f32.mrf.mxu0
        %v2978 = vadd.f32 %v2921, %v2977
        %v2979 = vpop.f32.mrf.mxu0
        %2980 = vmatprep.mubr.bf16.mxu0 %v1257
        %2981 = vmatmul.mubr.bf16.gmra.mxu0 %v1256
        %v2982 = vpop.f32.mrf.mxu0
        %v2983 = vadd.f32 %v2926, %v2982
        %v2984 = vpop.f32.mrf.mxu0
        %v2985 = vpop.f32.mrf.mxu0
        %v2986 = vadd.f32 %v2929, %v2985
        %v2987 = vpop.f32.mrf.mxu0
        %2988 = vdwg.mxu0
        %2989 = vmatprep.subr.bf16.mxu0 0
        %2990 = vmatpush1.bf16.xpose.msra.mxu0 0
        %2991 = vmatprep.subr.bf16.mxu0 0
        %2992 = vmatpush1.bf16.xpose.msra.mxu0 0
        %2993 = vmatprep.subr.bf16.mxu0 0
        %2994 = vmatpush1.bf16.xpose.msra.mxu0 0
        %2995 = vmatprep.subr.bf16.mxu0 0
        %2996 = vmatpush1.bf16.xpose.msra.mxu0 0
        %2997 = vmatprep.subr.bf16.mxu0 0
        %2998 = vmatpush1.bf16.xpose.msra.mxu0 0
        %2999 = vmatprep.subr.bf16.mxu0 0
        %3000 = vmatpush1.bf16.xpose.msra.mxu0 0
        %3001 = vmatprep.subr.bf16.mxu0 0
        %3002 = vmatpush1.bf16.xpose.msra.mxu0 0
        %3003 = vmatprep.subr.bf16.mxu0 %v1707
        %3004 = vmatpush1.bf16.xpose.msra.mxu0 %v1706
        %3005 = vmatprep.subr.bf16.mxu0 0
        %3006 = vmatpush2.bf16.xpose.msra.mxu0 0
        %3007 = vmatprep.subr.bf16.mxu0 0
        %3008 = vmatpush2.bf16.xpose.msra.mxu0 0
        %3009 = vmatprep.subr.bf16.mxu0 0
        %3010 = vmatpush2.bf16.xpose.msra.mxu0 0
        %3011 = vmatprep.subr.bf16.mxu0 0
        %3012 = vmatpush2.bf16.xpose.msra.mxu0 0
        %3013 = vmatprep.subr.bf16.mxu0 0
        %3014 = vmatpush2.bf16.xpose.msra.mxu0 0
        %3015 = vmatprep.subr.bf16.mxu0 0
        %3016 = vmatpush2.bf16.xpose.msra.mxu0 0
        %3017 = vmatprep.subr.bf16.mxu0 0
        %3018 = vmatpush2.bf16.xpose.msra.mxu0 0
        %3019 = vmatprep.subr.bf16.mxu0 0
        %3020 = vmatpush2.bf16.xpose.msra.mxu0 0
        %3021 = vmatprep.mubr.bf16.mxu0 %v1131
        %3022 = vmatmul.mubr.bf16.gmra.mxu0 %v1130
        %v3023 = vpop.f32.mrf.mxu0
        %v3024 = vadd.f32 %v2967, %v3023
        %v3025 = vpop.f32.mrf.mxu0
        %v3026 = vpop.f32.mrf.mxu0
        %v3027 = vadd.f32 %v2970, %v3026
        %v3028 = vpop.f32.mrf.mxu0
        %3029 = vmatprep.mubr.bf16.mxu0 %v1195
        %3030 = vmatmul.mubr.bf16.gmra.mxu0 %v1194
        %v3031 = vpop.f32.mrf.mxu0
        %v3032 = vadd.f32 %v2975, %v3031
        %v3033 = vpop.f32.mrf.mxu0
        %v3034 = vpop.f32.mrf.mxu0
        %v3035 = vadd.f32 %v2978, %v3034
        %v3036 = vpop.f32.mrf.mxu0
        %3037 = vmatprep.mubr.bf16.mxu0 %v1259
        %3038 = vmatmul.mubr.bf16.gmra.mxu0 %v1258
        %v3039 = vpop.f32.mrf.mxu0
        %v3040 = vadd.f32 %v2983, %v3039
        %v3041 = vpop.f32.mrf.mxu0
        %v3042 = vpop.f32.mrf.mxu0
        %v3043 = vadd.f32 %v2986, %v3042
        %v3044 = vpop.f32.mrf.mxu0
        %3045 = vdwg.mxu0
        %3046 = vmatprep.subr.bf16.mxu0 0
        %3047 = vmatpush1.bf16.xpose.msra.mxu0 0
        %3048 = vmatprep.subr.bf16.mxu0 0
        %3049 = vmatpush1.bf16.xpose.msra.mxu0 0
        %3050 = vmatprep.subr.bf16.mxu0 0
        %3051 = vmatpush1.bf16.xpose.msra.mxu0 0
        %3052 = vmatprep.subr.bf16.mxu0 0
        %3053 = vmatpush1.bf16.xpose.msra.mxu0 0
        %3054 = vmatprep.subr.bf16.mxu0 0
        %3055 = vmatpush1.bf16.xpose.msra.mxu0 0
        %3056 = vmatprep.subr.bf16.mxu0 0
        %3057 = vmatpush1.bf16.xpose.msra.mxu0 0
        %3058 = vmatprep.subr.bf16.mxu0 0
        %3059 = vmatpush1.bf16.xpose.msra.mxu0 0
        %3060 = vmatprep.subr.bf16.mxu0 %v1709
        %3061 = vmatpush1.bf16.xpose.msra.mxu0 %v1708
        %3062 = vmatprep.subr.bf16.mxu0 0
        %3063 = vmatpush2.bf16.xpose.msra.mxu0 0
        %3064 = vmatprep.subr.bf16.mxu0 0
        %3065 = vmatpush2.bf16.xpose.msra.mxu0 0
        %3066 = vmatprep.subr.bf16.mxu0 0
        %3067 = vmatpush2.bf16.xpose.msra.mxu0 0
        %3068 = vmatprep.subr.bf16.mxu0 0
        %3069 = vmatpush2.bf16.xpose.msra.mxu0 0
        %3070 = vmatprep.subr.bf16.mxu0 0
        %3071 = vmatpush2.bf16.xpose.msra.mxu0 0
        %3072 = vmatprep.subr.bf16.mxu0 0
        %3073 = vmatpush2.bf16.xpose.msra.mxu0 0
        %3074 = vmatprep.subr.bf16.mxu0 0
        %3075 = vmatpush2.bf16.xpose.msra.mxu0 0
        %3076 = vmatprep.subr.bf16.mxu0 0
        %3077 = vmatpush2.bf16.xpose.msra.mxu0 0
        %3078 = vmatprep.mubr.bf16.mxu0 %v1133
        %3079 = vmatmul.mubr.bf16.gmra.mxu0 %v1132
        %v3080 = vpop.f32.mrf.mxu0
        %v3081 = vadd.f32 %v3024, %v3080
        %v3082 = vpop.f32.mrf.mxu0
        %v3083 = vpop.f32.mrf.mxu0
        %v3084 = vadd.f32 %v3027, %v3083
        %v3085 = vpop.f32.mrf.mxu0
        %3086 = vmatprep.mubr.bf16.mxu0 %v1197
        %3087 = vmatmul.mubr.bf16.gmra.mxu0 %v1196
        %v3088 = vpop.f32.mrf.mxu0
        %v3089 = vadd.f32 %v3032, %v3088
        %v3090 = vpop.f32.mrf.mxu0
        %v3091 = vpop.f32.mrf.mxu0
        %v3092 = vadd.f32 %v3035, %v3091
        %v3093 = vpop.f32.mrf.mxu0
        %3094 = vmatprep.mubr.bf16.mxu0 %v1261
        %3095 = vmatmul.mubr.bf16.gmra.mxu0 %v1260
        %v3096 = vpop.f32.mrf.mxu0
        %v3097 = vadd.f32 %v3040, %v3096
        %v3098 = vpop.f32.mrf.mxu0
        %v3099 = vpop.f32.mrf.mxu0
        %v3100 = vadd.f32 %v3043, %v3099
        %v3101 = vpop.f32.mrf.mxu0
        %3102 = vdwg.mxu0
        %3103 = vmatprep.subr.bf16.mxu0 0
        %3104 = vmatpush1.bf16.xpose.msra.mxu0 0
        %3105 = vmatprep.subr.bf16.mxu0 0
        %3106 = vmatpush1.bf16.xpose.msra.mxu0 0
        %3107 = vmatprep.subr.bf16.mxu0 0
        %3108 = vmatpush1.bf16.xpose.msra.mxu0 0
        %3109 = vmatprep.subr.bf16.mxu0 0
        %3110 = vmatpush1.bf16.xpose.msra.mxu0 0
        %3111 = vmatprep.subr.bf16.mxu0 0
        %3112 = vmatpush1.bf16.xpose.msra.mxu0 0
        %3113 = vmatprep.subr.bf16.mxu0 0
        %3114 = vmatpush1.bf16.xpose.msra.mxu0 0
        %3115 = vmatprep.subr.bf16.mxu0 0
        %3116 = vmatpush1.bf16.xpose.msra.mxu0 0
        %3117 = vmatprep.subr.bf16.mxu0 %v1711
        %3118 = vmatpush1.bf16.xpose.msra.mxu0 %v1710
        %3119 = vmatprep.subr.bf16.mxu0 0
        %3120 = vmatpush2.bf16.xpose.msra.mxu0 0
        %3121 = vmatprep.subr.bf16.mxu0 0
        %3122 = vmatpush2.bf16.xpose.msra.mxu0 0
        %3123 = vmatprep.subr.bf16.mxu0 0
        %3124 = vmatpush2.bf16.xpose.msra.mxu0 0
        %3125 = vmatprep.subr.bf16.mxu0 0
        %3126 = vmatpush2.bf16.xpose.msra.mxu0 0
        %3127 = vmatprep.subr.bf16.mxu0 0
        %3128 = vmatpush2.bf16.xpose.msra.mxu0 0
        %3129 = vmatprep.subr.bf16.mxu0 0
        %3130 = vmatpush2.bf16.xpose.msra.mxu0 0
        %3131 = vmatprep.subr.bf16.mxu0 0
        %3132 = vmatpush2.bf16.xpose.msra.mxu0 0
        %3133 = vmatprep.subr.bf16.mxu0 0
        %3134 = vmatpush2.bf16.xpose.msra.mxu0 0
        %3135 = vmatprep.mubr.bf16.mxu0 %v1135
        %3136 = vmatmul.mubr.bf16.gmra.mxu0 %v1134
        %v3137 = vpop.f32.mrf.mxu0
        %v3138 = vadd.f32 %v3081, %v3137
        %v3139 = vpop.f32.mrf.mxu0
        %v3140 = vpop.f32.mrf.mxu0
        %v3141 = vadd.f32 %v3084, %v3140
        %v3142 = vpop.f32.mrf.mxu0
        %3143 = vmatprep.mubr.bf16.mxu0 %v1199
        %3144 = vmatmul.mubr.bf16.gmra.mxu0 %v1198
        %v3145 = vpop.f32.mrf.mxu0
        %v3146 = vadd.f32 %v3089, %v3145
        %v3147 = vpop.f32.mrf.mxu0
        %v3148 = vpop.f32.mrf.mxu0
        %v3149 = vadd.f32 %v3092, %v3148
        %v3150 = vpop.f32.mrf.mxu0
        %3151 = vmatprep.mubr.bf16.mxu0 %v1263
        %3152 = vmatmul.mubr.bf16.gmra.mxu0 %v1262
        %v3153 = vpop.f32.mrf.mxu0
        %v3154 = vadd.f32 %v3097, %v3153
        %v3155 = vpop.f32.mrf.mxu0
        %v3156 = vpop.f32.mrf.mxu0
        %v3157 = vadd.f32 %v3100, %v3156
        %v3158 = vpop.f32.mrf.mxu0
        %3159 = vdwg.mxu0
        %3160 = vmatprep.subr.bf16.mxu0 0
        %3161 = vmatpush1.bf16.xpose.msra.mxu0 0
        %3162 = vmatprep.subr.bf16.mxu0 0
        %3163 = vmatpush1.bf16.xpose.msra.mxu0 0
        %3164 = vmatprep.subr.bf16.mxu0 0
        %3165 = vmatpush1.bf16.xpose.msra.mxu0 0
        %3166 = vmatprep.subr.bf16.mxu0 0
        %3167 = vmatpush1.bf16.xpose.msra.mxu0 0
        %3168 = vmatprep.subr.bf16.mxu0 0
        %3169 = vmatpush1.bf16.xpose.msra.mxu0 0
        %3170 = vmatprep.subr.bf16.mxu0 0
        %3171 = vmatpush1.bf16.xpose.msra.mxu0 0
        %3172 = vmatprep.subr.bf16.mxu0 0
        %3173 = vmatpush1.bf16.xpose.msra.mxu0 0
        %3174 = vmatprep.subr.bf16.mxu0 %v1713
        %3175 = vmatpush1.bf16.xpose.msra.mxu0 %v1712
        %3176 = vmatprep.subr.bf16.mxu0 0
        %3177 = vmatpush2.bf16.xpose.msra.mxu0 0
        %3178 = vmatprep.subr.bf16.mxu0 0
        %3179 = vmatpush2.bf16.xpose.msra.mxu0 0
        %3180 = vmatprep.subr.bf16.mxu0 0
        %3181 = vmatpush2.bf16.xpose.msra.mxu0 0
        %3182 = vmatprep.subr.bf16.mxu0 0
        %3183 = vmatpush2.bf16.xpose.msra.mxu0 0
        %3184 = vmatprep.subr.bf16.mxu0 0
        %3185 = vmatpush2.bf16.xpose.msra.mxu0 0
        %3186 = vmatprep.subr.bf16.mxu0 0
        %3187 = vmatpush2.bf16.xpose.msra.mxu0 0
        %3188 = vmatprep.subr.bf16.mxu0 0
        %3189 = vmatpush2.bf16.xpose.msra.mxu0 0
        %3190 = vmatprep.subr.bf16.mxu0 0
        %3191 = vmatpush2.bf16.xpose.msra.mxu0 0
        %3192 = vmatprep.mubr.bf16.mxu0 %v1137
        %3193 = vmatmul.mubr.bf16.gmra.mxu0 %v1136
        %v3194 = vpop.f32.mrf.mxu0
        %v3195 = vadd.f32 %v3138, %v3194
        %v3196 = vpop.f32.mrf.mxu0
        %v3197 = vpop.f32.mrf.mxu0
        %v3198 = vadd.f32 %v3141, %v3197
        %v3199 = vpop.f32.mrf.mxu0
        %3200 = vmatprep.mubr.bf16.mxu0 %v1201
        %3201 = vmatmul.mubr.bf16.gmra.mxu0 %v1200
        %v3202 = vpop.f32.mrf.mxu0
        %v3203 = vadd.f32 %v3146, %v3202
        %v3204 = vpop.f32.mrf.mxu0
        %v3205 = vpop.f32.mrf.mxu0
        %v3206 = vadd.f32 %v3149, %v3205
        %v3207 = vpop.f32.mrf.mxu0
        %3208 = vmatprep.mubr.bf16.mxu0 %v1265
        %3209 = vmatmul.mubr.bf16.gmra.mxu0 %v1264
        %v3210 = vpop.f32.mrf.mxu0
        %v3211 = vadd.f32 %v3154, %v3210
        %v3212 = vpop.f32.mrf.mxu0
        %v3213 = vpop.f32.mrf.mxu0
        %v3214 = vadd.f32 %v3157, %v3213
        %v3215 = vpop.f32.mrf.mxu0
        %3216 = vdwg.mxu0
        %3217 = vmatprep.subr.bf16.mxu0 0
        %3218 = vmatpush1.bf16.xpose.msra.mxu0 0
        %3219 = vmatprep.subr.bf16.mxu0 0
        %3220 = vmatpush1.bf16.xpose.msra.mxu0 0
        %3221 = vmatprep.subr.bf16.mxu0 0
        %3222 = vmatpush1.bf16.xpose.msra.mxu0 0
        %3223 = vmatprep.subr.bf16.mxu0 0
        %3224 = vmatpush1.bf16.xpose.msra.mxu0 0
        %3225 = vmatprep.subr.bf16.mxu0 0
        %3226 = vmatpush1.bf16.xpose.msra.mxu0 0
        %3227 = vmatprep.subr.bf16.mxu0 0
        %3228 = vmatpush1.bf16.xpose.msra.mxu0 0
        %3229 = vmatprep.subr.bf16.mxu0 0
        %3230 = vmatpush1.bf16.xpose.msra.mxu0 0
        %3231 = vmatprep.subr.bf16.mxu0 %v1715
        %3232 = vmatpush1.bf16.xpose.msra.mxu0 %v1714
        %3233 = vmatprep.subr.bf16.mxu0 0
        %3234 = vmatpush2.bf16.xpose.msra.mxu0 0
        %3235 = vmatprep.subr.bf16.mxu0 0
        %3236 = vmatpush2.bf16.xpose.msra.mxu0 0
        %3237 = vmatprep.subr.bf16.mxu0 0
        %3238 = vmatpush2.bf16.xpose.msra.mxu0 0
        %3239 = vmatprep.subr.bf16.mxu0 0
        %3240 = vmatpush2.bf16.xpose.msra.mxu0 0
        %3241 = vmatprep.subr.bf16.mxu0 0
        %3242 = vmatpush2.bf16.xpose.msra.mxu0 0
        %3243 = vmatprep.subr.bf16.mxu0 0
        %3244 = vmatpush2.bf16.xpose.msra.mxu0 0
        %3245 = vmatprep.subr.bf16.mxu0 0
        %3246 = vmatpush2.bf16.xpose.msra.mxu0 0
        %3247 = vmatprep.subr.bf16.mxu0 0
        %3248 = vmatpush2.bf16.xpose.msra.mxu0 0
        %3249 = vmatprep.mubr.bf16.mxu0 %v1139
        %3250 = vmatmul.mubr.bf16.gmra.mxu0 %v1138
        %v3251 = vpop.f32.mrf.mxu0
        %v3252 = vadd.f32 %v3195, %v3251
        %v3253 = vpop.f32.mrf.mxu0
        %v3254 = vpop.f32.mrf.mxu0
        %v3255 = vadd.f32 %v3198, %v3254
        %v3256 = vpop.f32.mrf.mxu0
        %3257 = vmatprep.mubr.bf16.mxu0 %v1203
        %3258 = vmatmul.mubr.bf16.gmra.mxu0 %v1202
        %v3259 = vpop.f32.mrf.mxu0
        %v3260 = vadd.f32 %v3203, %v3259
        %v3261 = vpop.f32.mrf.mxu0
        %v3262 = vpop.f32.mrf.mxu0
        %v3263 = vadd.f32 %v3206, %v3262
        %v3264 = vpop.f32.mrf.mxu0
        %3265 = vmatprep.mubr.bf16.mxu0 %v1267
        %3266 = vmatmul.mubr.bf16.gmra.mxu0 %v1266
        %v3267 = vpop.f32.mrf.mxu0
        %v3268 = vadd.f32 %v3211, %v3267
        %v3269 = vpop.f32.mrf.mxu0
        %v3270 = vpop.f32.mrf.mxu0
        %v3271 = vadd.f32 %v3214, %v3270
        %v3272 = vpop.f32.mrf.mxu0
        %3273 = vdwg.mxu0
        %3274 = vmatprep.subr.bf16.mxu0 0
        %3275 = vmatpush1.bf16.xpose.msra.mxu0 0
        %3276 = vmatprep.subr.bf16.mxu0 0
        %3277 = vmatpush1.bf16.xpose.msra.mxu0 0
        %3278 = vmatprep.subr.bf16.mxu0 0
        %3279 = vmatpush1.bf16.xpose.msra.mxu0 0
        %3280 = vmatprep.subr.bf16.mxu0 0
        %3281 = vmatpush1.bf16.xpose.msra.mxu0 0
        %3282 = vmatprep.subr.bf16.mxu0 0
        %3283 = vmatpush1.bf16.xpose.msra.mxu0 0
        %3284 = vmatprep.subr.bf16.mxu0 0
        %3285 = vmatpush1.bf16.xpose.msra.mxu0 0
        %3286 = vmatprep.subr.bf16.mxu0 0
        %3287 = vmatpush1.bf16.xpose.msra.mxu0 0
        %3288 = vmatprep.subr.bf16.mxu0 %v1717
        %3289 = vmatpush1.bf16.xpose.msra.mxu0 %v1716
        %3290 = vmatprep.subr.bf16.mxu0 0
        %3291 = vmatpush2.bf16.xpose.msra.mxu0 0
        %3292 = vmatprep.subr.bf16.mxu0 0
        %3293 = vmatpush2.bf16.xpose.msra.mxu0 0
        %3294 = vmatprep.subr.bf16.mxu0 0
        %3295 = vmatpush2.bf16.xpose.msra.mxu0 0
        %3296 = vmatprep.subr.bf16.mxu0 0
        %3297 = vmatpush2.bf16.xpose.msra.mxu0 0
        %3298 = vmatprep.subr.bf16.mxu0 0
        %3299 = vmatpush2.bf16.xpose.msra.mxu0 0
        %3300 = vmatprep.subr.bf16.mxu0 0
        %3301 = vmatpush2.bf16.xpose.msra.mxu0 0
        %3302 = vmatprep.subr.bf16.mxu0 0
        %3303 = vmatpush2.bf16.xpose.msra.mxu0 0
        %3304 = vmatprep.subr.bf16.mxu0 0
        %3305 = vmatpush2.bf16.xpose.msra.mxu0 0
        %3306 = vmatprep.mubr.bf16.mxu0 %v1141
        %3307 = vmatmul.mubr.bf16.gmra.mxu0 %v1140
        %v3308 = vpop.f32.mrf.mxu0
        %v3309 = vadd.f32 %v3252, %v3308
        %v3310 = vpop.f32.mrf.mxu0
        %v3311 = vpop.f32.mrf.mxu0
        %v3312 = vadd.f32 %v3255, %v3311
        %v3313 = vpop.f32.mrf.mxu0
        %3314 = vmatprep.mubr.bf16.mxu0 %v1205
        %3315 = vmatmul.mubr.bf16.gmra.mxu0 %v1204
        %v3316 = vpop.f32.mrf.mxu0
        %v3317 = vadd.f32 %v3260, %v3316
        %v3318 = vpop.f32.mrf.mxu0
        %v3319 = vpop.f32.mrf.mxu0
        %v3320 = vadd.f32 %v3263, %v3319
        %v3321 = vpop.f32.mrf.mxu0
        %3322 = vmatprep.mubr.bf16.mxu0 %v1269
        %3323 = vmatmul.mubr.bf16.gmra.mxu0 %v1268
        %v3324 = vpop.f32.mrf.mxu0
        %v3325 = vadd.f32 %v3268, %v3324
        %v3326 = vpop.f32.mrf.mxu0
        %v3327 = vpop.f32.mrf.mxu0
        %v3328 = vadd.f32 %v3271, %v3327
        %v3329 = vpop.f32.mrf.mxu0
        %3330 = vdwg.mxu0
        %3331 = vmatprep.subr.bf16.mxu0 0
        %3332 = vmatpush1.bf16.xpose.msra.mxu0 0
        %3333 = vmatprep.subr.bf16.mxu0 0
        %3334 = vmatpush1.bf16.xpose.msra.mxu0 0
        %3335 = vmatprep.subr.bf16.mxu0 0
        %3336 = vmatpush1.bf16.xpose.msra.mxu0 0
        %3337 = vmatprep.subr.bf16.mxu0 0
        %3338 = vmatpush1.bf16.xpose.msra.mxu0 0
        %3339 = vmatprep.subr.bf16.mxu0 0
        %3340 = vmatpush1.bf16.xpose.msra.mxu0 0
        %3341 = vmatprep.subr.bf16.mxu0 0
        %3342 = vmatpush1.bf16.xpose.msra.mxu0 0
        %3343 = vmatprep.subr.bf16.mxu0 0
        %3344 = vmatpush1.bf16.xpose.msra.mxu0 0
        %3345 = vmatprep.subr.bf16.mxu0 %v1719
        %3346 = vmatpush1.bf16.xpose.msra.mxu0 %v1718
        %3347 = vmatprep.subr.bf16.mxu0 0
        %3348 = vmatpush2.bf16.xpose.msra.mxu0 0
        %3349 = vmatprep.subr.bf16.mxu0 0
        %3350 = vmatpush2.bf16.xpose.msra.mxu0 0
        %3351 = vmatprep.subr.bf16.mxu0 0
        %3352 = vmatpush2.bf16.xpose.msra.mxu0 0
        %3353 = vmatprep.subr.bf16.mxu0 0
        %3354 = vmatpush2.bf16.xpose.msra.mxu0 0
        %3355 = vmatprep.subr.bf16.mxu0 0
        %3356 = vmatpush2.bf16.xpose.msra.mxu0 0
        %3357 = vmatprep.subr.bf16.mxu0 0
        %3358 = vmatpush2.bf16.xpose.msra.mxu0 0
        %3359 = vmatprep.subr.bf16.mxu0 0
        %3360 = vmatpush2.bf16.xpose.msra.mxu0 0
        %3361 = vmatprep.subr.bf16.mxu0 0
        %3362 = vmatpush2.bf16.xpose.msra.mxu0 0
        %3363 = vmatprep.mubr.bf16.mxu0 %v1143
        %3364 = vmatmul.mubr.bf16.gmra.mxu0 %v1142
        %v3365 = vpop.f32.mrf.mxu0
        %v3366 = vadd.f32 %v3309, %v3365
        %v3367 = vpop.f32.mrf.mxu0
        %v3368 = vpop.f32.mrf.mxu0
        %v3369 = vadd.f32 %v3312, %v3368
        %v3370 = vpop.f32.mrf.mxu0
        %3371 = vmatprep.mubr.bf16.mxu0 %v1207
        %3372 = vmatmul.mubr.bf16.gmra.mxu0 %v1206
        %v3373 = vpop.f32.mrf.mxu0
        %v3374 = vadd.f32 %v3317, %v3373
        %v3375 = vpop.f32.mrf.mxu0
        %v3376 = vpop.f32.mrf.mxu0
        %v3377 = vadd.f32 %v3320, %v3376
        %v3378 = vpop.f32.mrf.mxu0
        %3379 = vmatprep.mubr.bf16.mxu0 %v1271
        %3380 = vmatmul.mubr.bf16.gmra.mxu0 %v1270
        %v3381 = vpop.f32.mrf.mxu0
        %v3382 = vadd.f32 %v3325, %v3381
        %v3383 = vpop.f32.mrf.mxu0
        %v3384 = vpop.f32.mrf.mxu0
        %v3385 = vadd.f32 %v3328, %v3384
        %v3386 = vpop.f32.mrf.mxu0
        %3387 = vdwg.mxu0
        %3388 = vmatprep.subr.bf16.mxu0 0
        %3389 = vmatpush1.bf16.xpose.msra.mxu0 0
        %3390 = vmatprep.subr.bf16.mxu0 0
        %3391 = vmatpush1.bf16.xpose.msra.mxu0 0
        %3392 = vmatprep.subr.bf16.mxu0 0
        %3393 = vmatpush1.bf16.xpose.msra.mxu0 0
        %3394 = vmatprep.subr.bf16.mxu0 0
        %3395 = vmatpush1.bf16.xpose.msra.mxu0 0
        %3396 = vmatprep.subr.bf16.mxu0 0
        %3397 = vmatpush1.bf16.xpose.msra.mxu0 0
        %3398 = vmatprep.subr.bf16.mxu0 0
        %3399 = vmatpush1.bf16.xpose.msra.mxu0 0
        %3400 = vmatprep.subr.bf16.mxu0 0
        %3401 = vmatpush1.bf16.xpose.msra.mxu0 0
        %3402 = vmatprep.subr.bf16.mxu0 %v1721
        %3403 = vmatpush1.bf16.xpose.msra.mxu0 %v1720
        %3404 = vmatprep.subr.bf16.mxu0 0
        %3405 = vmatpush2.bf16.xpose.msra.mxu0 0
        %3406 = vmatprep.subr.bf16.mxu0 0
        %3407 = vmatpush2.bf16.xpose.msra.mxu0 0
        %3408 = vmatprep.subr.bf16.mxu0 0
        %3409 = vmatpush2.bf16.xpose.msra.mxu0 0
        %3410 = vmatprep.subr.bf16.mxu0 0
        %3411 = vmatpush2.bf16.xpose.msra.mxu0 0
        %3412 = vmatprep.subr.bf16.mxu0 0
        %3413 = vmatpush2.bf16.xpose.msra.mxu0 0
        %3414 = vmatprep.subr.bf16.mxu0 0
        %3415 = vmatpush2.bf16.xpose.msra.mxu0 0
        %3416 = vmatprep.subr.bf16.mxu0 0
        %3417 = vmatpush2.bf16.xpose.msra.mxu0 0
        %3418 = vmatprep.subr.bf16.mxu0 0
        %3419 = vmatpush2.bf16.xpose.msra.mxu0 0
        %3420 = vmatprep.mubr.bf16.mxu0 %v1145
        %3421 = vmatmul.mubr.bf16.gmra.mxu0 %v1144
        %v3422 = vpop.f32.mrf.mxu0
        %v3423 = vadd.f32 %v3366, %v3422
        %v3424 = vpop.f32.mrf.mxu0
        %v3425 = vpop.f32.mrf.mxu0
        %v3426 = vadd.f32 %v3369, %v3425
        %v3427 = vpop.f32.mrf.mxu0
        %3428 = vmatprep.mubr.bf16.mxu0 %v1209
        %3429 = vmatmul.mubr.bf16.gmra.mxu0 %v1208
        %v3430 = vpop.f32.mrf.mxu0
        %v3431 = vadd.f32 %v3374, %v3430
        %v3432 = vpop.f32.mrf.mxu0
        %v3433 = vpop.f32.mrf.mxu0
        %v3434 = vadd.f32 %v3377, %v3433
        %v3435 = vpop.f32.mrf.mxu0
        %3436 = vmatprep.mubr.bf16.mxu0 %v1273
        %3437 = vmatmul.mubr.bf16.gmra.mxu0 %v1272
        %v3438 = vpop.f32.mrf.mxu0
        %v3439 = vadd.f32 %v3382, %v3438
        %v3440 = vpop.f32.mrf.mxu0
        %v3441 = vpop.f32.mrf.mxu0
        %v3442 = vadd.f32 %v3385, %v3441
        %v3443 = vpop.f32.mrf.mxu0
        %3444 = vdwg.mxu0
        %3445 = vmatprep.subr.bf16.mxu0 0
        %3446 = vmatpush1.bf16.xpose.msra.mxu0 0
        %3447 = vmatprep.subr.bf16.mxu0 0
        %3448 = vmatpush1.bf16.xpose.msra.mxu0 0
        %3449 = vmatprep.subr.bf16.mxu0 0
        %3450 = vmatpush1.bf16.xpose.msra.mxu0 0
        %3451 = vmatprep.subr.bf16.mxu0 0
        %3452 = vmatpush1.bf16.xpose.msra.mxu0 0
        %3453 = vmatprep.subr.bf16.mxu0 0
        %3454 = vmatpush1.bf16.xpose.msra.mxu0 0
        %3455 = vmatprep.subr.bf16.mxu0 0
        %3456 = vmatpush1.bf16.xpose.msra.mxu0 0
        %3457 = vmatprep.subr.bf16.mxu0 0
        %3458 = vmatpush1.bf16.xpose.msra.mxu0 0
        %3459 = vmatprep.subr.bf16.mxu0 %v1723
        %3460 = vmatpush1.bf16.xpose.msra.mxu0 %v1722
        %3461 = vmatprep.subr.bf16.mxu0 0
        %3462 = vmatpush2.bf16.xpose.msra.mxu0 0
        %3463 = vmatprep.subr.bf16.mxu0 0
        %3464 = vmatpush2.bf16.xpose.msra.mxu0 0
        %3465 = vmatprep.subr.bf16.mxu0 0
        %3466 = vmatpush2.bf16.xpose.msra.mxu0 0
        %3467 = vmatprep.subr.bf16.mxu0 0
        %3468 = vmatpush2.bf16.xpose.msra.mxu0 0
        %3469 = vmatprep.subr.bf16.mxu0 0
        %3470 = vmatpush2.bf16.xpose.msra.mxu0 0
        %3471 = vmatprep.subr.bf16.mxu0 0
        %3472 = vmatpush2.bf16.xpose.msra.mxu0 0
        %3473 = vmatprep.subr.bf16.mxu0 0
        %3474 = vmatpush2.bf16.xpose.msra.mxu0 0
        %3475 = vmatprep.subr.bf16.mxu0 0
        %3476 = vmatpush2.bf16.xpose.msra.mxu0 0
        %3477 = vmatprep.mubr.bf16.mxu0 %v1147
        %3478 = vmatmul.mubr.bf16.gmra.mxu0 %v1146
        %v3479 = vpop.f32.mrf.mxu0
        %v3480 = vadd.f32 %v3423, %v3479
        %v3481 = vpop.f32.mrf.mxu0
        %v3482 = vpop.f32.mrf.mxu0
        %v3483 = vadd.f32 %v3426, %v3482
        %v3484 = vpop.f32.mrf.mxu0
        %3485 = vmatprep.mubr.bf16.mxu0 %v1211
        %3486 = vmatmul.mubr.bf16.gmra.mxu0 %v1210
        %v3487 = vpop.f32.mrf.mxu0
        %v3488 = vadd.f32 %v3431, %v3487
        %v3489 = vpop.f32.mrf.mxu0
        %v3490 = vpop.f32.mrf.mxu0
        %v3491 = vadd.f32 %v3434, %v3490
        %v3492 = vpop.f32.mrf.mxu0
        %3493 = vmatprep.mubr.bf16.mxu0 %v1275
        %3494 = vmatmul.mubr.bf16.gmra.mxu0 %v1274
        %v3495 = vpop.f32.mrf.mxu0
        %v3496 = vadd.f32 %v3439, %v3495
        %v3497 = vpop.f32.mrf.mxu0
        %v3498 = vpop.f32.mrf.mxu0
        %v3499 = vadd.f32 %v3442, %v3498
        %v3500 = vpop.f32.mrf.mxu0
        %3501 = vdwg.mxu0
        %3502 = vmatprep.subr.bf16.mxu0 0
        %3503 = vmatpush1.bf16.xpose.msra.mxu0 0
        %3504 = vmatprep.subr.bf16.mxu0 0
        %3505 = vmatpush1.bf16.xpose.msra.mxu0 0
        %3506 = vmatprep.subr.bf16.mxu0 0
        %3507 = vmatpush1.bf16.xpose.msra.mxu0 0
        %3508 = vmatprep.subr.bf16.mxu0 0
        %3509 = vmatpush1.bf16.xpose.msra.mxu0 0
        %3510 = vmatprep.subr.bf16.mxu0 0
        %3511 = vmatpush1.bf16.xpose.msra.mxu0 0
        %3512 = vmatprep.subr.bf16.mxu0 0
        %3513 = vmatpush1.bf16.xpose.msra.mxu0 0
        %3514 = vmatprep.subr.bf16.mxu0 0
        %3515 = vmatpush1.bf16.xpose.msra.mxu0 0
        %3516 = vmatprep.subr.bf16.mxu0 %v1725
        %3517 = vmatpush1.bf16.xpose.msra.mxu0 %v1724
        %3518 = vmatprep.subr.bf16.mxu0 0
        %3519 = vmatpush2.bf16.xpose.msra.mxu0 0
        %3520 = vmatprep.subr.bf16.mxu0 0
        %3521 = vmatpush2.bf16.xpose.msra.mxu0 0
        %3522 = vmatprep.subr.bf16.mxu0 0
        %3523 = vmatpush2.bf16.xpose.msra.mxu0 0
        %3524 = vmatprep.subr.bf16.mxu0 0
        %3525 = vmatpush2.bf16.xpose.msra.mxu0 0
        %3526 = vmatprep.subr.bf16.mxu0 0
        %3527 = vmatpush2.bf16.xpose.msra.mxu0 0
        %3528 = vmatprep.subr.bf16.mxu0 0
        %3529 = vmatpush2.bf16.xpose.msra.mxu0 0
        %3530 = vmatprep.subr.bf16.mxu0 0
        %3531 = vmatpush2.bf16.xpose.msra.mxu0 0
        %3532 = vmatprep.subr.bf16.mxu0 0
        %3533 = vmatpush2.bf16.xpose.msra.mxu0 0
        %3534 = vmatprep.mubr.bf16.mxu0 %v1149
        %3535 = vmatmul.mubr.bf16.gmra.mxu0 %v1148
        %v3536 = vpop.f32.mrf.mxu0
        %v3537 = vadd.f32 %v3480, %v3536
        %v3538 = vpop.f32.mrf.mxu0
        %v3539 = vpop.f32.mrf.mxu0
        %v3540 = vadd.f32 %v3483, %v3539
        %v3541 = vpop.f32.mrf.mxu0
        %3542 = vmatprep.mubr.bf16.mxu0 %v1213
        %3543 = vmatmul.mubr.bf16.gmra.mxu0 %v1212
        %v3544 = vpop.f32.mrf.mxu0
        %v3545 = vadd.f32 %v3488, %v3544
        %v3546 = vpop.f32.mrf.mxu0
        %v3547 = vpop.f32.mrf.mxu0
        %v3548 = vadd.f32 %v3491, %v3547
        %v3549 = vpop.f32.mrf.mxu0
        %3550 = vmatprep.mubr.bf16.mxu0 %v1277
        %3551 = vmatmul.mubr.bf16.gmra.mxu0 %v1276
        %v3552 = vpop.f32.mrf.mxu0
        %v3553 = vadd.f32 %v3496, %v3552
        %v3554 = vpop.f32.mrf.mxu0
        %v3555 = vpop.f32.mrf.mxu0
        %v3556 = vadd.f32 %v3499, %v3555
        %v3557 = vpop.f32.mrf.mxu0
        %3558 = vdwg.mxu0
        %3559 = vmatprep.subr.bf16.mxu0 0
        %3560 = vmatpush1.bf16.xpose.msra.mxu0 0
        %3561 = vmatprep.subr.bf16.mxu0 0
        %3562 = vmatpush1.bf16.xpose.msra.mxu0 0
        %3563 = vmatprep.subr.bf16.mxu0 0
        %3564 = vmatpush1.bf16.xpose.msra.mxu0 0
        %3565 = vmatprep.subr.bf16.mxu0 0
        %3566 = vmatpush1.bf16.xpose.msra.mxu0 0
        %3567 = vmatprep.subr.bf16.mxu0 0
        %3568 = vmatpush1.bf16.xpose.msra.mxu0 0
        %3569 = vmatprep.subr.bf16.mxu0 0
        %3570 = vmatpush1.bf16.xpose.msra.mxu0 0
        %3571 = vmatprep.subr.bf16.mxu0 0
        %3572 = vmatpush1.bf16.xpose.msra.mxu0 0
        %3573 = vmatprep.subr.bf16.mxu0 %v1727
        %3574 = vmatpush1.bf16.xpose.msra.mxu0 %v1726
        %3575 = vmatprep.subr.bf16.mxu0 0
        %3576 = vmatpush2.bf16.xpose.msra.mxu0 0
        %3577 = vmatprep.subr.bf16.mxu0 0
        %3578 = vmatpush2.bf16.xpose.msra.mxu0 0
        %3579 = vmatprep.subr.bf16.mxu0 0
        %3580 = vmatpush2.bf16.xpose.msra.mxu0 0
        %3581 = vmatprep.subr.bf16.mxu0 0
        %3582 = vmatpush2.bf16.xpose.msra.mxu0 0
        %3583 = vmatprep.subr.bf16.mxu0 0
        %3584 = vmatpush2.bf16.xpose.msra.mxu0 0
        %3585 = vmatprep.subr.bf16.mxu0 0
        %3586 = vmatpush2.bf16.xpose.msra.mxu0 0
        %3587 = vmatprep.subr.bf16.mxu0 0
        %3588 = vmatpush2.bf16.xpose.msra.mxu0 0
        %3589 = vmatprep.subr.bf16.mxu0 0
        %3590 = vmatpush2.bf16.xpose.msra.mxu0 0
        %3591 = vmatprep.mubr.bf16.mxu0 %v1151
        %3592 = vmatmul.mubr.bf16.gmra.mxu0 %v1150
        %v3593 = vpop.f32.mrf.mxu0
        %v3594 = vadd.f32 %v3537, %v3593
        %v3595 = vpop.f32.mrf.mxu0
        %v3596 = vpop.f32.mrf.mxu0
        %v3597 = vadd.f32 %v3540, %v3596
        %v3598 = vpop.f32.mrf.mxu0
        %3599 = vmatprep.mubr.bf16.mxu0 %v1215
        %3600 = vmatmul.mubr.bf16.gmra.mxu0 %v1214
        %v3601 = vpop.f32.mrf.mxu0
        %v3602 = vadd.f32 %v3545, %v3601
        %v3603 = vpop.f32.mrf.mxu0
        %v3604 = vpop.f32.mrf.mxu0
        %v3605 = vadd.f32 %v3548, %v3604
        %v3606 = vpop.f32.mrf.mxu0
        %3607 = vmatprep.mubr.bf16.mxu0 %v1279
        %3608 = vmatmul.mubr.bf16.gmra.mxu0 %v1278
        %v3609 = vpop.f32.mrf.mxu0
        %v3610 = vadd.f32 %v3553, %v3609
        %v3611 = vpop.f32.mrf.mxu0
        %v3612 = vpop.f32.mrf.mxu0
        %v3613 = vadd.f32 %v3556, %v3612
        %v3614 = vpop.f32.mrf.mxu0
        %3615 = vdwg.mxu0
        %v3616 = vadd.f32 %v314, %v3594
        %v3617 = vadd.f32 %v315, %v3597
        %v3618 = vadd.f32 %v316, %v3602
        %v3619 = vadd.f32 %v317, %v3605
        %v3620 = vadd.f32 %v318, %v3610
        %v3621 = vadd.f32 %v319, %v3613
        %vm3622 = vcmask 130048
        %3623 = vst.msk [vmem:[%s231] sm:$0xff] %vm3622, %v3616
        %3624 = vst.msk [vmem:[%s231 + $0x8] sm:$0xff] %vm3622, %v3617
        %3625 = vst.msk [vmem:[%s231 + $0x10] sm:$0xff] %vm3622, %v3618
        %3626 = vst.msk [vmem:[%s231 + $0x18] sm:$0xff] %vm3622, %v3619
        %3627 = vst.msk [vmem:[%s231 + $0x20] sm:$0xff] %vm3622, %v3620
        %3628 = vst.msk [vmem:[%s231 + $0x28] sm:$0xff] %vm3622, %v3621
        %p3629 = scmp.eq.s32.totalorder %s22, 1
        // Predicated region
        $region41: #{decoder_forward.1} parent=31 // pred_check
          %p3630 = pneg %p3629
        $region42: #{decoder_forward.1} parent=31 // pred_check_branch
          %3632 = sbr.rel (%p3630) target = $region44
        $region43: #{decoder_forward.1} parent=31 // pred_region
          %v3633 = vld [vmem:[%s231] sm:$0xff]
          %v3634 = vld [vmem:[%s231 + $0x8] sm:$0xff]
          %v3635 = vld [vmem:[%s231 + $0x10] sm:$0xff]
          %v3636 = vld [vmem:[%s231 + $0x18] sm:$0xff]
          %v3637 = vld [vmem:[%s231 + $0x20] sm:$0xff]
          %v3638 = vld [vmem:[%s231 + $0x28] sm:$0xff]
          %v3639 = vld [vmem:[%s225] sm:$0xff]
          %v3640 = vld [vmem:[%s225 + $0x8] sm:$0xff]
          %v3641 = vld [vmem:[%s225 + $0x10] sm:$0xff]
          %v3642 = vld [vmem:[%s225 + $0x18] sm:$0xff]
          %v3643 = vld [vmem:[%s225 + $0x20] sm:$0xff]
          %v3644 = vld [vmem:[%s225 + $0x28] sm:$0xff]
          %3646 = vset.pattern.permute.xlu0 0
          %3647 = vperm.xlu0 %3646, %v3639
          %v3648 = vpop.permute.xlu0 %3647
          %3651 = vset.pattern.permute.xlu0 0
          %3652 = vperm.xlu0 %3651, %v3640
          %v3653 = vpop.permute.xlu0 %3652
          %3656 = vset.pattern.permute.xlu0 0
          %3657 = vperm.xlu0 %3656, %v3641
          %v3658 = vpop.permute.xlu0 %3657
          %3661 = vset.pattern.permute.xlu0 0
          %3662 = vperm.xlu0 %3661, %v3642
          %v3663 = vpop.permute.xlu0 %3662
          %3666 = vset.pattern.permute.xlu0 0
          %3667 = vperm.xlu0 %3666, %v3643
          %v3668 = vpop.permute.xlu0 %3667
          %3671 = vset.pattern.permute.xlu0 0
          %3672 = vperm.xlu0 %3671, %v3644
          %v3673 = vpop.permute.xlu0 %3672
          %v3675 = vadd.f32 %v3633, %v3648
          %v3676 = vadd.f32 %v3634, %v3653
          %v3677 = vadd.f32 %v3635, %v3658
          %v3678 = vadd.f32 %v3636, %v3663
          %v3679 = vadd.f32 %v3637, %v3668
          %v3680 = vadd.f32 %v3638, %v3673
          %v3681 = vxor.u32 %v3675, 2147483648
          %v3682 = vxor.u32 %v3676, 2147483648
          %v3683 = vxor.u32 %v3677, 2147483648
          %v3684 = vxor.u32 %v3678, 2147483648
          %v3685 = vxor.u32 %v3679, 2147483648
          %v3686 = vxor.u32 %v3680, 2147483648
          %v3687 = vmul.f32 %v3681, 1.442695
          %v3688 = vpow.pop %v3687
          %v3689 = vmul.f32 %v3682, 1.442695
          %v3690 = vpow.pop %v3689
          %v3691 = vmul.f32 %v3683, 1.442695
          %v3692 = vpow.pop %v3691
          %v3693 = vmul.f32 %v3684, 1.442695
          %v3694 = vpow.pop %v3693
          %v3695 = vmul.f32 %v3685, 1.442695
          %v3696 = vpow.pop %v3695
          %v3697 = vmul.f32 %v3686, 1.442695
          %v3698 = vpow.pop %v3697
          %v3699 = vadd.f32 %v3688, 1.0
          %v3700 = vadd.f32 %v3690, 1.0
          %v3701 = vadd.f32 %v3692, 1.0
          %v3702 = vadd.f32 %v3694, 1.0
          %v3703 = vadd.f32 %v3696, 1.0
          %v3704 = vadd.f32 %v3698, 1.0
          %v3705 = vrcp.pop %v3699
          %v3706 = vmul.f32 1.0, %v3705
          %v3707 = vrcp.pop %v3700
          %v3708 = vmul.f32 1.0, %v3707
          %v3709 = vrcp.pop %v3701
          %v3710 = vmul.f32 1.0, %v3709
          %v3711 = vrcp.pop %v3702
          %v3712 = vmul.f32 1.0, %v3711
          %v3713 = vrcp.pop %v3703
          %v3714 = vmul.f32 1.0, %v3713
          %v3715 = vrcp.pop %v3704
          %v3716 = vmul.f32 1.0, %v3715
          %3717 = vst.msk [vmem:[%s231] sm:$0xff] %vm3622, %v3706
          %3718 = vst.msk [vmem:[%s231 + $0x8] sm:$0xff] %vm3622, %v3708
          %3719 = vst.msk [vmem:[%s231 + $0x10] sm:$0xff] %vm3622, %v3710
          %3720 = vst.msk [vmem:[%s231 + $0x18] sm:$0xff] %vm3622, %v3712
          %3721 = vst.msk [vmem:[%s231 + $0x20] sm:$0xff] %vm3622, %v3714
          %3722 = vst.msk [vmem:[%s231 + $0x28] sm:$0xff] %vm3622, %v3716
        $region44: #{decoder_forward.1} parent=31 // pred_fallthru
          _
        %s3723 = smul.u32 6, %s21
        %p3724 = scmp.lt.s32.totalorder %s3723, 11
        %s3725 = scalar_select %p3724, %s3723, 11
        %s3726 = smul.addr %s3725, 8
        %s3727 = scalar_lea.vmem %s3, %s3726
        // Predicated region
        $region45: #{decoder_forward.1} parent=31 // pred_check
          %p3728 = pneg %p122
        $region46: #{decoder_forward.1} parent=31 // pred_check_branch
          %3730 = sbr.rel (%p3728) target = $region48
        $region47: #{decoder_forward.1} parent=31 // pred_region
          %s3731 = smul.u32 6, %s21
        $region48: #{decoder_forward.1} parent=31 // pred_fallthru
          _
      $region32: #{decoder_forward.1} parent=5 // pred_fallthru
        _
      %p3732 = scmp.le.s32.totalorder 2, %s12
      // Predicated region
      $region49: #{decoder_forward.1} parent=5 // pred_check
        %p3733 = pneg %p3732
      $region50: #{decoder_forward.1} parent=5 // pred_check_branch
        %3735 = sbr.rel (%p3733) target = $region52
      $region51: #{decoder_forward.1} parent=5 // pred_region
        %s3736 = ssub.s32 %s12, 2
        // Predicated region
        $region53: #{decoder_forward.1} parent=51 // pred_check
          %p3737 = pneg %p128
        $region54: #{decoder_forward.1} parent=51 // pred_check_branch
          %3739 = sbr.rel (%p3737) target = $region56
        $region55: #{decoder_forward.1} parent=51 // pred_region
          %s3740 = smul.u32 6, %s23
          %p3741 = scmp.lt.s32.totalorder %s3740, 11
          %s3742 = scalar_select %p3741, %s3740, 11
          %s3743 = smul.addr %s3742, 8
          %s3744 = scalar_lea.vmem %s3, %s3743
        $region56: #{decoder_forward.1} parent=51 // pred_fallthru
          _
      $region52: #{decoder_forward.1} parent=5 // pred_fallthru
        _
    $region6: #{decoder_forward.1} parent=1 // loop_footer
      %s16 = sadd.s32 1, %s12
    $region7: #{decoder_forward.1} parent=1 // loop_footer_branch
      %11 = sbr.rel target = $region3
    $region8: #{decoder_forward.1} parent=1 // loop_exit
      _
    %3745 = vsyncpa [#allocation3], 1
    %s3746 = scalar_lea.sflag [#allocation3], 1
    %3747 = vsyncpa %s3746, 1

</llo_original>
